<compile_context>
chip_gen: v7x
topology: tpu7x:2x2x1
jax: 0.10.0
libtpu: 0.0.40
codegen_flags: <defaults>
</compile_context>

<pallas_src>
import math
import functools

import jax
import jax.numpy as jnp
from jax.experimental import pallas as pl
from jax.experimental.pallas import tpu as pltpu


LANE = 128


def _round_up(x, m):
    return ((x + m - 1) // m) * m


# ---------------------------------------------------------------------------
# Fused Pallas kernel: whole decoder forward (all layers, whole batch)
# ---------------------------------------------------------------------------
def _decoder_kernel(*refs, K, hp_list):
    """refs = [Gb, x] + h[0..L-1] + sum_i [Wgx_i, Wgh_i, bg_i, Wux_i, Wuh_i, bu_i]
              + out[0..L-1]

    Shapes (all already padded to TPU-friendly sizes):
      Gb   : [K, Mp, Mp]      block-diagonal supports (batch folded into sublanes)
      x    : [Mp, C0]         layer-0 input
      h_i  : [Mp, Hp_i]       previous hidden state of layer i (lane-padded)
      Wgx_i: [K, Cin_i, 2*Hp_i]   Wgh_i: [K, Hp_i, 2*Hp_i]   bg_i: [1, 2*Hp_i]
      Wux_i: [K, Cin_i, Hp_i]     Wuh_i: [K, Hp_i, Hp_i]     bu_i: [1, Hp_i]
      out_i: [Mp, Hp_i]
    """
    L = len(hp_list)
    Gb_ref = refs[0]
    x_ref = refs[1]
    h_refs = refs[2:2 + L]
    w_refs = refs[2 + L:2 + 7 * L]
    out_refs = refs[2 + 7 * L:]

    # Hoist support-matrix loads: reused by both GCNs of every layer.
    Gks = [Gb_ref[k].astype(jnp.float32) for k in range(K)]

    x = x_ref[...].astype(jnp.float32)                      # [Mp, C0]
    for li in range(L):
        Hp = hp_list[li]
        Wgx_ref, Wgh_ref, bg_ref, Wux_ref, Wuh_ref, bu_ref = w_refs[6 * li:6 * li + 6]
        state = h_refs[li][...].astype(jnp.float32)         # [Mp, Hp]

        # ---- gate GCN:  sigmoid( sum_k (G_k@x)Wgx_k + (G_k@s)Wgh_k + bg ) ----
        px = []
        gate_acc = None
        for k in range(K):
            Pxk = jnp.dot(Gks[k], x, preferred_element_type=jnp.float32)
            Phk = jnp.dot(Gks[k], state, preferred_element_type=jnp.float32)
            t = (jnp.dot(Pxk, Wgx_ref[k], preferred_element_type=jnp.float32)
                 + jnp.dot(Phk, Wgh_ref[k], preferred_element_type=jnp.float32))
            gate_acc = t if gate_acc is None else gate_acc + t
            px.append(Pxk)                                   # reuse G_k@x below
        gate = jax.nn.sigmoid(gate_acc + bg_ref[...])        # [Mp, 2*Hp]
        z = gate[:, :Hp]                                     # lane-aligned slices
        r = gate[:, Hp:]

        # ---- update GCN: tanh( sum_k (G_k@x)Wux_k + (G_k@(r*s))Wuh_k + bu ) ----
        rs = r * state
        cand_acc = None
        for k in range(K):
            Pck = jnp.dot(Gks[k], rs, preferred_element_type=jnp.float32)
            t = (jnp.dot(px[k], Wux_ref[k], preferred_element_type=jnp.float32)
                 + jnp.dot(Pck, Wuh_ref[k], preferred_element_type=jnp.float32))
            cand_acc = t if cand_acc is None else cand_acc + t
        hc = jnp.tanh(cand_acc + bu_ref[...])                # [Mp, Hp]

        # ---- GRU update ----
        h_new = (1.0 - z) * state + z * hc
        out_refs[li][...] = h_new.astype(out_refs[li].dtype)
        x = h_new                                            # feed next layer


# ---------------------------------------------------------------------------
# Parameter init (xavier_normal_ for W, zeros for b) — matches PyTorch module
# ---------------------------------------------------------------------------
def xavier_normal(key, shape):
    fan_in, fan_out = shape
    std = math.sqrt(2.0 / (fan_in + fan_out))
    return std * jax.random.normal(key, shape, dtype=jnp.float32)


def make_decoder_params(key, *, dim_out, dim_hidden_list, K):
    params = []
    for i, H in enumerate(dim_hidden_list):
        dim_in = dim_out if i == 0 else dim_hidden_list[i - 1]
        kg, ku, key = jax.random.split(key, 3)
        Wg = xavier_normal(kg, (K * (dim_in + H), 2 * H))
        bg = jnp.zeros((2 * H,), jnp.float32)
        Wu = xavier_normal(ku, (K * (dim_in + H), H))
        bu = jnp.zeros((H,), jnp.float32)
        params.append(dict(Wg=Wg, bg=bg, Wu=Wu, bu=bu, H=H))
    return params


# ---------------------------------------------------------------------------
# One-time weight prep: split per-k, split [W_x; W_h], pad H -> multiple of 128
# ---------------------------------------------------------------------------
def prepare_decoder_params(params, *, dim_in0, K):
    prepped = []
    c_real = dim_in0          # real input feature width of this layer
    c_pad = dim_in0           # padded width actually fed to the kernel
    for p in params:
        H = p["H"]
        Hp = _round_up(H, LANE)
        CH = c_real + H

        Wg = p["Wg"].reshape(K, CH, 2 * H)
        Wu = p["Wu"].reshape(K, CH, H)
        Wg_x, Wg_h = Wg[:, :c_real, :], Wg[:, c_real:, :]
        Wu_x, Wu_h = Wu[:, :c_real, :], Wu[:, c_real:, :]

        def pad_last(W, width):
            return jnp.pad(W, [(0, 0)] * (W.ndim - 1) + [(0, width - W.shape[-1])])

        def pad_gate_cols(W):   # [..., 2H] -> [..., 2Hp] laid out as [z-block | r-block]
            Wz, Wr = W[..., :H], W[..., H:]
            return jnp.concatenate([pad_last(Wz, Hp), pad_last(Wr, Hp)], axis=-1)

        def pad_rows(W, rows):  # pad dim -2 with zeros
            return jnp.pad(W, [(0, 0)] * (W.ndim - 2)
                           + [(0, rows - W.shape[-2]), (0, 0)])

        prepped.append(dict(
            Wgx=pad_rows(pad_gate_cols(Wg_x), c_pad),    # [K, c_pad, 2Hp]
            Wgh=pad_rows(pad_gate_cols(Wg_h), Hp),       # [K, Hp,    2Hp]
            bg=pad_gate_cols(p["bg"].reshape(1, 2 * H)),  # [1, 2Hp]
            Wux=pad_rows(pad_last(Wu_x, Hp), c_pad),     # [K, c_pad, Hp]
            Wuh=pad_rows(pad_last(Wu_h, Hp), Hp),        # [K, Hp,    Hp]
            bu=pad_last(p["bu"].reshape(1, H), Hp),      # [1, Hp]
            H=H, Hp=Hp,
        ))
        c_real, c_pad = H, Hp
    return prepped


# ---------------------------------------------------------------------------
# Decoder forward: one fused pallas_call (batch folded, layers unrolled in-kernel)
# ---------------------------------------------------------------------------
def decoder_forward(prepped, G, x_t, h_list, *, K):
    B, N, C = x_t.shape
    M = B * N
    Mp = _round_up(M, 8)
    L = len(prepped)

    # Block-diagonal supports: folds the batch into plain 2-D matmuls.
    Gb = jnp.einsum('ab,kij->kaibj', jnp.eye(B, dtype=jnp.float32),
                    G.astype(jnp.float32)).reshape(K, M, M)
    if Mp != M:
        Gb = jnp.pad(Gb, ((0, 0), (0, Mp - M), (0, Mp - M)))

    x_flat = x_t.astype(jnp.float32).reshape(M, C)
    if Mp != M:
        x_flat = jnp.pad(x_flat, ((0, Mp - M), (0, 0)))

    h_flats = []
    for p, h in zip(prepped, h_list):
        hf = h.astype(jnp.float32).reshape(M, p["H"])
        hf = jnp.pad(hf, ((0, Mp - M), (0, p["Hp"] - p["H"])))
        h_flats.append(hf)

    inputs = [Gb, x_flat] + h_flats
    for p in prepped:
        inputs += [p["Wgx"], p["Wgh"], p["bg"], p["Wux"], p["Wuh"], p["bu"]]

    kernel = functools.partial(_decoder_kernel, K=K,
                               hp_list=tuple(p["Hp"] for p in prepped))
    vmem_spec = pl.BlockSpec(memory_space=pltpu.MemorySpace.VMEM)

    outs = pl.pallas_call(
        kernel,
        out_shape=tuple(jax.ShapeDtypeStruct((Mp, p["Hp"]), jnp.float32)
                        for p in prepped),
        in_specs=[vmem_spec] * len(inputs),
        out_specs=tuple([vmem_spec] * L),
    )(*inputs)

    h_lst = [o[:M, :p["H"]].reshape(B, N, p["H"])
             for p, o in zip(prepped, outs)]
    return h_lst[-1], h_lst


# ---------------------------------------------------------------------------
# Pure-JAX reference (mirrors the PyTorch einsum semantics) for sanity check
# ---------------------------------------------------------------------------
def _gcn_ref(G, x, W, b, K):
    supports = jnp.concatenate(
        [jnp.einsum('ij,bjp->bip', G[k], x) for k in range(K)], axis=-1)
    return jnp.einsum('bip,pq->biq', supports, W) + b


def _cell_ref(G, x, state, p, K):
    H = p["H"]
    combined = jnp.concatenate([x, state], axis=-1)
    zr = jax.nn.sigmoid(_gcn_ref(G, combined, p["Wg"], p["bg"], K))
    z, r = zr[..., :H], zr[..., H:]
    candidate = jnp.concatenate([x, r * state], axis=-1)
    hc = jnp.tanh(_gcn_ref(G, candidate, p["Wu"], p["bu"], K))
    return (1.0 - z) * state + z * hc


def decoder_ref(params, G, x_t, h_list, *, K):
    cur = x_t
    outs = []
    for i, p in enumerate(params):
        cur = _cell_ref(G, cur, h_list[i], p, K)
        outs.append(cur)
    return cur, outs


# ---------------------------------------------------------------------------
if __name__ == "__main__":
    # Small, module-consistent shapes
    B, N, C, H, K = 2, 16, 4, 32, 3      # batch, nodes, dim_out (=decoder input), hidden, Chebyshev K
    num_layers = 2

    key = jax.random.PRNGKey(0)
    kG, kx, kh0, kh1, kp = jax.random.split(key, 5)

    G = jax.random.normal(kG, (K, N, N), dtype=jnp.float32)
    x_t = jax.random.normal(kx, (B, N, C), dtype=jnp.float32)
    h_list = [jax.random.normal(kh0, (B, N, H), dtype=jnp.float32),
              jax.random.normal(kh1, (B, N, H), dtype=jnp.float32)]

    params = make_decoder_params(kp, dim_out=C, dim_hidden_list=[H] * num_layers, K=K)
    prepped = prepare_decoder_params(params, dim_in0=C, K=K)

    output, h_lst = decoder_forward(prepped, G, x_t, h_list, K=K)
    output = jax.block_until_ready(output)
    h_lst = [jax.block_until_ready(h) for h in h_lst]

    # correctness check against pure-JAX reference of the PyTorch math
    ref_out, ref_h = decoder_ref(params, G, x_t, h_list, K=K)
    assert jnp.allclose(output, ref_out, atol=1e-4, rtol=1e-4)
    for a, b in zip(h_lst, ref_h):
        assert jnp.allclose(a, b, atol=1e-4, rtol=1e-4)

    print("KERNEL_OK")
</pallas_src>

<mosaic_0001>
module attributes {stable_mosaic.version = 11 : i64} {
  func.func @_decoder_kernel(%arg0: memref<3x32x32xf32, #tpu.memory_space<vmem>>, %arg1: memref<32x4xf32, #tpu.memory_space<vmem>>, %arg2: memref<32x128xf32, #tpu.memory_space<vmem>>, %arg3: memref<32x128xf32, #tpu.memory_space<vmem>>, %arg4: memref<3x4x256xf32, #tpu.memory_space<vmem>>, %arg5: memref<3x128x256xf32, #tpu.memory_space<vmem>>, %arg6: memref<1x256xf32, #tpu.memory_space<vmem>>, %arg7: memref<3x4x128xf32, #tpu.memory_space<vmem>>, %arg8: memref<3x128x128xf32, #tpu.memory_space<vmem>>, %arg9: memref<1x128xf32, #tpu.memory_space<vmem>>, %arg10: memref<3x128x256xf32, #tpu.memory_space<vmem>>, %arg11: memref<3x128x256xf32, #tpu.memory_space<vmem>>, %arg12: memref<1x256xf32, #tpu.memory_space<vmem>>, %arg13: memref<3x128x128xf32, #tpu.memory_space<vmem>>, %arg14: memref<3x128x128xf32, #tpu.memory_space<vmem>>, %arg15: memref<1x128xf32, #tpu.memory_space<vmem>>, %arg16: memref<32x128xf32, #tpu.memory_space<vmem>>, %arg17: memref<32x128xf32, #tpu.memory_space<vmem>>) attributes {dimension_semantics = [], scalar_prefetch = 0 : i64, scratch_operands = 0 : i64, tpu.core_type = #tpu.core_type<tc>} {
    %c0 = arith.constant 0 : index
    %c0_0 = arith.constant 0 : index
    %c0_1 = arith.constant 0 : index
    %0 = vector.load %arg0[%c0, %c0_0, %c0_1] : memref<3x32x32xf32, #tpu.memory_space<vmem>>, vector<1x32x32xf32>
    %1 = vector.shape_cast %0 : vector<1x32x32xf32> to vector<32x32xf32>
    %c1 = arith.constant 1 : index
    %c0_2 = arith.constant 0 : index
    %c0_3 = arith.constant 0 : index
    %2 = vector.load %arg0[%c1, %c0_2, %c0_3] : memref<3x32x32xf32, #tpu.memory_space<vmem>>, vector<1x32x32xf32>
    %3 = vector.shape_cast %2 : vector<1x32x32xf32> to vector<32x32xf32>
    %c2 = arith.constant 2 : index
    %c0_4 = arith.constant 0 : index
    %c0_5 = arith.constant 0 : index
    %4 = vector.load %arg0[%c2, %c0_4, %c0_5] : memref<3x32x32xf32, #tpu.memory_space<vmem>>, vector<1x32x32xf32>
    %5 = vector.shape_cast %4 : vector<1x32x32xf32> to vector<32x32xf32>
    %c0_6 = arith.constant 0 : index
    %c0_7 = arith.constant 0 : index
    %6 = vector.load %arg1[%c0_6, %c0_7] : memref<32x4xf32, #tpu.memory_space<vmem>>, vector<32x4xf32>
    %c0_8 = arith.constant 0 : index
    %c0_9 = arith.constant 0 : index
    %7 = vector.load %arg2[%c0_8, %c0_9] : memref<32x128xf32, #tpu.memory_space<vmem>>, vector<32x128xf32>
    %cst = arith.constant dense<0.000000e+00> : vector<32x4xf32>
    %8 = tpu.matmul %1, %6, %cst {dimension_numbers = #tpu.dot_dimension_numbers<[1], [0], [0], [1], [0, 0, 1, 1], [], []>} : vector<32x32xf32>, vector<32x4xf32>, vector<32x4xf32> -> vector<32x4xf32>
    %cst_10 = arith.constant dense<0.000000e+00> : vector<32x128xf32>
    %9 = tpu.matmul %1, %7, %cst_10 {dimension_numbers = #tpu.dot_dimension_numbers<[1], [0], [0], [1], [0, 0, 1, 1], [], []>} : vector<32x32xf32>, vector<32x128xf32>, vector<32x128xf32> -> vector<32x128xf32>
    %c0_11 = arith.constant 0 : index
    %c0_12 = arith.constant 0 : index
    %c0_13 = arith.constant 0 : index
    %10 = vector.load %arg4[%c0_11, %c0_12, %c0_13] : memref<3x4x256xf32, #tpu.memory_space<vmem>>, vector<1x4x256xf32>
    %11 = vector.shape_cast %10 : vector<1x4x256xf32> to vector<4x256xf32>
    %cst_14 = arith.constant dense<0.000000e+00> : vector<32x256xf32>
    %12 = tpu.matmul %8, %11, %cst_14 {dimension_numbers = #tpu.dot_dimension_numbers<[1], [0], [0], [1], [0, 0, 1, 1], [], []>} : vector<32x4xf32>, vector<4x256xf32>, vector<32x256xf32> -> vector<32x256xf32>
    %c0_15 = arith.constant 0 : index
    %c0_16 = arith.constant 0 : index
    %c0_17 = arith.constant 0 : index
    %13 = vector.load %arg5[%c0_15, %c0_16, %c0_17] : memref<3x128x256xf32, #tpu.memory_space<vmem>>, vector<1x128x256xf32>
    %14 = vector.shape_cast %13 : vector<1x128x256xf32> to vector<128x256xf32>
    %cst_18 = arith.constant dense<0.000000e+00> : vector<32x256xf32>
    %15 = tpu.matmul %9, %14, %cst_18 {dimension_numbers = #tpu.dot_dimension_numbers<[1], [0], [0], [1], [0, 0, 1, 1], [], []>} : vector<32x128xf32>, vector<128x256xf32>, vector<32x256xf32> -> vector<32x256xf32>
    %16 = arith.addf %12, %15 : vector<32x256xf32>
    %cst_19 = arith.constant dense<0.000000e+00> : vector<32x4xf32>
    %17 = tpu.matmul %3, %6, %cst_19 {dimension_numbers = #tpu.dot_dimension_numbers<[1], [0], [0], [1], [0, 0, 1, 1], [], []>} : vector<32x32xf32>, vector<32x4xf32>, vector<32x4xf32> -> vector<32x4xf32>
    %cst_20 = arith.constant dense<0.000000e+00> : vector<32x128xf32>
    %18 = tpu.matmul %3, %7, %cst_20 {dimension_numbers = #tpu.dot_dimension_numbers<[1], [0], [0], [1], [0, 0, 1, 1], [], []>} : vector<32x32xf32>, vector<32x128xf32>, vector<32x128xf32> -> vector<32x128xf32>
    %c1_21 = arith.constant 1 : index
    %c0_22 = arith.constant 0 : index
    %c0_23 = arith.constant 0 : index
    %19 = vector.load %arg4[%c1_21, %c0_22, %c0_23] : memref<3x4x256xf32, #tpu.memory_space<vmem>>, vector<1x4x256xf32>
    %20 = vector.shape_cast %19 : vector<1x4x256xf32> to vector<4x256xf32>
    %cst_24 = arith.constant dense<0.000000e+00> : vector<32x256xf32>
    %21 = tpu.matmul %17, %20, %cst_24 {dimension_numbers = #tpu.dot_dimension_numbers<[1], [0], [0], [1], [0, 0, 1, 1], [], []>} : vector<32x4xf32>, vector<4x256xf32>, vector<32x256xf32> -> vector<32x256xf32>
    %c1_25 = arith.constant 1 : index
    %c0_26 = arith.constant 0 : index
    %c0_27 = arith.constant 0 : index
    %22 = vector.load %arg5[%c1_25, %c0_26, %c0_27] : memref<3x128x256xf32, #tpu.memory_space<vmem>>, vector<1x128x256xf32>
    %23 = vector.shape_cast %22 : vector<1x128x256xf32> to vector<128x256xf32>
    %cst_28 = arith.constant dense<0.000000e+00> : vector<32x256xf32>
    %24 = tpu.matmul %18, %23, %cst_28 {dimension_numbers = #tpu.dot_dimension_numbers<[1], [0], [0], [1], [0, 0, 1, 1], [], []>} : vector<32x128xf32>, vector<128x256xf32>, vector<32x256xf32> -> vector<32x256xf32>
    %25 = arith.addf %21, %24 : vector<32x256xf32>
    %26 = arith.addf %16, %25 : vector<32x256xf32>
    %cst_29 = arith.constant dense<0.000000e+00> : vector<32x4xf32>
    %27 = tpu.matmul %5, %6, %cst_29 {dimension_numbers = #tpu.dot_dimension_numbers<[1], [0], [0], [1], [0, 0, 1, 1], [], []>} : vector<32x32xf32>, vector<32x4xf32>, vector<32x4xf32> -> vector<32x4xf32>
    %cst_30 = arith.constant dense<0.000000e+00> : vector<32x128xf32>
    %28 = tpu.matmul %5, %7, %cst_30 {dimension_numbers = #tpu.dot_dimension_numbers<[1], [0], [0], [1], [0, 0, 1, 1], [], []>} : vector<32x32xf32>, vector<32x128xf32>, vector<32x128xf32> -> vector<32x128xf32>
    %c2_31 = arith.constant 2 : index
    %c0_32 = arith.constant 0 : index
    %c0_33 = arith.constant 0 : index
    %29 = vector.load %arg4[%c2_31, %c0_32, %c0_33] : memref<3x4x256xf32, #tpu.memory_space<vmem>>, vector<1x4x256xf32>
    %30 = vector.shape_cast %29 : vector<1x4x256xf32> to vector<4x256xf32>
    %cst_34 = arith.constant dense<0.000000e+00> : vector<32x256xf32>
    %31 = tpu.matmul %27, %30, %cst_34 {dimension_numbers = #tpu.dot_dimension_numbers<[1], [0], [0], [1], [0, 0, 1, 1], [], []>} : vector<32x4xf32>, vector<4x256xf32>, vector<32x256xf32> -> vector<32x256xf32>
    %c2_35 = arith.constant 2 : index
    %c0_36 = arith.constant 0 : index
    %c0_37 = arith.constant 0 : index
    %32 = vector.load %arg5[%c2_35, %c0_36, %c0_37] : memref<3x128x256xf32, #tpu.memory_space<vmem>>, vector<1x128x256xf32>
    %33 = vector.shape_cast %32 : vector<1x128x256xf32> to vector<128x256xf32>
    %cst_38 = arith.constant dense<0.000000e+00> : vector<32x256xf32>
    %34 = tpu.matmul %28, %33, %cst_38 {dimension_numbers = #tpu.dot_dimension_numbers<[1], [0], [0], [1], [0, 0, 1, 1], [], []>} : vector<32x128xf32>, vector<128x256xf32>, vector<32x256xf32> -> vector<32x256xf32>
    %35 = arith.addf %31, %34 : vector<32x256xf32>
    %36 = arith.addf %26, %35 : vector<32x256xf32>
    %c0_39 = arith.constant 0 : index
    %c0_40 = arith.constant 0 : index
    %37 = vector.load %arg6[%c0_39, %c0_40] : memref<1x256xf32, #tpu.memory_space<vmem>>, vector<1x256xf32>
    %38 = vector.broadcast %37 : vector<1x256xf32> to vector<32x256xf32>
    %39 = arith.addf %36, %38 : vector<32x256xf32>
    %40 = arith.negf %39 : vector<32x256xf32>
    %41 = math.exp %40 : vector<32x256xf32>
    %cst_41 = arith.constant 1.000000e+00 : f32
    %42 = vector.broadcast %cst_41 : f32 to vector<32x256xf32>
    %43 = arith.addf %42, %41 : vector<32x256xf32>
    %44 = arith.divf %42, %43 : vector<32x256xf32>
    %45 = vector.extract_strided_slice %44 {offsets = [0, 0], sizes = [32, 128], strides = [1, 1]} : vector<32x256xf32> to vector<32x128xf32>
    %46 = vector.extract_strided_slice %44 {offsets = [0, 128], sizes = [32, 128], strides = [1, 1]} : vector<32x256xf32> to vector<32x128xf32>
    %47 = arith.mulf %46, %7 : vector<32x128xf32>
    %cst_42 = arith.constant dense<0.000000e+00> : vector<32x128xf32>
    %48 = tpu.matmul %1, %47, %cst_42 {dimension_numbers = #tpu.dot_dimension_numbers<[1], [0], [0], [1], [0, 0, 1, 1], [], []>} : vector<32x32xf32>, vector<32x128xf32>, vector<32x128xf32> -> vector<32x128xf32>
    %c0_43 = arith.constant 0 : index
    %c0_44 = arith.constant 0 : index
    %c0_45 = arith.constant 0 : index
    %49 = vector.load %arg7[%c0_43, %c0_44, %c0_45] : memref<3x4x128xf32, #tpu.memory_space<vmem>>, vector<1x4x128xf32>
    %50 = vector.shape_cast %49 : vector<1x4x128xf32> to vector<4x128xf32>
    %cst_46 = arith.constant dense<0.000000e+00> : vector<32x128xf32>
    %51 = tpu.matmul %8, %50, %cst_46 {dimension_numbers = #tpu.dot_dimension_numbers<[1], [0], [0], [1], [0, 0, 1, 1], [], []>} : vector<32x4xf32>, vector<4x128xf32>, vector<32x128xf32> -> vector<32x128xf32>
    %c0_47 = arith.constant 0 : index
    %c0_48 = arith.constant 0 : index
    %c0_49 = arith.constant 0 : index
    %52 = vector.load %arg8[%c0_47, %c0_48, %c0_49] : memref<3x128x128xf32, #tpu.memory_space<vmem>>, vector<1x128x128xf32>
    %53 = vector.shape_cast %52 : vector<1x128x128xf32> to vector<128x128xf32>
    %cst_50 = arith.constant dense<0.000000e+00> : vector<32x128xf32>
    %54 = tpu.matmul %48, %53, %cst_50 {dimension_numbers = #tpu.dot_dimension_numbers<[1], [0], [0], [1], [0, 0, 1, 1], [], []>} : vector<32x128xf32>, vector<128x128xf32>, vector<32x128xf32> -> vector<32x128xf32>
    %55 = arith.addf %51, %54 : vector<32x128xf32>
    %cst_51 = arith.constant dense<0.000000e+00> : vector<32x128xf32>
    %56 = tpu.matmul %3, %47, %cst_51 {dimension_numbers = #tpu.dot_dimension_numbers<[1], [0], [0], [1], [0, 0, 1, 1], [], []>} : vector<32x32xf32>, vector<32x128xf32>, vector<32x128xf32> -> vector<32x128xf32>
    %c1_52 = arith.constant 1 : index
    %c0_53 = arith.constant 0 : index
    %c0_54 = arith.constant 0 : index
    %57 = vector.load %arg7[%c1_52, %c0_53, %c0_54] : memref<3x4x128xf32, #tpu.memory_space<vmem>>, vector<1x4x128xf32>
    %58 = vector.shape_cast %57 : vector<1x4x128xf32> to vector<4x128xf32>
    %cst_55 = arith.constant dense<0.000000e+00> : vector<32x128xf32>
    %59 = tpu.matmul %17, %58, %cst_55 {dimension_numbers = #tpu.dot_dimension_numbers<[1], [0], [0], [1], [0, 0, 1, 1], [], []>} : vector<32x4xf32>, vector<4x128xf32>, vector<32x128xf32> -> vector<32x128xf32>
    %c1_56 = arith.constant 1 : index
    %c0_57 = arith.constant 0 : index
    %c0_58 = arith.constant 0 : index
    %60 = vector.load %arg8[%c1_56, %c0_57, %c0_58] : memref<3x128x128xf32, #tpu.memory_space<vmem>>, vector<1x128x128xf32>
    %61 = vector.shape_cast %60 : vector<1x128x128xf32> to vector<128x128xf32>
    %cst_59 = arith.constant dense<0.000000e+00> : vector<32x128xf32>
    %62 = tpu.matmul %56, %61, %cst_59 {dimension_numbers = #tpu.dot_dimension_numbers<[1], [0], [0], [1], [0, 0, 1, 1], [], []>} : vector<32x128xf32>, vector<128x128xf32>, vector<32x128xf32> -> vector<32x128xf32>
    %63 = arith.addf %59, %62 : vector<32x128xf32>
    %64 = arith.addf %55, %63 : vector<32x128xf32>
    %cst_60 = arith.constant dense<0.000000e+00> : vector<32x128xf32>
    %65 = tpu.matmul %5, %47, %cst_60 {dimension_numbers = #tpu.dot_dimension_numbers<[1], [0], [0], [1], [0, 0, 1, 1], [], []>} : vector<32x32xf32>, vector<32x128xf32>, vector<32x128xf32> -> vector<32x128xf32>
    %c2_61 = arith.constant 2 : index
    %c0_62 = arith.constant 0 : index
    %c0_63 = arith.constant 0 : index
    %66 = vector.load %arg7[%c2_61, %c0_62, %c0_63] : memref<3x4x128xf32, #tpu.memory_space<vmem>>, vector<1x4x128xf32>
    %67 = vector.shape_cast %66 : vector<1x4x128xf32> to vector<4x128xf32>
    %cst_64 = arith.constant dense<0.000000e+00> : vector<32x128xf32>
    %68 = tpu.matmul %27, %67, %cst_64 {dimension_numbers = #tpu.dot_dimension_numbers<[1], [0], [0], [1], [0, 0, 1, 1], [], []>} : vector<32x4xf32>, vector<4x128xf32>, vector<32x128xf32> -> vector<32x128xf32>
    %c2_65 = arith.constant 2 : index
    %c0_66 = arith.constant 0 : index
    %c0_67 = arith.constant 0 : index
    %69 = vector.load %arg8[%c2_65, %c0_66, %c0_67] : memref<3x128x128xf32, #tpu.memory_space<vmem>>, vector<1x128x128xf32>
    %70 = vector.shape_cast %69 : vector<1x128x128xf32> to vector<128x128xf32>
    %cst_68 = arith.constant dense<0.000000e+00> : vector<32x128xf32>
    %71 = tpu.matmul %65, %70, %cst_68 {dimension_numbers = #tpu.dot_dimension_numbers<[1], [0], [0], [1], [0, 0, 1, 1], [], []>} : vector<32x128xf32>, vector<128x128xf32>, vector<32x128xf32> -> vector<32x128xf32>
    %72 = arith.addf %68, %71 : vector<32x128xf32>
    %73 = arith.addf %64, %72 : vector<32x128xf32>
    %c0_69 = arith.constant 0 : index
    %c0_70 = arith.constant 0 : index
    %74 = vector.load %arg9[%c0_69, %c0_70] : memref<1x128xf32, #tpu.memory_space<vmem>>, vector<1x128xf32>
    %75 = vector.broadcast %74 : vector<1x128xf32> to vector<32x128xf32>
    %76 = arith.addf %73, %75 : vector<32x128xf32>
    %77 = math.tanh %76 : vector<32x128xf32>
    %cst_71 = arith.constant 1.000000e+00 : f32
    %78 = vector.broadcast %cst_71 : f32 to vector<32x128xf32>
    %79 = arith.subf %78, %45 : vector<32x128xf32>
    %80 = arith.mulf %79, %7 : vector<32x128xf32>
    %81 = arith.mulf %45, %77 : vector<32x128xf32>
    %82 = arith.addf %80, %81 : vector<32x128xf32>
    %c0_72 = arith.constant 0 : index
    %c0_73 = arith.constant 0 : index
    %83 = vector.load %arg16[%c0_72, %c0_73] : memref<32x128xf32, #tpu.memory_space<vmem>>, vector<32x128xf32>
    tpu.vector_store %arg16[%c0_72, %c0_73], %82 {strides = array<i32>} : memref<32x128xf32, #tpu.memory_space<vmem>>, vector<32x128xf32>,
    %c0_74 = arith.constant 0 : index
    %c0_75 = arith.constant 0 : index
    %84 = vector.load %arg3[%c0_74, %c0_75] : memref<32x128xf32, #tpu.memory_space<vmem>>, vector<32x128xf32>
    %cst_76 = arith.constant dense<0.000000e+00> : vector<32x128xf32>
    %85 = tpu.matmul %1, %82, %cst_76 {dimension_numbers = #tpu.dot_dimension_numbers<[1], [0], [0], [1], [0, 0, 1, 1], [], []>} : vector<32x32xf32>, vector<32x128xf32>, vector<32x128xf32> -> vector<32x128xf32>
    %cst_77 = arith.constant dense<0.000000e+00> : vector<32x128xf32>
    %86 = tpu.matmul %1, %84, %cst_77 {dimension_numbers = #tpu.dot_dimension_numbers<[1], [0], [0], [1], [0, 0, 1, 1], [], []>} : vector<32x32xf32>, vector<32x128xf32>, vector<32x128xf32> -> vector<32x128xf32>
    %c0_78 = arith.constant 0 : index
    %c0_79 = arith.constant 0 : index
    %c0_80 = arith.constant 0 : index
    %87 = vector.load %arg10[%c0_78, %c0_79, %c0_80] : memref<3x128x256xf32, #tpu.memory_space<vmem>>, vector<1x128x256xf32>
    %88 = vector.shape_cast %87 : vector<1x128x256xf32> to vector<128x256xf32>
    %cst_81 = arith.constant dense<0.000000e+00> : vector<32x256xf32>
    %89 = tpu.matmul %85, %88, %cst_81 {dimension_numbers = #tpu.dot_dimension_numbers<[1], [0], [0], [1], [0, 0, 1, 1], [], []>} : vector<32x128xf32>, vector<128x256xf32>, vector<32x256xf32> -> vector<32x256xf32>
    %c0_82 = arith.constant 0 : index
    %c0_83 = arith.constant 0 : index
    %c0_84 = arith.constant 0 : index
    %90 = vector.load %arg11[%c0_82, %c0_83, %c0_84] : memref<3x128x256xf32, #tpu.memory_space<vmem>>, vector<1x128x256xf32>
    %91 = vector.shape_cast %90 : vector<1x128x256xf32> to vector<128x256xf32>
    %cst_85 = arith.constant dense<0.000000e+00> : vector<32x256xf32>
    %92 = tpu.matmul %86, %91, %cst_85 {dimension_numbers = #tpu.dot_dimension_numbers<[1], [0], [0], [1], [0, 0, 1, 1], [], []>} : vector<32x128xf32>, vector<128x256xf32>, vector<32x256xf32> -> vector<32x256xf32>
    %93 = arith.addf %89, %92 : vector<32x256xf32>
    %cst_86 = arith.constant dense<0.000000e+00> : vector<32x128xf32>
    %94 = tpu.matmul %3, %82, %cst_86 {dimension_numbers = #tpu.dot_dimension_numbers<[1], [0], [0], [1], [0, 0, 1, 1], [], []>} : vector<32x32xf32>, vector<32x128xf32>, vector<32x128xf32> -> vector<32x128xf32>
    %cst_87 = arith.constant dense<0.000000e+00> : vector<32x128xf32>
    %95 = tpu.matmul %3, %84, %cst_87 {dimension_numbers = #tpu.dot_dimension_numbers<[1], [0], [0], [1], [0, 0, 1, 1], [], []>} : vector<32x32xf32>, vector<32x128xf32>, vector<32x128xf32> -> vector<32x128xf32>
    %c1_88 = arith.constant 1 : index
    %c0_89 = arith.constant 0 : index
    %c0_90 = arith.constant 0 : index
    %96 = vector.load %arg10[%c1_88, %c0_89, %c0_90] : memref<3x128x256xf32, #tpu.memory_space<vmem>>, vector<1x128x256xf32>
    %97 = vector.shape_cast %96 : vector<1x128x256xf32> to vector<128x256xf32>
    %cst_91 = arith.constant dense<0.000000e+00> : vector<32x256xf32>
    %98 = tpu.matmul %94, %97, %cst_91 {dimension_numbers = #tpu.dot_dimension_numbers<[1], [0], [0], [1], [0, 0, 1, 1], [], []>} : vector<32x128xf32>, vector<128x256xf32>, vector<32x256xf32> -> vector<32x256xf32>
    %c1_92 = arith.constant 1 : index
    %c0_93 = arith.constant 0 : index
    %c0_94 = arith.constant 0 : index
    %99 = vector.load %arg11[%c1_92, %c0_93, %c0_94] : memref<3x128x256xf32, #tpu.memory_space<vmem>>, vector<1x128x256xf32>
    %100 = vector.shape_cast %99 : vector<1x128x256xf32> to vector<128x256xf32>
    %cst_95 = arith.constant dense<0.000000e+00> : vector<32x256xf32>
    %101 = tpu.matmul %95, %100, %cst_95 {dimension_numbers = #tpu.dot_dimension_numbers<[1], [0], [0], [1], [0, 0, 1, 1], [], []>} : vector<32x128xf32>, vector<128x256xf32>, vector<32x256xf32> -> vector<32x256xf32>
    %102 = arith.addf %98, %101 : vector<32x256xf32>
    %103 = arith.addf %93, %102 : vector<32x256xf32>
    %cst_96 = arith.constant dense<0.000000e+00> : vector<32x128xf32>
    %104 = tpu.matmul %5, %82, %cst_96 {dimension_numbers = #tpu.dot_dimension_numbers<[1], [0], [0], [1], [0, 0, 1, 1], [], []>} : vector<32x32xf32>, vector<32x128xf32>, vector<32x128xf32> -> vector<32x128xf32>
    %cst_97 = arith.constant dense<0.000000e+00> : vector<32x128xf32>
    %105 = tpu.matmul %5, %84, %cst_97 {dimension_numbers = #tpu.dot_dimension_numbers<[1], [0], [0], [1], [0, 0, 1, 1], [], []>} : vector<32x32xf32>, vector<32x128xf32>, vector<32x128xf32> -> vector<32x128xf32>
    %c2_98 = arith.constant 2 : index
    %c0_99 = arith.constant 0 : index
    %c0_100 = arith.constant 0 : index
    %106 = vector.load %arg10[%c2_98, %c0_99, %c0_100] : memref<3x128x256xf32, #tpu.memory_space<vmem>>, vector<1x128x256xf32>
    %107 = vector.shape_cast %106 : vector<1x128x256xf32> to vector<128x256xf32>
    %cst_101 = arith.constant dense<0.000000e+00> : vector<32x256xf32>
    %108 = tpu.matmul %104, %107, %cst_101 {dimension_numbers = #tpu.dot_dimension_numbers<[1], [0], [0], [1], [0, 0, 1, 1], [], []>} : vector<32x128xf32>, vector<128x256xf32>, vector<32x256xf32> -> vector<32x256xf32>
    %c2_102 = arith.constant 2 : index
    %c0_103 = arith.constant 0 : index
    %c0_104 = arith.constant 0 : index
    %109 = vector.load %arg11[%c2_102, %c0_103, %c0_104] : memref<3x128x256xf32, #tpu.memory_space<vmem>>, vector<1x128x256xf32>
    %110 = vector.shape_cast %109 : vector<1x128x256xf32> to vector<128x256xf32>
    %cst_105 = arith.constant dense<0.000000e+00> : vector<32x256xf32>
    %111 = tpu.matmul %105, %110, %cst_105 {dimension_numbers = #tpu.dot_dimension_numbers<[1], [0], [0], [1], [0, 0, 1, 1], [], []>} : vector<32x128xf32>, vector<128x256xf32>, vector<32x256xf32> -> vector<32x256xf32>
    %112 = arith.addf %108, %111 : vector<32x256xf32>
    %113 = arith.addf %103, %112 : vector<32x256xf32>
    %c0_106 = arith.constant 0 : index
    %c0_107 = arith.constant 0 : index
    %114 = vector.load %arg12[%c0_106, %c0_107] : memref<1x256xf32, #tpu.memory_space<vmem>>, vector<1x256xf32>
    %115 = vector.broadcast %114 : vector<1x256xf32> to vector<32x256xf32>
    %116 = arith.addf %113, %115 : vector<32x256xf32>
    %117 = arith.negf %116 : vector<32x256xf32>
    %118 = math.exp %117 : vector<32x256xf32>
    %cst_108 = arith.constant 1.000000e+00 : f32
    %119 = vector.broadcast %cst_108 : f32 to vector<32x256xf32>
    %120 = arith.addf %119, %118 : vector<32x256xf32>
    %121 = arith.divf %119, %120 : vector<32x256xf32>
    %122 = vector.extract_strided_slice %121 {offsets = [0, 0], sizes = [32, 128], strides = [1, 1]} : vector<32x256xf32> to vector<32x128xf32>
    %123 = vector.extract_strided_slice %121 {offsets = [0, 128], sizes = [32, 128], strides = [1, 1]} : vector<32x256xf32> to vector<32x128xf32>
    %124 = arith.mulf %123, %84 : vector<32x128xf32>
    %cst_109 = arith.constant dense<0.000000e+00> : vector<32x128xf32>
    %125 = tpu.matmul %1, %124, %cst_109 {dimension_numbers = #tpu.dot_dimension_numbers<[1], [0], [0], [1], [0, 0, 1, 1], [], []>} : vector<32x32xf32>, vector<32x128xf32>, vector<32x128xf32> -> vector<32x128xf32>
    %c0_110 = arith.constant 0 : index
    %c0_111 = arith.constant 0 : index
    %c0_112 = arith.constant 0 : index
    %126 = vector.load %arg13[%c0_110, %c0_111, %c0_112] : memref<3x128x128xf32, #tpu.memory_space<vmem>>, vector<1x128x128xf32>
    %127 = vector.shape_cast %126 : vector<1x128x128xf32> to vector<128x128xf32>
    %cst_113 = arith.constant dense<0.000000e+00> : vector<32x128xf32>
    %128 = tpu.matmul %85, %127, %cst_113 {dimension_numbers = #tpu.dot_dimension_numbers<[1], [0], [0], [1], [0, 0, 1, 1], [], []>} : vector<32x128xf32>, vector<128x128xf32>, vector<32x128xf32> -> vector<32x128xf32>
    %c0_114 = arith.constant 0 : index
    %c0_115 = arith.constant 0 : index
    %c0_116 = arith.constant 0 : index
    %129 = vector.load %arg14[%c0_114, %c0_115, %c0_116] : memref<3x128x128xf32, #tpu.memory_space<vmem>>, vector<1x128x128xf32>
    %130 = vector.shape_cast %129 : vector<1x128x128xf32> to vector<128x128xf32>
    %cst_117 = arith.constant dense<0.000000e+00> : vector<32x128xf32>
    %131 = tpu.matmul %125, %130, %cst_117 {dimension_numbers = #tpu.dot_dimension_numbers<[1], [0], [0], [1], [0, 0, 1, 1], [], []>} : vector<32x128xf32>, vector<128x128xf32>, vector<32x128xf32> -> vector<32x128xf32>
    %132 = arith.addf %128, %131 : vector<32x128xf32>
    %cst_118 = arith.constant dense<0.000000e+00> : vector<32x128xf32>
    %133 = tpu.matmul %3, %124, %cst_118 {dimension_numbers = #tpu.dot_dimension_numbers<[1], [0], [0], [1], [0, 0, 1, 1], [], []>} : vector<32x32xf32>, vector<32x128xf32>, vector<32x128xf32> -> vector<32x128xf32>
    %c1_119 = arith.constant 1 : index
    %c0_120 = arith.constant 0 : index
    %c0_121 = arith.constant 0 : index
    %134 = vector.load %arg13[%c1_119, %c0_120, %c0_121] : memref<3x128x128xf32, #tpu.memory_space<vmem>>, vector<1x128x128xf32>
    %135 = vector.shape_cast %134 : vector<1x128x128xf32> to vector<128x128xf32>
    %cst_122 = arith.constant dense<0.000000e+00> : vector<32x128xf32>
    %136 = tpu.matmul %94, %135, %cst_122 {dimension_numbers = #tpu.dot_dimension_numbers<[1], [0], [0], [1], [0, 0, 1, 1], [], []>} : vector<32x128xf32>, vector<128x128xf32>, vector<32x128xf32> -> vector<32x128xf32>
    %c1_123 = arith.constant 1 : index
    %c0_124 = arith.constant 0 : index
    %c0_125 = arith.constant 0 : index
    %137 = vector.load %arg14[%c1_123, %c0_124, %c0_125] : memref<3x128x128xf32, #tpu.memory_space<vmem>>, vector<1x128x128xf32>
    %138 = vector.shape_cast %137 : vector<1x128x128xf32> to vector<128x128xf32>
    %cst_126 = arith.constant dense<0.000000e+00> : vector<32x128xf32>
    %139 = tpu.matmul %133, %138, %cst_126 {dimension_numbers = #tpu.dot_dimension_numbers<[1], [0], [0], [1], [0, 0, 1, 1], [], []>} : vector<32x128xf32>, vector<128x128xf32>, vector<32x128xf32> -> vector<32x128xf32>
    %140 = arith.addf %136, %139 : vector<32x128xf32>
    %141 = arith.addf %132, %140 : vector<32x128xf32>
    %cst_127 = arith.constant dense<0.000000e+00> : vector<32x128xf32>
    %142 = tpu.matmul %5, %124, %cst_127 {dimension_numbers = #tpu.dot_dimension_numbers<[1], [0], [0], [1], [0, 0, 1, 1], [], []>} : vector<32x32xf32>, vector<32x128xf32>, vector<32x128xf32> -> vector<32x128xf32>
    %c2_128 = arith.constant 2 : index
    %c0_129 = arith.constant 0 : index
    %c0_130 = arith.constant 0 : index
    %143 = vector.load %arg13[%c2_128, %c0_129, %c0_130] : memref<3x128x128xf32, #tpu.memory_space<vmem>>, vector<1x128x128xf32>
    %144 = vector.shape_cast %143 : vector<1x128x128xf32> to vector<128x128xf32>
    %cst_131 = arith.constant dense<0.000000e+00> : vector<32x128xf32>
    %145 = tpu.matmul %104, %144, %cst_131 {dimension_numbers = #tpu.dot_dimension_numbers<[1], [0], [0], [1], [0, 0, 1, 1], [], []>} : vector<32x128xf32>, vector<128x128xf32>, vector<32x128xf32> -> vector<32x128xf32>
    %c2_132 = arith.constant 2 : index
    %c0_133 = arith.constant 0 : index
    %c0_134 = arith.constant 0 : index
    %146 = vector.load %arg14[%c2_132, %c0_133, %c0_134] : memref<3x128x128xf32, #tpu.memory_space<vmem>>, vector<1x128x128xf32>
    %147 = vector.shape_cast %146 : vector<1x128x128xf32> to vector<128x128xf32>
    %cst_135 = arith.constant dense<0.000000e+00> : vector<32x128xf32>
    %148 = tpu.matmul %142, %147, %cst_135 {dimension_numbers = #tpu.dot_dimension_numbers<[1], [0], [0], [1], [0, 0, 1, 1], [], []>} : vector<32x128xf32>, vector<128x128xf32>, vector<32x128xf32> -> vector<32x128xf32>
    %149 = arith.addf %145, %148 : vector<32x128xf32>
    %150 = arith.addf %141, %149 : vector<32x128xf32>
    %c0_136 = arith.constant 0 : index
    %c0_137 = arith.constant 0 : index
    %151 = vector.load %arg15[%c0_136, %c0_137] : memref<1x128xf32, #tpu.memory_space<vmem>>, vector<1x128xf32>
    %152 = vector.broadcast %151 : vector<1x128xf32> to vector<32x128xf32>
    %153 = arith.addf %150, %152 : vector<32x128xf32>
    %154 = math.tanh %153 : vector<32x128xf32>
    %cst_138 = arith.constant 1.000000e+00 : f32
    %155 = vector.broadcast %cst_138 : f32 to vector<32x128xf32>
    %156 = arith.subf %155, %122 : vector<32x128xf32>
    %157 = arith.mulf %156, %84 : vector<32x128xf32>
    %158 = arith.mulf %122, %154 : vector<32x128xf32>
    %159 = arith.addf %157, %158 : vector<32x128xf32>
    %c0_139 = arith.constant 0 : index
    %c0_140 = arith.constant 0 : index
    %160 = vector.load %arg17[%c0_139, %c0_140] : memref<32x128xf32, #tpu.memory_space<vmem>>, vector<32x128xf32>
    tpu.vector_store %arg17[%c0_139, %c0_140], %159 {strides = array<i32>} : memref<32x128xf32, #tpu.memory_space<vmem>>, vector<32x128xf32>,
    return
  }
}

</mosaic_0001>

<llo_original>
// kernel: tpu_custom_call.1
$region0: #{tpu_custom_call.1}
  #allocation0 [shape = 'u32[]', space=smem, size = 0x4, offset = 0x4, fixed_abs, tag = 'smem constant byte address 0x4 - core index']
  #allocation1 [shape = 'u32[144,128]{1,0:T(1,128)}', space=vmem, size = 0x12000, scoped, tag = 'internal scratch']
  %s0 = inlined_call_operand.hbm [shape: f32[3,32,32], index: 0, kind: input, shape index: {}]
  %s1 = inlined_call_operand.vmem [shape: f32[32,4], index: 1, kind: input, shape index: {}]
  %s2 = inlined_call_operand.vmem [shape: f32[32,128], index: 2, kind: input, shape index: {}]
  %s3 = inlined_call_operand.hbm [shape: f32[32,128], index: 3, kind: input, shape index: {}]
  %s4 = inlined_call_operand.hbm [shape: f32[3,4,256], index: 4, kind: input, shape index: {}]
  %s5 = inlined_call_operand.hbm [shape: f32[3,128,256], index: 5, kind: input, shape index: {}]
  %s6 = inlined_call_operand.vmem [shape: f32[1,256], index: 6, kind: input, shape index: {}]
  %s7 = inlined_call_operand.vmem [shape: f32[3,4,128], index: 7, kind: input, shape index: {}]
  %s8 = inlined_call_operand.hbm [shape: f32[3,128,128], index: 8, kind: input, shape index: {}]
  %s9 = inlined_call_operand.vmem [shape: f32[1,128], index: 9, kind: input, shape index: {}]
  %s10 = inlined_call_operand.hbm [shape: f32[3,128,256], index: 10, kind: input, shape index: {}]
  %s11 = inlined_call_operand.hbm [shape: f32[3,128,256], index: 11, kind: input, shape index: {}]
  %s12 = inlined_call_operand.vmem [shape: f32[1,256], index: 12, kind: input, shape index: {}]
  %s13 = inlined_call_operand.hbm [shape: f32[3,128,128], index: 13, kind: input, shape index: {}]
  %s14 = inlined_call_operand.hbm [shape: f32[3,128,128], index: 14, kind: input, shape index: {}]
  %s15 = inlined_call_operand.vmem [shape: f32[1,128], index: 15, kind: input, shape index: {}]
  %s16 = inlined_call_operand.hbm [shape: f32[32,128], index: 16, kind: output, shape index: {0}]
  %s17 = inlined_call_operand.hbm [shape: f32[32,128], index: 17, kind: output, shape index: {1}]
  %18 = xla_tuple %s16, %s17
  %s19 = sld [smem:[#allocation0]]
  $region118: #{tpu_custom_call.1} parent=0
    _
  %s21 = ssub.s32 1, %s19
  %s22 = scalar_select 0, %s21, %s19
  $region1: #{tpu_custom_call.1} parent=0
    #allocation2 [shape = 'u8[49152]{0}', space=vmem, size = 0xc000, scoped, tag = 'input window, operand 0, single buffered']
    #allocation3 [shape = 's32[1]{0}', space=sflag, size = 0x4, scoped, tag = 'scoped memory for tpu_custom_call.1']
    #allocation4 [shape = 's32[1]{0}', space=sflag, size = 0x4, scoped, tag = 'scoped memory for tpu_custom_call.1']
    #allocation5 [shape = 'u8[16384]{0}', space=vmem, size = 0x4000, scoped, tag = 'input window, operand 3, single buffered']
    #allocation6 [shape = 's32[1]{0}', space=sflag, size = 0x4, scoped, tag = 'scoped memory for tpu_custom_call.1']
    #allocation7 [shape = 'u8[12288]{0}', space=vmem, size = 0x3000, scoped, tag = 'input window, operand 4, single buffered']
    #allocation8 [shape = 'u8[393216]{0}', space=vmem, size = 0x60000, scoped, tag = 'input window, operand 5, single buffered']
    #allocation9 [shape = 's32[1]{0}', space=sflag, size = 0x4, scoped, tag = 'scoped memory for tpu_custom_call.1']
    #allocation10 [shape = 'u8[196608]{0}', space=vmem, size = 0x30000, scoped, tag = 'input window, operand 8, single buffered']
    #allocation11 [shape = 'u8[393216]{0}', space=vmem, size = 0x60000, scoped, tag = 'input window, operand 10, single buffered']
    #allocation12 [shape = 's32[1]{0}', space=sflag, size = 0x4, scoped, tag = 'scoped memory for tpu_custom_call.1']
    #allocation13 [shape = 'u8[393216]{0}', space=vmem, size = 0x60000, scoped, tag = 'input window, operand 11, single buffered']
    #allocation14 [shape = 'u8[196608]{0}', space=vmem, size = 0x30000, scoped, tag = 'input window, operand 13, single buffered']
    #allocation15 [shape = 's32[1]{0}', space=sflag, size = 0x4, scoped, tag = 'scoped memory for tpu_custom_call.1']
    #allocation16 [shape = 'u8[196608]{0}', space=vmem, size = 0x30000, scoped, tag = 'input window, operand 14, single buffered']
    #allocation17 [shape = 'u8[16384]{0}', space=vmem, size = 0x4000, scoped, tag = 'output window, operand 0, single buffered']
    #allocation18 [shape = 'u8[16384]{0}', space=vmem, size = 0x4000, scoped, tag = 'output window, operand 1, single buffered']
    #allocation19 [shape = 's32[1]{0}', space=sflag, size = 0x4, scoped, tag = 'scoped memory for tpu_custom_call.1']
    %23 = vsyncpa [#allocation3], 0
    %24 = vsyncpa [#allocation6], 0
    %25 = vsyncpa [#allocation9], 0
    %26 = vsyncpa [#allocation12], 0
    %27 = vsyncpa [#allocation15], 0
    %28 = vsyncpa [#allocation4], 0
    %29 = vsyncpa [#allocation19], 0
    // Predicated region
    $region2: #{tpu_custom_call.1} parent=1 // pred_check
      _
    $region3: #{tpu_custom_call.1} parent=1 // pred_check_branch
      %31 = sbr.rel (0) target = $region5
    $region4: #{tpu_custom_call.1} parent=1 // pred_region
      %s33 = ssub.s32 1536, 1536
      %34 = vsyncadd [#allocation3], %s33
      %s35 = sshll.u32 [#allocation2], 4
      %s36 = int_to_ptr.vmem [resolvable:$true] %s35
      %41 = dma.hbm_to_vmem [thread:$0]  %s0, 1536, %s36, [#allocation3], 128, 128, 8
    $region5: #{tpu_custom_call.1} parent=1 // pred_fallthru
      _
    // Predicated region
    $region6: #{tpu_custom_call.1} parent=1 // pred_check
      _
    $region7: #{tpu_custom_call.1} parent=1 // pred_check_branch
      %43 = sbr.rel (0) target = $region9
    $region8: #{tpu_custom_call.1} parent=1 // pred_region
      _
    $region9: #{tpu_custom_call.1} parent=1 // pred_fallthru
      _
    // Predicated region
    $region10: #{tpu_custom_call.1} parent=1 // pred_check
      _
    $region11: #{tpu_custom_call.1} parent=1 // pred_check_branch
      %45 = sbr.rel (0) target = $region13
    $region12: #{tpu_custom_call.1} parent=1 // pred_region
      _
    $region13: #{tpu_custom_call.1} parent=1 // pred_fallthru
      _
    // Predicated region
    $region14: #{tpu_custom_call.1} parent=1 // pred_check
      _
    $region15: #{tpu_custom_call.1} parent=1 // pred_check_branch
      %47 = sbr.rel (0) target = $region17
    $region16: #{tpu_custom_call.1} parent=1 // pred_region
      %s49 = ssub.s32 512, 512
      %50 = vsyncadd [#allocation6], %s49
      %s51 = sshll.u32 [#allocation5], 4
      %s52 = int_to_ptr.vmem [resolvable:$true] %s51
      %57 = dma.hbm_to_vmem [thread:$0]  %s3, 512, %s52, [#allocation6], 128, 128, 8
    $region17: #{tpu_custom_call.1} parent=1 // pred_fallthru
      _
    // Predicated region
    $region18: #{tpu_custom_call.1} parent=1 // pred_check
      _
    $region19: #{tpu_custom_call.1} parent=1 // pred_check_branch
      %59 = sbr.rel (0) target = $region21
    $region20: #{tpu_custom_call.1} parent=1 // pred_region
      %s61 = ssub.s32 384, 384
      %62 = vsyncadd [#allocation6], %s61
      %s63 = sshll.u32 [#allocation7], 4
      %s64 = int_to_ptr.vmem [resolvable:$true] %s63
      %69 = dma.hbm_to_vmem [thread:$0]  %s4, 384, %s64, [#allocation6], 128, 128, 8
    $region21: #{tpu_custom_call.1} parent=1 // pred_fallthru
      _
    // Predicated region
    $region22: #{tpu_custom_call.1} parent=1 // pred_check
      _
    $region23: #{tpu_custom_call.1} parent=1 // pred_check_branch
      %71 = sbr.rel (0) target = $region25
    $region24: #{tpu_custom_call.1} parent=1 // pred_region
      %s73 = ssub.s32 12288, 12288
      %74 = vsyncadd [#allocation9], %s73
      %s75 = sshll.u32 [#allocation8], 4
      %s76 = int_to_ptr.vmem [resolvable:$true] %s75
      %81 = dma.hbm_to_vmem [thread:$0]  %s5, 12288, %s76, [#allocation9], 256, 256, 16
    $region25: #{tpu_custom_call.1} parent=1 // pred_fallthru
      _
    // Predicated region
    $region26: #{tpu_custom_call.1} parent=1 // pred_check
      _
    $region27: #{tpu_custom_call.1} parent=1 // pred_check_branch
      %83 = sbr.rel (0) target = $region29
    $region28: #{tpu_custom_call.1} parent=1 // pred_region
      _
    $region29: #{tpu_custom_call.1} parent=1 // pred_fallthru
      _
    // Predicated region
    $region30: #{tpu_custom_call.1} parent=1 // pred_check
      _
    $region31: #{tpu_custom_call.1} parent=1 // pred_check_branch
      %85 = sbr.rel (0) target = $region33
    $region32: #{tpu_custom_call.1} parent=1 // pred_region
      _
    $region33: #{tpu_custom_call.1} parent=1 // pred_fallthru
      _
    // Predicated region
    $region34: #{tpu_custom_call.1} parent=1 // pred_check
      _
    $region35: #{tpu_custom_call.1} parent=1 // pred_check_branch
      %87 = sbr.rel (0) target = $region37
    $region36: #{tpu_custom_call.1} parent=1 // pred_region
      %s89 = ssub.s32 6144, 6144
      %90 = vsyncadd [#allocation9], %s89
      %s91 = sshll.u32 [#allocation10], 4
      %s92 = int_to_ptr.vmem [resolvable:$true] %s91
      %97 = dma.hbm_to_vmem [thread:$0]  %s8, 6144, %s92, [#allocation9], 128, 128, 8
    $region37: #{tpu_custom_call.1} parent=1 // pred_fallthru
      _
    // Predicated region
    $region38: #{tpu_custom_call.1} parent=1 // pred_check
      _
    $region39: #{tpu_custom_call.1} parent=1 // pred_check_branch
      %99 = sbr.rel (0) target = $region41
    $region40: #{tpu_custom_call.1} parent=1 // pred_region
      _
    $region41: #{tpu_custom_call.1} parent=1 // pred_fallthru
      _
    // Predicated region
    $region42: #{tpu_custom_call.1} parent=1 // pred_check
      _
    $region43: #{tpu_custom_call.1} parent=1 // pred_check_branch
      %101 = sbr.rel (0) target = $region45
    $region44: #{tpu_custom_call.1} parent=1 // pred_region
      %s103 = ssub.s32 12288, 12288
      %104 = vsyncadd [#allocation12], %s103
      %s105 = sshll.u32 [#allocation11], 4
      %s106 = int_to_ptr.vmem [resolvable:$true] %s105
      %111 = dma.hbm_to_vmem [thread:$0]  %s10, 12288, %s106, [#allocation12], 256, 256, 16
    $region45: #{tpu_custom_call.1} parent=1 // pred_fallthru
      _
    // Predicated region
    $region46: #{tpu_custom_call.1} parent=1 // pred_check
      _
    $region47: #{tpu_custom_call.1} parent=1 // pred_check_branch
      %113 = sbr.rel (0) target = $region49
    $region48: #{tpu_custom_call.1} parent=1 // pred_region
      %s115 = ssub.s32 12288, 12288
      %116 = vsyncadd [#allocation12], %s115
      %s117 = sshll.u32 [#allocation13], 4
      %s118 = int_to_ptr.vmem [resolvable:$true] %s117
      %123 = dma.hbm_to_vmem [thread:$0]  %s11, 12288, %s118, [#allocation12], 256, 256, 16
    $region49: #{tpu_custom_call.1} parent=1 // pred_fallthru
      _
    // Predicated region
    $region50: #{tpu_custom_call.1} parent=1 // pred_check
      _
    $region51: #{tpu_custom_call.1} parent=1 // pred_check_branch
      %125 = sbr.rel (0) target = $region53
    $region52: #{tpu_custom_call.1} parent=1 // pred_region
      _
    $region53: #{tpu_custom_call.1} parent=1 // pred_fallthru
      _
    // Predicated region
    $region54: #{tpu_custom_call.1} parent=1 // pred_check
      _
    $region55: #{tpu_custom_call.1} parent=1 // pred_check_branch
      %127 = sbr.rel (0) target = $region57
    $region56: #{tpu_custom_call.1} parent=1 // pred_region
      %s129 = ssub.s32 6144, 6144
      %130 = vsyncadd [#allocation15], %s129
      %s131 = sshll.u32 [#allocation14], 4
      %s132 = int_to_ptr.vmem [resolvable:$true] %s131
      %137 = dma.hbm_to_vmem [thread:$0]  %s13, 6144, %s132, [#allocation15], 128, 128, 8
    $region57: #{tpu_custom_call.1} parent=1 // pred_fallthru
      _
    // Predicated region
    $region58: #{tpu_custom_call.1} parent=1 // pred_check
      _
    $region59: #{tpu_custom_call.1} parent=1 // pred_check_branch
      %139 = sbr.rel (0) target = $region61
    $region60: #{tpu_custom_call.1} parent=1 // pred_region
      %s141 = ssub.s32 6144, 6144
      %142 = vsyncadd [#allocation15], %s141
      %s143 = sshll.u32 [#allocation16], 4
      %s144 = int_to_ptr.vmem [resolvable:$true] %s143
      %149 = dma.hbm_to_vmem [thread:$0]  %s14, 6144, %s144, [#allocation15], 128, 128, 8
    $region61: #{tpu_custom_call.1} parent=1 // pred_fallthru
      _
    // Predicated region
    $region62: #{tpu_custom_call.1} parent=1 // pred_check
      _
    $region63: #{tpu_custom_call.1} parent=1 // pred_check_branch
      %151 = sbr.rel (0) target = $region65
    $region64: #{tpu_custom_call.1} parent=1 // pred_region
      _
    $region65: #{tpu_custom_call.1} parent=1 // pred_fallthru
      _
    // Predicated region
    $region66: #{tpu_custom_call.1} parent=1 // pred_check
      _
    $region67: #{tpu_custom_call.1} parent=1 // pred_check_branch
      %153 = sbr.rel (0) target = $region69
    $region68: #{tpu_custom_call.1} parent=1 // pred_region
      %154 = dma.done [#allocation3], 1536
    $region69: #{tpu_custom_call.1} parent=1 // pred_fallthru
      _
    // Predicated region
    $region70: #{tpu_custom_call.1} parent=1 // pred_check
      _
    $region71: #{tpu_custom_call.1} parent=1 // pred_check_branch
      %156 = sbr.rel (0) target = $region73
    $region72: #{tpu_custom_call.1} parent=1 // pred_region
      %157 = dma.done [#allocation6], 512
    $region73: #{tpu_custom_call.1} parent=1 // pred_fallthru
      _
    // Predicated region
    $region74: #{tpu_custom_call.1} parent=1 // pred_check
      _
    $region75: #{tpu_custom_call.1} parent=1 // pred_check_branch
      %159 = sbr.rel (0) target = $region77
    $region76: #{tpu_custom_call.1} parent=1 // pred_region
      %160 = dma.done [#allocation6], 384
    $region77: #{tpu_custom_call.1} parent=1 // pred_fallthru
      _
    // Predicated region
    $region78: #{tpu_custom_call.1} parent=1 // pred_check
      _
    $region79: #{tpu_custom_call.1} parent=1 // pred_check_branch
      %162 = sbr.rel (0) target = $region81
    $region80: #{tpu_custom_call.1} parent=1 // pred_region
      %163 = dma.done [#allocation9], 12288
    $region81: #{tpu_custom_call.1} parent=1 // pred_fallthru
      _
    // Predicated region
    $region82: #{tpu_custom_call.1} parent=1 // pred_check
      _
    $region83: #{tpu_custom_call.1} parent=1 // pred_check_branch
      %165 = sbr.rel (0) target = $region85
    $region84: #{tpu_custom_call.1} parent=1 // pred_region
      %166 = dma.done [#allocation9], 6144
    $region85: #{tpu_custom_call.1} parent=1 // pred_fallthru
      _
    // Predicated region
    $region86: #{tpu_custom_call.1} parent=1 // pred_check
      _
    $region87: #{tpu_custom_call.1} parent=1 // pred_check_branch
      %168 = sbr.rel (0) target = $region89
    $region88: #{tpu_custom_call.1} parent=1 // pred_region
      %169 = dma.done [#allocation12], 12288
    $region89: #{tpu_custom_call.1} parent=1 // pred_fallthru
      _
    // Predicated region
    $region90: #{tpu_custom_call.1} parent=1 // pred_check
      _
    $region91: #{tpu_custom_call.1} parent=1 // pred_check_branch
      %171 = sbr.rel (0) target = $region93
    $region92: #{tpu_custom_call.1} parent=1 // pred_region
      %172 = dma.done [#allocation12], 12288
    $region93: #{tpu_custom_call.1} parent=1 // pred_fallthru
      _
    // Predicated region
    $region94: #{tpu_custom_call.1} parent=1 // pred_check
      _
    $region95: #{tpu_custom_call.1} parent=1 // pred_check_branch
      %174 = sbr.rel (0) target = $region97
    $region96: #{tpu_custom_call.1} parent=1 // pred_region
      %175 = dma.done [#allocation15], 6144
    $region97: #{tpu_custom_call.1} parent=1 // pred_fallthru
      _
    // Predicated region
    $region98: #{tpu_custom_call.1} parent=1 // pred_check
      _
    $region99: #{tpu_custom_call.1} parent=1 // pred_check_branch
      %177 = sbr.rel (0) target = $region101
    $region100: #{tpu_custom_call.1} parent=1 // pred_region
      %178 = dma.done [#allocation15], 6144
    $region101: #{tpu_custom_call.1} parent=1 // pred_fallthru
      _
    %v179 = vld [vmem:[#allocation2] sm:$0xff]
    %v180 = vld [vmem:[#allocation2 + $0x8] sm:$0xff]
    %v181 = vld [vmem:[#allocation2 + $0x10] sm:$0xff]
    %v182 = vld [vmem:[#allocation2 + $0x18] sm:$0xff]
    %s183 = scalar_lea.vmem [#allocation2], 32
    %v184 = vld [vmem:[%s183] sm:$0xff]
    %v185 = vld [vmem:[%s183 + $0x8] sm:$0xff]
    %v186 = vld [vmem:[%s183 + $0x10] sm:$0xff]
    %v187 = vld [vmem:[%s183 + $0x18] sm:$0xff]
    %s188 = scalar_lea.vmem [#allocation2], 64
    %v189 = vld [vmem:[%s188] sm:$0xff]
    %v190 = vld [vmem:[%s188 + $0x8] sm:$0xff]
    %v191 = vld [vmem:[%s188 + $0x10] sm:$0xff]
    %v192 = vld [vmem:[%s188 + $0x18] sm:$0xff]
    %v193 = vld [vmem:[%s1] sm:$0xff]
    %v194 = vld [vmem:[%s1 + $0x8] sm:$0xff]
    %v195 = vld [vmem:[%s1 + $0x10] sm:$0xff]
    %v196 = vld [vmem:[%s1 + $0x18] sm:$0xff]
    %v197 = vld [vmem:[%s2] sm:$0xff]
    %v198 = vld [vmem:[%s2 + $0x8] sm:$0xff]
    %v199 = vld [vmem:[%s2 + $0x10] sm:$0xff]
    %v200 = vld [vmem:[%s2 + $0x18] sm:$0xff]
    %vm201 = vcmask 261120
    %v203 = vsel %vm201, %v179, 0
    %v206 = vsel %vm201, %v180, 0
    %v209 = vsel %vm201, %v181, 0
    %v212 = vsel %vm201, %v182, 0
    %214 = vmatprep.subr.mxu0 0.0
    %215 = vmatpush1.msra.mxu0 %v193
    %216 = vmatprep.subr.mxu0 0.0
    %217 = vmatpush1.msra.mxu0 %v194
    %218 = vmatprep.subr.mxu0 0.0
    %219 = vmatpush1.msra.mxu0 %v195
    %220 = vmatprep.subr.mxu0 0.0
    %221 = vmatpush1.msra.mxu0 %v196
    %222 = vmatprep.subr.mxu0 0.0
    %223 = vmatpush1.msra.mxu0 0.0
    %224 = vmatprep.subr.mxu0 0.0
    %225 = vmatpush1.msra.mxu0 0.0
    %226 = vmatprep.subr.mxu0 0.0
    %227 = vmatpush1.msra.mxu0 0.0
    %228 = vmatprep.subr.mxu0 0.0
    %229 = vmatpush1.msra.mxu0 0.0
    %230 = vmatprep.subr.mxu0 0.0
    %231 = vmatpush1.msra.mxu0 0.0
    %232 = vmatprep.subr.mxu0 0.0
    %233 = vmatpush1.msra.mxu0 0.0
    %234 = vmatprep.subr.mxu0 0.0
    %235 = vmatpush1.msra.mxu0 0.0
    %236 = vmatprep.subr.mxu0 0.0
    %237 = vmatpush1.msra.mxu0 0.0
    %238 = vmatprep.subr.mxu0 0.0
    %239 = vmatpush1.msra.mxu0 0.0
    %240 = vmatprep.subr.mxu0 0.0
    %241 = vmatpush1.msra.mxu0 0.0
    %242 = vmatprep.subr.mxu0 0.0
    %243 = vmatpush1.msra.mxu0 0.0
    %244 = vmatprep.subr.mxu0 0.0
    %245 = vmatpush1.msra.mxu0 0.0
    %246 = vmatprep.subr.mxu0 0.0
    %247 = vmatpush1.msra.mxu0 0.0
    %248 = vmatprep.subr.mxu0 0.0
    %249 = vmatpush1.msra.mxu0 0.0
    %250 = vmatprep.subr.mxu0 0.0
    %251 = vmatpush1.msra.mxu0 0.0
    %252 = vmatprep.subr.mxu0 0.0
    %253 = vmatpush1.msra.mxu0 0.0
    %254 = vmatprep.subr.mxu0 0.0
    %255 = vmatpush1.msra.mxu0 0.0
    %256 = vmatprep.subr.mxu0 0.0
    %257 = vmatpush1.msra.mxu0 0.0
    %258 = vmatprep.subr.mxu0 0.0
    %259 = vmatpush1.msra.mxu0 0.0
    %260 = vmatprep.subr.mxu0 0.0
    %261 = vmatpush1.msra.mxu0 0.0
    %262 = vmatprep.subr.mxu0 0.0
    %263 = vmatpush1.msra.mxu0 0.0
    %264 = vmatprep.subr.mxu0 0.0
    %265 = vmatpush1.msra.mxu0 0.0
    %266 = vmatprep.subr.mxu0 0.0
    %267 = vmatpush1.msra.mxu0 0.0
    %268 = vmatprep.subr.mxu0 0.0
    %269 = vmatpush1.msra.mxu0 0.0
    %270 = vmatprep.subr.mxu0 0.0
    %271 = vmatpush1.msra.mxu0 0.0
    %272 = vmatprep.subr.mxu0 0.0
    %273 = vmatpush1.msra.mxu0 0.0
    %274 = vmatprep.subr.mxu0 0.0
    %275 = vmatpush1.msra.mxu0 0.0
    %276 = vmatprep.subr.mxu0 0.0
    %277 = vmatpush1.msra.mxu0 0.0
    %278 = vmatprep.mubr.f32.mxu0 0.0
    %279 = vmatmul.mubr.f32.gmra.mrb[0].mxu0 %v203
    %v280 = vpop.f32.mrb[0].mxu0
    %v281 = vadd.f32 0.0, %v280
    %v282 = vpop.f32.mrb[0].mxu0
    %283 = vmatprep.mubr.f32.mxu0 0.0
    %284 = vmatmul.mubr.f32.gmra.mrb[0].mxu0 %v206
    %v285 = vpop.f32.mrb[0].mxu0
    %v286 = vadd.f32 0.0, %v285
    %v287 = vpop.f32.mrb[0].mxu0
    %288 = vmatprep.mubr.f32.mxu0 0.0
    %289 = vmatmul.mubr.f32.gmra.mrb[0].mxu0 %v209
    %v290 = vpop.f32.mrb[0].mxu0
    %v291 = vadd.f32 0.0, %v290
    %v292 = vpop.f32.mrb[0].mxu0
    %293 = vmatprep.mubr.f32.mxu0 0.0
    %294 = vmatmul.mubr.f32.gmra.mrb[0].mxu0 %v212
    %v295 = vpop.f32.mrb[0].mxu0
    %v296 = vadd.f32 0.0, %v295
    %v297 = vpop.f32.mrb[0].mxu0
    %298 = vdwg.mxu0
    %299 = vmatprep.subr.mxu0 0.0
    %300 = vmatpush1.msra.mxu0 %v197
    %301 = vmatprep.subr.mxu0 0.0
    %302 = vmatpush1.msra.mxu0 %v198
    %303 = vmatprep.subr.mxu0 0.0
    %304 = vmatpush1.msra.mxu0 %v199
    %305 = vmatprep.subr.mxu0 0.0
    %306 = vmatpush1.msra.mxu0 %v200
    %307 = vmatprep.subr.mxu0 0.0
    %308 = vmatpush1.msra.mxu0 0.0
    %309 = vmatprep.subr.mxu0 0.0
    %310 = vmatpush1.msra.mxu0 0.0
    %311 = vmatprep.subr.mxu0 0.0
    %312 = vmatpush1.msra.mxu0 0.0
    %313 = vmatprep.subr.mxu0 0.0
    %314 = vmatpush1.msra.mxu0 0.0
    %315 = vmatprep.subr.mxu0 0.0
    %316 = vmatpush1.msra.mxu0 0.0
    %317 = vmatprep.subr.mxu0 0.0
    %318 = vmatpush1.msra.mxu0 0.0
    %319 = vmatprep.subr.mxu0 0.0
    %320 = vmatpush1.msra.mxu0 0.0
    %321 = vmatprep.subr.mxu0 0.0
    %322 = vmatpush1.msra.mxu0 0.0
    %323 = vmatprep.subr.mxu0 0.0
    %324 = vmatpush1.msra.mxu0 0.0
    %325 = vmatprep.subr.mxu0 0.0
    %326 = vmatpush1.msra.mxu0 0.0
    %327 = vmatprep.subr.mxu0 0.0
    %328 = vmatpush1.msra.mxu0 0.0
    %329 = vmatprep.subr.mxu0 0.0
    %330 = vmatpush1.msra.mxu0 0.0
    %331 = vmatprep.subr.mxu0 0.0
    %332 = vmatpush1.msra.mxu0 0.0
    %333 = vmatprep.subr.mxu0 0.0
    %334 = vmatpush1.msra.mxu0 0.0
    %335 = vmatprep.subr.mxu0 0.0
    %336 = vmatpush1.msra.mxu0 0.0
    %337 = vmatprep.subr.mxu0 0.0
    %338 = vmatpush1.msra.mxu0 0.0
    %339 = vmatprep.subr.mxu0 0.0
    %340 = vmatpush1.msra.mxu0 0.0
    %341 = vmatprep.subr.mxu0 0.0
    %342 = vmatpush1.msra.mxu0 0.0
    %343 = vmatprep.subr.mxu0 0.0
    %344 = vmatpush1.msra.mxu0 0.0
    %345 = vmatprep.subr.mxu0 0.0
    %346 = vmatpush1.msra.mxu0 0.0
    %347 = vmatprep.subr.mxu0 0.0
    %348 = vmatpush1.msra.mxu0 0.0
    %349 = vmatprep.subr.mxu0 0.0
    %350 = vmatpush1.msra.mxu0 0.0
    %351 = vmatprep.subr.mxu0 0.0
    %352 = vmatpush1.msra.mxu0 0.0
    %353 = vmatprep.subr.mxu0 0.0
    %354 = vmatpush1.msra.mxu0 0.0
    %355 = vmatprep.subr.mxu0 0.0
    %356 = vmatpush1.msra.mxu0 0.0
    %357 = vmatprep.subr.mxu0 0.0
    %358 = vmatpush1.msra.mxu0 0.0
    %359 = vmatprep.subr.mxu0 0.0
    %360 = vmatpush1.msra.mxu0 0.0
    %361 = vmatprep.subr.mxu0 0.0
    %362 = vmatpush1.msra.mxu0 0.0
    %363 = vmatprep.mubr.f32.mxu0 0.0
    %364 = vmatmul.mubr.f32.gmra.mrb[0].mxu0 %v203
    %v365 = vpop.f32.mrb[0].mxu0
    %v366 = vadd.f32 0.0, %v365
    %v367 = vpop.f32.mrb[0].mxu0
    %368 = vmatprep.mubr.f32.mxu0 0.0
    %369 = vmatmul.mubr.f32.gmra.mrb[0].mxu0 %v206
    %v370 = vpop.f32.mrb[0].mxu0
    %v371 = vadd.f32 0.0, %v370
    %v372 = vpop.f32.mrb[0].mxu0
    %373 = vmatprep.mubr.f32.mxu0 0.0
    %374 = vmatmul.mubr.f32.gmra.mrb[0].mxu0 %v209
    %v375 = vpop.f32.mrb[0].mxu0
    %v376 = vadd.f32 0.0, %v375
    %v377 = vpop.f32.mrb[0].mxu0
    %378 = vmatprep.mubr.f32.mxu0 0.0
    %379 = vmatmul.mubr.f32.gmra.mrb[0].mxu0 %v212
    %v380 = vpop.f32.mrb[0].mxu0
    %v381 = vadd.f32 0.0, %v380
    %v382 = vpop.f32.mrb[0].mxu0
    %383 = vdwg.mxu0
    %v384 = vld [vmem:[#allocation7] sm:$0xff]
    %v385 = vld [vmem:[#allocation8] sm:$0xff]
    %v386 = vld [vmem:[#allocation8 + $0x8] sm:$0xff]
    %v387 = vld [vmem:[#allocation8 + $0x10] sm:$0xff]
    %v388 = vld [vmem:[#allocation8 + $0x18] sm:$0xff]
    %v389 = vld [vmem:[#allocation8 + $0x20] sm:$0xff]
    %v390 = vld [vmem:[#allocation8 + $0x28] sm:$0xff]
    %v391 = vld [vmem:[#allocation8 + $0x30] sm:$0xff]
    %v392 = vld [vmem:[#allocation8 + $0x38] sm:$0xff]
    %v393 = vld [vmem:[#allocation8 + $0x40] sm:$0xff]
    %v394 = vld [vmem:[#allocation8 + $0x48] sm:$0xff]
    %v395 = vld [vmem:[#allocation8 + $0x50] sm:$0xff]
    %v396 = vld [vmem:[#allocation8 + $0x58] sm:$0xff]
    %v397 = vld [vmem:[#allocation8 + $0x60] sm:$0xff]
    %v398 = vld [vmem:[#allocation8 + $0x68] sm:$0xff]
    %v399 = vld [vmem:[#allocation8 + $0x70] sm:$0xff]
    %v400 = vld [vmem:[#allocation8 + $0x78] sm:$0xff]
    %v401 = vld [vmem:[#allocation8 + $0x80] sm:$0xff]
    %v402 = vld [vmem:[#allocation8 + $0x88] sm:$0xff]
    %v403 = vld [vmem:[#allocation8 + $0x90] sm:$0xff]
    %v404 = vld [vmem:[#allocation8 + $0x98] sm:$0xff]
    %v405 = vld [vmem:[#allocation8 + $0xa0] sm:$0xff]
    %v406 = vld [vmem:[#allocation8 + $0xa8] sm:$0xff]
    %v407 = vld [vmem:[#allocation8 + $0xb0] sm:$0xff]
    %v408 = vld [vmem:[#allocation8 + $0xb8] sm:$0xff]
    %v409 = vld [vmem:[#allocation8 + $0xc0] sm:$0xff]
    %v410 = vld [vmem:[#allocation8 + $0xc8] sm:$0xff]
    %v411 = vld [vmem:[#allocation8 + $0xd0] sm:$0xff]
    %v412 = vld [vmem:[#allocation8 + $0xd8] sm:$0xff]
    %v413 = vld [vmem:[#allocation8 + $0xe0] sm:$0xff]
    %v414 = vld [vmem:[#allocation8 + $0xe8] sm:$0xff]
    %v415 = vld [vmem:[#allocation8 + $0xf0] sm:$0xff]
    %v416 = vld [vmem:[#allocation8 + $0xf8] sm:$0xff]
    %417 = vmatprep.subr.mxu0 %v386
    %418 = vmatpush1.msra.mxu0 %v385
    %419 = vmatprep.subr.mxu0 %v388
    %420 = vmatpush1.msra.mxu0 %v387
    %421 = vmatprep.subr.mxu0 %v390
    %422 = vmatpush1.msra.mxu0 %v389
    %423 = vmatprep.subr.mxu0 %v392
    %424 = vmatpush1.msra.mxu0 %v391
    %425 = vmatprep.subr.mxu0 %v394
    %426 = vmatpush1.msra.mxu0 %v393
    %427 = vmatprep.subr.mxu0 %v396
    %428 = vmatpush1.msra.mxu0 %v395
    %429 = vmatprep.subr.mxu0 %v398
    %430 = vmatpush1.msra.mxu0 %v397
    %431 = vmatprep.subr.mxu0 %v400
    %432 = vmatpush1.msra.mxu0 %v399
    %433 = vmatprep.subr.mxu0 %v402
    %434 = vmatpush1.msra.mxu0 %v401
    %435 = vmatprep.subr.mxu0 %v404
    %436 = vmatpush1.msra.mxu0 %v403
    %437 = vmatprep.subr.mxu0 %v406
    %438 = vmatpush1.msra.mxu0 %v405
    %439 = vmatprep.subr.mxu0 %v408
    %440 = vmatpush1.msra.mxu0 %v407
    %441 = vmatprep.subr.mxu0 %v410
    %442 = vmatpush1.msra.mxu0 %v409
    %443 = vmatprep.subr.mxu0 %v412
    %444 = vmatpush1.msra.mxu0 %v411
    %445 = vmatprep.subr.mxu0 %v414
    %446 = vmatpush1.msra.mxu0 %v413
    %447 = vmatprep.subr.mxu0 %v416
    %448 = vmatpush1.msra.mxu0 %v415
    %449 = vmatprep.subr.mxu0 0.0
    %450 = vmatpush1.msra.mxu0 0.0
    %451 = vmatprep.subr.mxu0 0.0
    %452 = vmatpush1.msra.mxu0 0.0
    %453 = vmatprep.subr.mxu0 0.0
    %454 = vmatpush1.msra.mxu0 0.0
    %455 = vmatprep.subr.mxu0 0.0
    %456 = vmatpush1.msra.mxu0 0.0
    %457 = vmatprep.subr.mxu0 0.0
    %458 = vmatpush1.msra.mxu0 0.0
    %459 = vmatprep.subr.mxu0 0.0
    %460 = vmatpush1.msra.mxu0 0.0
    %461 = vmatprep.subr.mxu0 0.0
    %462 = vmatpush1.msra.mxu0 0.0
    %463 = vmatprep.subr.mxu0 0.0
    %464 = vmatpush1.msra.mxu0 0.0
    %465 = vmatprep.subr.mxu0 0.0
    %466 = vmatpush1.msra.mxu0 0.0
    %467 = vmatprep.subr.mxu0 0.0
    %468 = vmatpush1.msra.mxu0 0.0
    %469 = vmatprep.subr.mxu0 0.0
    %470 = vmatpush1.msra.mxu0 0.0
    %471 = vmatprep.subr.mxu0 0.0
    %472 = vmatpush1.msra.mxu0 0.0
    %473 = vmatprep.subr.mxu0 0.0
    %474 = vmatpush1.msra.mxu0 0.0
    %475 = vmatprep.subr.mxu0 0.0
    %476 = vmatpush1.msra.mxu0 0.0
    %477 = vmatprep.subr.mxu0 0.0
    %478 = vmatpush1.msra.mxu0 0.0
    %479 = vmatprep.subr.mxu0 0.0
    %480 = vmatpush1.msra.mxu0 0.0
    %481 = vmatprep.mubr.f32.mxu0 0.0
    %482 = vmatmul.mubr.f32.gmra.mrb[0].mxu0 %v366
    %v483 = vpop.f32.mrb[0].mxu0
    %v484 = vadd.f32 0.0, %v483
    %v485 = vpop.f32.mrb[0].mxu0
    %v486 = vadd.f32 0.0, %v485
    %487 = vmatprep.mubr.f32.mxu0 0.0
    %488 = vmatmul.mubr.f32.gmra.mrb[0].mxu0 %v371
    %v489 = vpop.f32.mrb[0].mxu0
    %v490 = vadd.f32 0.0, %v489
    %v491 = vpop.f32.mrb[0].mxu0
    %v492 = vadd.f32 0.0, %v491
    %493 = vmatprep.mubr.f32.mxu0 0.0
    %494 = vmatmul.mubr.f32.gmra.mrb[0].mxu0 %v376
    %v495 = vpop.f32.mrb[0].mxu0
    %v496 = vadd.f32 0.0, %v495
    %v497 = vpop.f32.mrb[0].mxu0
    %v498 = vadd.f32 0.0, %v497
    %499 = vmatprep.mubr.f32.mxu0 0.0
    %500 = vmatmul.mubr.f32.gmra.mrb[0].mxu0 %v381
    %v501 = vpop.f32.mrb[0].mxu0
    %v502 = vadd.f32 0.0, %v501
    %v503 = vpop.f32.mrb[0].mxu0
    %v504 = vadd.f32 0.0, %v503
    %505 = vdwg.mxu0
    %v507 = vcombine.high %v384, %v384
    %vm508 = vcmask 31744
    %v510 = vsel %vm508, %v281, 0
    %v513 = vsel %vm508, %v286, 0
    %v516 = vsel %vm508, %v291, 0
    %v519 = vsel %vm508, %v296, 0
    %vm521 = vcmask 1043456
    %v522 = vsel %vm521, %v384, 0
    %v524 = vsel %vm521, %v507, 0
    %526 = vmatprep.subr.mxu0 %v524
    %527 = vmatpush1.msra.mxu0 %v522
    %528 = vmatprep.subr.mxu0 0.0
    %529 = vmatpush1.msra.mxu0 0.0
    %530 = vmatprep.subr.mxu0 0.0
    %531 = vmatpush1.msra.mxu0 0.0
    %532 = vmatprep.subr.mxu0 0.0
    %533 = vmatpush1.msra.mxu0 0.0
    %534 = vmatprep.subr.mxu0 0.0
    %535 = vmatpush1.msra.mxu0 0.0
    %536 = vmatprep.subr.mxu0 0.0
    %537 = vmatpush1.msra.mxu0 0.0
    %538 = vmatprep.subr.mxu0 0.0
    %539 = vmatpush1.msra.mxu0 0.0
    %540 = vmatprep.subr.mxu0 0.0
    %541 = vmatpush1.msra.mxu0 0.0
    %542 = vmatprep.subr.mxu0 0.0
    %543 = vmatpush1.msra.mxu0 0.0
    %544 = vmatprep.subr.mxu0 0.0
    %545 = vmatpush1.msra.mxu0 0.0
    %546 = vmatprep.subr.mxu0 0.0
    %547 = vmatpush1.msra.mxu0 0.0
    %548 = vmatprep.subr.mxu0 0.0
    %549 = vmatpush1.msra.mxu0 0.0
    %550 = vmatprep.subr.mxu0 0.0
    %551 = vmatpush1.msra.mxu0 0.0
    %552 = vmatprep.subr.mxu0 0.0
    %553 = vmatpush1.msra.mxu0 0.0
    %554 = vmatprep.subr.mxu0 0.0
    %555 = vmatpush1.msra.mxu0 0.0
    %556 = vmatprep.subr.mxu0 0.0
    %557 = vmatpush1.msra.mxu0 0.0
    %558 = vmatprep.subr.mxu0 0.0
    %559 = vmatpush1.msra.mxu0 0.0
    %560 = vmatprep.subr.mxu0 0.0
    %561 = vmatpush1.msra.mxu0 0.0
    %562 = vmatprep.subr.mxu0 0.0
    %563 = vmatpush1.msra.mxu0 0.0
    %564 = vmatprep.subr.mxu0 0.0
    %565 = vmatpush1.msra.mxu0 0.0
    %566 = vmatprep.subr.mxu0 0.0
    %567 = vmatpush1.msra.mxu0 0.0
    %568 = vmatprep.subr.mxu0 0.0
    %569 = vmatpush1.msra.mxu0 0.0
    %570 = vmatprep.subr.mxu0 0.0
    %571 = vmatpush1.msra.mxu0 0.0
    %572 = vmatprep.subr.mxu0 0.0
    %573 = vmatpush1.msra.mxu0 0.0
    %574 = vmatprep.subr.mxu0 0.0
    %575 = vmatpush1.msra.mxu0 0.0
    %576 = vmatprep.subr.mxu0 0.0
    %577 = vmatpush1.msra.mxu0 0.0
    %578 = vmatprep.subr.mxu0 0.0
    %579 = vmatpush1.msra.mxu0 0.0
    %580 = vmatprep.subr.mxu0 0.0
    %581 = vmatpush1.msra.mxu0 0.0
    %582 = vmatprep.subr.mxu0 0.0
    %583 = vmatpush1.msra.mxu0 0.0
    %584 = vmatprep.subr.mxu0 0.0
    %585 = vmatpush1.msra.mxu0 0.0
    %586 = vmatprep.subr.mxu0 0.0
    %587 = vmatpush1.msra.mxu0 0.0
    %588 = vmatprep.subr.mxu0 0.0
    %589 = vmatpush1.msra.mxu0 0.0
    %590 = vmatprep.mubr.f32.mxu0 0.0
    %591 = vmatmul.mubr.f32.gmra.mrb[0].mxu0 %v510
    %v592 = vpop.f32.mrb[0].mxu0
    %v593 = vadd.f32 %v484, %v592
    %v594 = vpop.f32.mrb[0].mxu0
    %v595 = vadd.f32 %v486, %v594
    %596 = vmatprep.mubr.f32.mxu0 0.0
    %597 = vmatmul.mubr.f32.gmra.mrb[0].mxu0 %v513
    %v598 = vpop.f32.mrb[0].mxu0
    %v599 = vadd.f32 %v490, %v598
    %v600 = vpop.f32.mrb[0].mxu0
    %v601 = vadd.f32 %v492, %v600
    %602 = vmatprep.mubr.f32.mxu0 0.0
    %603 = vmatmul.mubr.f32.gmra.mrb[0].mxu0 %v516
    %v604 = vpop.f32.mrb[0].mxu0
    %v605 = vadd.f32 %v496, %v604
    %v606 = vpop.f32.mrb[0].mxu0
    %v607 = vadd.f32 %v498, %v606
    %608 = vmatprep.mubr.f32.mxu0 0.0
    %609 = vmatmul.mubr.f32.gmra.mrb[0].mxu0 %v519
    %v610 = vpop.f32.mrb[0].mxu0
    %v611 = vadd.f32 %v502, %v610
    %v612 = vpop.f32.mrb[0].mxu0
    %v613 = vadd.f32 %v504, %v612
    %614 = vdwg.mxu0
    %v616 = vsel %vm201, %v184, 0
    %v619 = vsel %vm201, %v185, 0
    %v622 = vsel %vm201, %v186, 0
    %v625 = vsel %vm201, %v187, 0
    %627 = vmatprep.subr.mxu0 0.0
    %628 = vmatpush1.msra.mxu0 %v193
    %629 = vmatprep.subr.mxu0 0.0
    %630 = vmatpush1.msra.mxu0 %v194
    %631 = vmatprep.subr.mxu0 0.0
    %632 = vmatpush1.msra.mxu0 %v195
    %633 = vmatprep.subr.mxu0 0.0
    %634 = vmatpush1.msra.mxu0 %v196
    %635 = vmatprep.subr.mxu0 0.0
    %636 = vmatpush1.msra.mxu0 0.0
    %637 = vmatprep.subr.mxu0 0.0
    %638 = vmatpush1.msra.mxu0 0.0
    %639 = vmatprep.subr.mxu0 0.0
    %640 = vmatpush1.msra.mxu0 0.0
    %641 = vmatprep.subr.mxu0 0.0
    %642 = vmatpush1.msra.mxu0 0.0
    %643 = vmatprep.subr.mxu0 0.0
    %644 = vmatpush1.msra.mxu0 0.0
    %645 = vmatprep.subr.mxu0 0.0
    %646 = vmatpush1.msra.mxu0 0.0
    %647 = vmatprep.subr.mxu0 0.0
    %648 = vmatpush1.msra.mxu0 0.0
    %649 = vmatprep.subr.mxu0 0.0
    %650 = vmatpush1.msra.mxu0 0.0
    %651 = vmatprep.subr.mxu0 0.0
    %652 = vmatpush1.msra.mxu0 0.0
    %653 = vmatprep.subr.mxu0 0.0
    %654 = vmatpush1.msra.mxu0 0.0
    %655 = vmatprep.subr.mxu0 0.0
    %656 = vmatpush1.msra.mxu0 0.0
    %657 = vmatprep.subr.mxu0 0.0
    %658 = vmatpush1.msra.mxu0 0.0
    %659 = vmatprep.subr.mxu0 0.0
    %660 = vmatpush1.msra.mxu0 0.0
    %661 = vmatprep.subr.mxu0 0.0
    %662 = vmatpush1.msra.mxu0 0.0
    %663 = vmatprep.subr.mxu0 0.0
    %664 = vmatpush1.msra.mxu0 0.0
    %665 = vmatprep.subr.mxu0 0.0
    %666 = vmatpush1.msra.mxu0 0.0
    %667 = vmatprep.subr.mxu0 0.0
    %668 = vmatpush1.msra.mxu0 0.0
    %669 = vmatprep.subr.mxu0 0.0
    %670 = vmatpush1.msra.mxu0 0.0
    %671 = vmatprep.subr.mxu0 0.0
    %672 = vmatpush1.msra.mxu0 0.0
    %673 = vmatprep.subr.mxu0 0.0
    %674 = vmatpush1.msra.mxu0 0.0
    %675 = vmatprep.subr.mxu0 0.0
    %676 = vmatpush1.msra.mxu0 0.0
    %677 = vmatprep.subr.mxu0 0.0
    %678 = vmatpush1.msra.mxu0 0.0
    %679 = vmatprep.subr.mxu0 0.0
    %680 = vmatpush1.msra.mxu0 0.0
    %681 = vmatprep.subr.mxu0 0.0
    %682 = vmatpush1.msra.mxu0 0.0
    %683 = vmatprep.subr.mxu0 0.0
    %684 = vmatpush1.msra.mxu0 0.0
    %685 = vmatprep.subr.mxu0 0.0
    %686 = vmatpush1.msra.mxu0 0.0
    %687 = vmatprep.subr.mxu0 0.0
    %688 = vmatpush1.msra.mxu0 0.0
    %689 = vmatprep.subr.mxu0 0.0
    %690 = vmatpush1.msra.mxu0 0.0
    %691 = vmatprep.mubr.f32.mxu0 0.0
    %692 = vmatmul.mubr.f32.gmra.mrb[0].mxu0 %v616
    %v693 = vpop.f32.mrb[0].mxu0
    %v694 = vadd.f32 0.0, %v693
    %v695 = vpop.f32.mrb[0].mxu0
    %696 = vmatprep.mubr.f32.mxu0 0.0
    %697 = vmatmul.mubr.f32.gmra.mrb[0].mxu0 %v619
    %v698 = vpop.f32.mrb[0].mxu0
    %v699 = vadd.f32 0.0, %v698
    %v700 = vpop.f32.mrb[0].mxu0
    %701 = vmatprep.mubr.f32.mxu0 0.0
    %702 = vmatmul.mubr.f32.gmra.mrb[0].mxu0 %v622
    %v703 = vpop.f32.mrb[0].mxu0
    %v704 = vadd.f32 0.0, %v703
    %v705 = vpop.f32.mrb[0].mxu0
    %706 = vmatprep.mubr.f32.mxu0 0.0
    %707 = vmatmul.mubr.f32.gmra.mrb[0].mxu0 %v625
    %v708 = vpop.f32.mrb[0].mxu0
    %v709 = vadd.f32 0.0, %v708
    %v710 = vpop.f32.mrb[0].mxu0
    %711 = vdwg.mxu0
    %712 = vmatprep.subr.mxu0 0.0
    %713 = vmatpush1.msra.mxu0 %v197
    %714 = vmatprep.subr.mxu0 0.0
    %715 = vmatpush1.msra.mxu0 %v198
    %716 = vmatprep.subr.mxu0 0.0
    %717 = vmatpush1.msra.mxu0 %v199
    %718 = vmatprep.subr.mxu0 0.0
    %719 = vmatpush1.msra.mxu0 %v200
    %720 = vmatprep.subr.mxu0 0.0
    %721 = vmatpush1.msra.mxu0 0.0
    %722 = vmatprep.subr.mxu0 0.0
    %723 = vmatpush1.msra.mxu0 0.0
    %724 = vmatprep.subr.mxu0 0.0
    %725 = vmatpush1.msra.mxu0 0.0
    %726 = vmatprep.subr.mxu0 0.0
    %727 = vmatpush1.msra.mxu0 0.0
    %728 = vmatprep.subr.mxu0 0.0
    %729 = vmatpush1.msra.mxu0 0.0
    %730 = vmatprep.subr.mxu0 0.0
    %731 = vmatpush1.msra.mxu0 0.0
    %732 = vmatprep.subr.mxu0 0.0
    %733 = vmatpush1.msra.mxu0 0.0
    %734 = vmatprep.subr.mxu0 0.0
    %735 = vmatpush1.msra.mxu0 0.0
    %736 = vmatprep.subr.mxu0 0.0
    %737 = vmatpush1.msra.mxu0 0.0
    %738 = vmatprep.subr.mxu0 0.0
    %739 = vmatpush1.msra.mxu0 0.0
    %740 = vmatprep.subr.mxu0 0.0
    %741 = vmatpush1.msra.mxu0 0.0
    %742 = vmatprep.subr.mxu0 0.0
    %743 = vmatpush1.msra.mxu0 0.0
    %744 = vmatprep.subr.mxu0 0.0
    %745 = vmatpush1.msra.mxu0 0.0
    %746 = vmatprep.subr.mxu0 0.0
    %747 = vmatpush1.msra.mxu0 0.0
    %748 = vmatprep.subr.mxu0 0.0
    %749 = vmatpush1.msra.mxu0 0.0
    %750 = vmatprep.subr.mxu0 0.0
    %751 = vmatpush1.msra.mxu0 0.0
    %752 = vmatprep.subr.mxu0 0.0
    %753 = vmatpush1.msra.mxu0 0.0
    %754 = vmatprep.subr.mxu0 0.0
    %755 = vmatpush1.msra.mxu0 0.0
    %756 = vmatprep.subr.mxu0 0.0
    %757 = vmatpush1.msra.mxu0 0.0
    %758 = vmatprep.subr.mxu0 0.0
    %759 = vmatpush1.msra.mxu0 0.0
    %760 = vmatprep.subr.mxu0 0.0
    %761 = vmatpush1.msra.mxu0 0.0
    %762 = vmatprep.subr.mxu0 0.0
    %763 = vmatpush1.msra.mxu0 0.0
    %764 = vmatprep.subr.mxu0 0.0
    %765 = vmatpush1.msra.mxu0 0.0
    %766 = vmatprep.subr.mxu0 0.0
    %767 = vmatpush1.msra.mxu0 0.0
    %768 = vmatprep.subr.mxu0 0.0
    %769 = vmatpush1.msra.mxu0 0.0
    %770 = vmatprep.subr.mxu0 0.0
    %771 = vmatpush1.msra.mxu0 0.0
    %772 = vmatprep.subr.mxu0 0.0
    %773 = vmatpush1.msra.mxu0 0.0
    %774 = vmatprep.subr.mxu0 0.0
    %775 = vmatpush1.msra.mxu0 0.0
    %776 = vmatprep.mubr.f32.mxu0 0.0
    %777 = vmatmul.mubr.f32.gmra.mrb[0].mxu0 %v616
    %v778 = vpop.f32.mrb[0].mxu0
    %v779 = vadd.f32 0.0, %v778
    %v780 = vpop.f32.mrb[0].mxu0
    %781 = vmatprep.mubr.f32.mxu0 0.0
    %782 = vmatmul.mubr.f32.gmra.mrb[0].mxu0 %v619
    %v783 = vpop.f32.mrb[0].mxu0
    %v784 = vadd.f32 0.0, %v783
    %v785 = vpop.f32.mrb[0].mxu0
    %786 = vmatprep.mubr.f32.mxu0 0.0
    %787 = vmatmul.mubr.f32.gmra.mrb[0].mxu0 %v622
    %v788 = vpop.f32.mrb[0].mxu0
    %v789 = vadd.f32 0.0, %v788
    %v790 = vpop.f32.mrb[0].mxu0
    %791 = vmatprep.mubr.f32.mxu0 0.0
    %792 = vmatmul.mubr.f32.gmra.mrb[0].mxu0 %v625
    %v793 = vpop.f32.mrb[0].mxu0
    %v794 = vadd.f32 0.0, %v793
    %v795 = vpop.f32.mrb[0].mxu0
    %796 = vdwg.mxu0
    %s797 = scalar_lea.vmem [#allocation7], 8
    %v798 = vld [vmem:[%s797] sm:$0xff]
    %s799 = scalar_lea.vmem [#allocation8], 256
    %v800 = vld [vmem:[%s799] sm:$0xff]
    %v801 = vld [vmem:[%s799 + $0x8] sm:$0xff]
    %v802 = vld [vmem:[%s799 + $0x10] sm:$0xff]
    %v803 = vld [vmem:[%s799 + $0x18] sm:$0xff]
    %v804 = vld [vmem:[%s799 + $0x20] sm:$0xff]
    %v805 = vld [vmem:[%s799 + $0x28] sm:$0xff]
    %v806 = vld [vmem:[%s799 + $0x30] sm:$0xff]
    %v807 = vld [vmem:[%s799 + $0x38] sm:$0xff]
    %v808 = vld [vmem:[%s799 + $0x40] sm:$0xff]
    %v809 = vld [vmem:[%s799 + $0x48] sm:$0xff]
    %v810 = vld [vmem:[%s799 + $0x50] sm:$0xff]
    %v811 = vld [vmem:[%s799 + $0x58] sm:$0xff]
    %v812 = vld [vmem:[%s799 + $0x60] sm:$0xff]
    %v813 = vld [vmem:[%s799 + $0x68] sm:$0xff]
    %v814 = vld [vmem:[%s799 + $0x70] sm:$0xff]
    %v815 = vld [vmem:[%s799 + $0x78] sm:$0xff]
    %v816 = vld [vmem:[%s799 + $0x80] sm:$0xff]
    %v817 = vld [vmem:[%s799 + $0x88] sm:$0xff]
    %v818 = vld [vmem:[%s799 + $0x90] sm:$0xff]
    %v819 = vld [vmem:[%s799 + $0x98] sm:$0xff]
    %v820 = vld [vmem:[%s799 + $0xa0] sm:$0xff]
    %v821 = vld [vmem:[%s799 + $0xa8] sm:$0xff]
    %v822 = vld [vmem:[%s799 + $0xb0] sm:$0xff]
    %v823 = vld [vmem:[%s799 + $0xb8] sm:$0xff]
    %v824 = vld [vmem:[%s799 + $0xc0] sm:$0xff]
    %v825 = vld [vmem:[%s799 + $0xc8] sm:$0xff]
    %v826 = vld [vmem:[%s799 + $0xd0] sm:$0xff]
    %v827 = vld [vmem:[%s799 + $0xd8] sm:$0xff]
    %v828 = vld [vmem:[%s799 + $0xe0] sm:$0xff]
    %v829 = vld [vmem:[%s799 + $0xe8] sm:$0xff]
    %v830 = vld [vmem:[%s799 + $0xf0] sm:$0xff]
    %v831 = vld [vmem:[%s799 + $0xf8] sm:$0xff]
    %832 = vmatprep.subr.mxu0 %v801
    %833 = vmatpush1.msra.mxu0 %v800
    %834 = vmatprep.subr.mxu0 %v803
    %835 = vmatpush1.msra.mxu0 %v802
    %836 = vmatprep.subr.mxu0 %v805
    %837 = vmatpush1.msra.mxu0 %v804
    %838 = vmatprep.subr.mxu0 %v807
    %839 = vmatpush1.msra.mxu0 %v806
    %840 = vmatprep.subr.mxu0 %v809
    %841 = vmatpush1.msra.mxu0 %v808
    %842 = vmatprep.subr.mxu0 %v811
    %843 = vmatpush1.msra.mxu0 %v810
    %844 = vmatprep.subr.mxu0 %v813
    %845 = vmatpush1.msra.mxu0 %v812
    %846 = vmatprep.subr.mxu0 %v815
    %847 = vmatpush1.msra.mxu0 %v814
    %848 = vmatprep.subr.mxu0 %v817
    %849 = vmatpush1.msra.mxu0 %v816
    %850 = vmatprep.subr.mxu0 %v819
    %851 = vmatpush1.msra.mxu0 %v818
    %852 = vmatprep.subr.mxu0 %v821
    %853 = vmatpush1.msra.mxu0 %v820
    %854 = vmatprep.subr.mxu0 %v823
    %855 = vmatpush1.msra.mxu0 %v822
    %856 = vmatprep.subr.mxu0 %v825
    %857 = vmatpush1.msra.mxu0 %v824
    %858 = vmatprep.subr.mxu0 %v827
    %859 = vmatpush1.msra.mxu0 %v826
    %860 = vmatprep.subr.mxu0 %v829
    %861 = vmatpush1.msra.mxu0 %v828
    %862 = vmatprep.subr.mxu0 %v831
    %863 = vmatpush1.msra.mxu0 %v830
    %864 = vmatprep.subr.mxu0 0.0
    %865 = vmatpush1.msra.mxu0 0.0
    %866 = vmatprep.subr.mxu0 0.0
    %867 = vmatpush1.msra.mxu0 0.0
    %868 = vmatprep.subr.mxu0 0.0
    %869 = vmatpush1.msra.mxu0 0.0
    %870 = vmatprep.subr.mxu0 0.0
    %871 = vmatpush1.msra.mxu0 0.0
    %872 = vmatprep.subr.mxu0 0.0
    %873 = vmatpush1.msra.mxu0 0.0
    %874 = vmatprep.subr.mxu0 0.0
    %875 = vmatpush1.msra.mxu0 0.0
    %876 = vmatprep.subr.mxu0 0.0
    %877 = vmatpush1.msra.mxu0 0.0
    %878 = vmatprep.subr.mxu0 0.0
    %879 = vmatpush1.msra.mxu0 0.0
    %880 = vmatprep.subr.mxu0 0.0
    %881 = vmatpush1.msra.mxu0 0.0
    %882 = vmatprep.subr.mxu0 0.0
    %883 = vmatpush1.msra.mxu0 0.0
    %884 = vmatprep.subr.mxu0 0.0
    %885 = vmatpush1.msra.mxu0 0.0
    %886 = vmatprep.subr.mxu0 0.0
    %887 = vmatpush1.msra.mxu0 0.0
    %888 = vmatprep.subr.mxu0 0.0
    %889 = vmatpush1.msra.mxu0 0.0
    %890 = vmatprep.subr.mxu0 0.0
    %891 = vmatpush1.msra.mxu0 0.0
    %892 = vmatprep.subr.mxu0 0.0
    %893 = vmatpush1.msra.mxu0 0.0
    %894 = vmatprep.subr.mxu0 0.0
    %895 = vmatpush1.msra.mxu0 0.0
    %896 = vmatprep.mubr.f32.mxu0 0.0
    %897 = vmatmul.mubr.f32.gmra.mrb[0].mxu0 %v779
    %v898 = vpop.f32.mrb[0].mxu0
    %v899 = vadd.f32 0.0, %v898
    %v900 = vpop.f32.mrb[0].mxu0
    %v901 = vadd.f32 0.0, %v900
    %902 = vmatprep.mubr.f32.mxu0 0.0
    %903 = vmatmul.mubr.f32.gmra.mrb[0].mxu0 %v784
    %v904 = vpop.f32.mrb[0].mxu0
    %v905 = vadd.f32 0.0, %v904
    %v906 = vpop.f32.mrb[0].mxu0
    %v907 = vadd.f32 0.0, %v906
    %908 = vmatprep.mubr.f32.mxu0 0.0
    %909 = vmatmul.mubr.f32.gmra.mrb[0].mxu0 %v789
    %v910 = vpop.f32.mrb[0].mxu0
    %v911 = vadd.f32 0.0, %v910
    %v912 = vpop.f32.mrb[0].mxu0
    %v913 = vadd.f32 0.0, %v912
    %914 = vmatprep.mubr.f32.mxu0 0.0
    %915 = vmatmul.mubr.f32.gmra.mrb[0].mxu0 %v794
    %v916 = vpop.f32.mrb[0].mxu0
    %v917 = vadd.f32 0.0, %v916
    %v918 = vpop.f32.mrb[0].mxu0
    %v919 = vadd.f32 0.0, %v918
    %920 = vdwg.mxu0
    %v922 = vcombine.high %v798, %v798
    %v924 = vsel %vm508, %v694, 0
    %v927 = vsel %vm508, %v699, 0
    %v930 = vsel %vm508, %v704, 0
    %v933 = vsel %vm508, %v709, 0
    %v935 = vsel %vm521, %v798, 0
    %v937 = vsel %vm521, %v922, 0
    %939 = vmatprep.subr.mxu0 %v937
    %940 = vmatpush1.msra.mxu0 %v935
    %941 = vmatprep.subr.mxu0 0.0
    %942 = vmatpush1.msra.mxu0 0.0
    %943 = vmatprep.subr.mxu0 0.0
    %944 = vmatpush1.msra.mxu0 0.0
    %945 = vmatprep.subr.mxu0 0.0
    %946 = vmatpush1.msra.mxu0 0.0
    %947 = vmatprep.subr.mxu0 0.0
    %948 = vmatpush1.msra.mxu0 0.0
    %949 = vmatprep.subr.mxu0 0.0
    %950 = vmatpush1.msra.mxu0 0.0
    %951 = vmatprep.subr.mxu0 0.0
    %952 = vmatpush1.msra.mxu0 0.0
    %953 = vmatprep.subr.mxu0 0.0
    %954 = vmatpush1.msra.mxu0 0.0
    %955 = vmatprep.subr.mxu0 0.0
    %956 = vmatpush1.msra.mxu0 0.0
    %957 = vmatprep.subr.mxu0 0.0
    %958 = vmatpush1.msra.mxu0 0.0
    %959 = vmatprep.subr.mxu0 0.0
    %960 = vmatpush1.msra.mxu0 0.0
    %961 = vmatprep.subr.mxu0 0.0
    %962 = vmatpush1.msra.mxu0 0.0
    %963 = vmatprep.subr.mxu0 0.0
    %964 = vmatpush1.msra.mxu0 0.0
    %965 = vmatprep.subr.mxu0 0.0
    %966 = vmatpush1.msra.mxu0 0.0
    %967 = vmatprep.subr.mxu0 0.0
    %968 = vmatpush1.msra.mxu0 0.0
    %969 = vmatprep.subr.mxu0 0.0
    %970 = vmatpush1.msra.mxu0 0.0
    %971 = vmatprep.subr.mxu0 0.0
    %972 = vmatpush1.msra.mxu0 0.0
    %973 = vmatprep.subr.mxu0 0.0
    %974 = vmatpush1.msra.mxu0 0.0
    %975 = vmatprep.subr.mxu0 0.0
    %976 = vmatpush1.msra.mxu0 0.0
    %977 = vmatprep.subr.mxu0 0.0
    %978 = vmatpush1.msra.mxu0 0.0
    %979 = vmatprep.subr.mxu0 0.0
    %980 = vmatpush1.msra.mxu0 0.0
    %981 = vmatprep.subr.mxu0 0.0
    %982 = vmatpush1.msra.mxu0 0.0
    %983 = vmatprep.subr.mxu0 0.0
    %984 = vmatpush1.msra.mxu0 0.0
    %985 = vmatprep.subr.mxu0 0.0
    %986 = vmatpush1.msra.mxu0 0.0
    %987 = vmatprep.subr.mxu0 0.0
    %988 = vmatpush1.msra.mxu0 0.0
    %989 = vmatprep.subr.mxu0 0.0
    %990 = vmatpush1.msra.mxu0 0.0
    %991 = vmatprep.subr.mxu0 0.0
    %992 = vmatpush1.msra.mxu0 0.0
    %993 = vmatprep.subr.mxu0 0.0
    %994 = vmatpush1.msra.mxu0 0.0
    %995 = vmatprep.subr.mxu0 0.0
    %996 = vmatpush1.msra.mxu0 0.0
    %997 = vmatprep.subr.mxu0 0.0
    %998 = vmatpush1.msra.mxu0 0.0
    %999 = vmatprep.subr.mxu0 0.0
    %1000 = vmatpush1.msra.mxu0 0.0
    %1001 = vmatprep.subr.mxu0 0.0
    %1002 = vmatpush1.msra.mxu0 0.0
    %1003 = vmatprep.mubr.f32.mxu0 0.0
    %1004 = vmatmul.mubr.f32.gmra.mrb[0].mxu0 %v924
    %v1005 = vpop.f32.mrb[0].mxu0
    %v1006 = vadd.f32 %v899, %v1005
    %v1007 = vpop.f32.mrb[0].mxu0
    %v1008 = vadd.f32 %v901, %v1007
    %1009 = vmatprep.mubr.f32.mxu0 0.0
    %1010 = vmatmul.mubr.f32.gmra.mrb[0].mxu0 %v927
    %v1011 = vpop.f32.mrb[0].mxu0
    %v1012 = vadd.f32 %v905, %v1011
    %v1013 = vpop.f32.mrb[0].mxu0
    %v1014 = vadd.f32 %v907, %v1013
    %1015 = vmatprep.mubr.f32.mxu0 0.0
    %1016 = vmatmul.mubr.f32.gmra.mrb[0].mxu0 %v930
    %v1017 = vpop.f32.mrb[0].mxu0
    %v1018 = vadd.f32 %v911, %v1017
    %v1019 = vpop.f32.mrb[0].mxu0
    %v1020 = vadd.f32 %v913, %v1019
    %1021 = vmatprep.mubr.f32.mxu0 0.0
    %1022 = vmatmul.mubr.f32.gmra.mrb[0].mxu0 %v933
    %v1023 = vpop.f32.mrb[0].mxu0
    %v1024 = vadd.f32 %v917, %v1023
    %v1025 = vpop.f32.mrb[0].mxu0
    %v1026 = vadd.f32 %v919, %v1025
    %1027 = vdwg.mxu0
    %v1028 = vadd.f32 %v593, %v1006
    %v1029 = vadd.f32 %v595, %v1008
    %v1030 = vadd.f32 %v599, %v1012
    %v1031 = vadd.f32 %v601, %v1014
    %v1032 = vadd.f32 %v605, %v1018
    %v1033 = vadd.f32 %v607, %v1020
    %v1034 = vadd.f32 %v611, %v1024
    %v1035 = vadd.f32 %v613, %v1026
    %v1037 = vsel %vm201, %v189, 0
    %v1040 = vsel %vm201, %v190, 0
    %v1043 = vsel %vm201, %v191, 0
    %v1046 = vsel %vm201, %v192, 0
    %1048 = vmatprep.subr.mxu0 0.0
    %1049 = vmatpush1.msra.mxu0 %v193
    %1050 = vmatprep.subr.mxu0 0.0
    %1051 = vmatpush1.msra.mxu0 %v194
    %1052 = vmatprep.subr.mxu0 0.0
    %1053 = vmatpush1.msra.mxu0 %v195
    %1054 = vmatprep.subr.mxu0 0.0
    %1055 = vmatpush1.msra.mxu0 %v196
    %1056 = vmatprep.subr.mxu0 0.0
    %1057 = vmatpush1.msra.mxu0 0.0
    %1058 = vmatprep.subr.mxu0 0.0
    %1059 = vmatpush1.msra.mxu0 0.0
    %1060 = vmatprep.subr.mxu0 0.0
    %1061 = vmatpush1.msra.mxu0 0.0
    %1062 = vmatprep.subr.mxu0 0.0
    %1063 = vmatpush1.msra.mxu0 0.0
    %1064 = vmatprep.subr.mxu0 0.0
    %1065 = vmatpush1.msra.mxu0 0.0
    %1066 = vmatprep.subr.mxu0 0.0
    %1067 = vmatpush1.msra.mxu0 0.0
    %1068 = vmatprep.subr.mxu0 0.0
    %1069 = vmatpush1.msra.mxu0 0.0
    %1070 = vmatprep.subr.mxu0 0.0
    %1071 = vmatpush1.msra.mxu0 0.0
    %1072 = vmatprep.subr.mxu0 0.0
    %1073 = vmatpush1.msra.mxu0 0.0
    %1074 = vmatprep.subr.mxu0 0.0
    %1075 = vmatpush1.msra.mxu0 0.0
    %1076 = vmatprep.subr.mxu0 0.0
    %1077 = vmatpush1.msra.mxu0 0.0
    %1078 = vmatprep.subr.mxu0 0.0
    %1079 = vmatpush1.msra.mxu0 0.0
    %1080 = vmatprep.subr.mxu0 0.0
    %1081 = vmatpush1.msra.mxu0 0.0
    %1082 = vmatprep.subr.mxu0 0.0
    %1083 = vmatpush1.msra.mxu0 0.0
    %1084 = vmatprep.subr.mxu0 0.0
    %1085 = vmatpush1.msra.mxu0 0.0
    %1086 = vmatprep.subr.mxu0 0.0
    %1087 = vmatpush1.msra.mxu0 0.0
    %1088 = vmatprep.subr.mxu0 0.0
    %1089 = vmatpush1.msra.mxu0 0.0
    %1090 = vmatprep.subr.mxu0 0.0
    %1091 = vmatpush1.msra.mxu0 0.0
    %1092 = vmatprep.subr.mxu0 0.0
    %1093 = vmatpush1.msra.mxu0 0.0
    %1094 = vmatprep.subr.mxu0 0.0
    %1095 = vmatpush1.msra.mxu0 0.0
    %1096 = vmatprep.subr.mxu0 0.0
    %1097 = vmatpush1.msra.mxu0 0.0
    %1098 = vmatprep.subr.mxu0 0.0
    %1099 = vmatpush1.msra.mxu0 0.0
    %1100 = vmatprep.subr.mxu0 0.0
    %1101 = vmatpush1.msra.mxu0 0.0
    %1102 = vmatprep.subr.mxu0 0.0
    %1103 = vmatpush1.msra.mxu0 0.0
    %1104 = vmatprep.subr.mxu0 0.0
    %1105 = vmatpush1.msra.mxu0 0.0
    %1106 = vmatprep.subr.mxu0 0.0
    %1107 = vmatpush1.msra.mxu0 0.0
    %1108 = vmatprep.subr.mxu0 0.0
    %1109 = vmatpush1.msra.mxu0 0.0
    %1110 = vmatprep.subr.mxu0 0.0
    %1111 = vmatpush1.msra.mxu0 0.0
    %1112 = vmatprep.mubr.f32.mxu0 0.0
    %1113 = vmatmul.mubr.f32.gmra.mrb[0].mxu0 %v1037
    %v1114 = vpop.f32.mrb[0].mxu0
    %v1115 = vadd.f32 0.0, %v1114
    %v1116 = vpop.f32.mrb[0].mxu0
    %1117 = vmatprep.mubr.f32.mxu0 0.0
    %1118 = vmatmul.mubr.f32.gmra.mrb[0].mxu0 %v1040
    %v1119 = vpop.f32.mrb[0].mxu0
    %v1120 = vadd.f32 0.0, %v1119
    %v1121 = vpop.f32.mrb[0].mxu0
    %1122 = vmatprep.mubr.f32.mxu0 0.0
    %1123 = vmatmul.mubr.f32.gmra.mrb[0].mxu0 %v1043
    %v1124 = vpop.f32.mrb[0].mxu0
    %v1125 = vadd.f32 0.0, %v1124
    %v1126 = vpop.f32.mrb[0].mxu0
    %1127 = vmatprep.mubr.f32.mxu0 0.0
    %1128 = vmatmul.mubr.f32.gmra.mrb[0].mxu0 %v1046
    %v1129 = vpop.f32.mrb[0].mxu0
    %v1130 = vadd.f32 0.0, %v1129
    %v1131 = vpop.f32.mrb[0].mxu0
    %1132 = vdwg.mxu0
    %1133 = vmatprep.subr.mxu0 0.0
    %1134 = vmatpush1.msra.mxu0 %v197
    %1135 = vmatprep.subr.mxu0 0.0
    %1136 = vmatpush1.msra.mxu0 %v198
    %1137 = vmatprep.subr.mxu0 0.0
    %1138 = vmatpush1.msra.mxu0 %v199
    %1139 = vmatprep.subr.mxu0 0.0
    %1140 = vmatpush1.msra.mxu0 %v200
    %1141 = vmatprep.subr.mxu0 0.0
    %1142 = vmatpush1.msra.mxu0 0.0
    %1143 = vmatprep.subr.mxu0 0.0
    %1144 = vmatpush1.msra.mxu0 0.0
    %1145 = vmatprep.subr.mxu0 0.0
    %1146 = vmatpush1.msra.mxu0 0.0
    %1147 = vmatprep.subr.mxu0 0.0
    %1148 = vmatpush1.msra.mxu0 0.0
    %1149 = vmatprep.subr.mxu0 0.0
    %1150 = vmatpush1.msra.mxu0 0.0
    %1151 = vmatprep.subr.mxu0 0.0
    %1152 = vmatpush1.msra.mxu0 0.0
    %1153 = vmatprep.subr.mxu0 0.0
    %1154 = vmatpush1.msra.mxu0 0.0
    %1155 = vmatprep.subr.mxu0 0.0
    %1156 = vmatpush1.msra.mxu0 0.0
    %1157 = vmatprep.subr.mxu0 0.0
    %1158 = vmatpush1.msra.mxu0 0.0
    %1159 = vmatprep.subr.mxu0 0.0
    %1160 = vmatpush1.msra.mxu0 0.0
    %1161 = vmatprep.subr.mxu0 0.0
    %1162 = vmatpush1.msra.mxu0 0.0
    %1163 = vmatprep.subr.mxu0 0.0
    %1164 = vmatpush1.msra.mxu0 0.0
    %1165 = vmatprep.subr.mxu0 0.0
    %1166 = vmatpush1.msra.mxu0 0.0
    %1167 = vmatprep.subr.mxu0 0.0
    %1168 = vmatpush1.msra.mxu0 0.0
    %1169 = vmatprep.subr.mxu0 0.0
    %1170 = vmatpush1.msra.mxu0 0.0
    %1171 = vmatprep.subr.mxu0 0.0
    %1172 = vmatpush1.msra.mxu0 0.0
    %1173 = vmatprep.subr.mxu0 0.0
    %1174 = vmatpush1.msra.mxu0 0.0
    %1175 = vmatprep.subr.mxu0 0.0
    %1176 = vmatpush1.msra.mxu0 0.0
    %1177 = vmatprep.subr.mxu0 0.0
    %1178 = vmatpush1.msra.mxu0 0.0
    %1179 = vmatprep.subr.mxu0 0.0
    %1180 = vmatpush1.msra.mxu0 0.0
    %1181 = vmatprep.subr.mxu0 0.0
    %1182 = vmatpush1.msra.mxu0 0.0
    %1183 = vmatprep.subr.mxu0 0.0
    %1184 = vmatpush1.msra.mxu0 0.0
    %1185 = vmatprep.subr.mxu0 0.0
    %1186 = vmatpush1.msra.mxu0 0.0
    %1187 = vmatprep.subr.mxu0 0.0
    %1188 = vmatpush1.msra.mxu0 0.0
    %1189 = vmatprep.subr.mxu0 0.0
    %1190 = vmatpush1.msra.mxu0 0.0
    %1191 = vmatprep.subr.mxu0 0.0
    %1192 = vmatpush1.msra.mxu0 0.0
    %1193 = vmatprep.subr.mxu0 0.0
    %1194 = vmatpush1.msra.mxu0 0.0
    %1195 = vmatprep.subr.mxu0 0.0
    %1196 = vmatpush1.msra.mxu0 0.0
    %1197 = vmatprep.mubr.f32.mxu0 0.0
    %1198 = vmatmul.mubr.f32.gmra.mrb[0].mxu0 %v1037
    %v1199 = vpop.f32.mrb[0].mxu0
    %v1200 = vadd.f32 0.0, %v1199
    %v1201 = vpop.f32.mrb[0].mxu0
    %1202 = vmatprep.mubr.f32.mxu0 0.0
    %1203 = vmatmul.mubr.f32.gmra.mrb[0].mxu0 %v1040
    %v1204 = vpop.f32.mrb[0].mxu0
    %v1205 = vadd.f32 0.0, %v1204
    %v1206 = vpop.f32.mrb[0].mxu0
    %1207 = vmatprep.mubr.f32.mxu0 0.0
    %1208 = vmatmul.mubr.f32.gmra.mrb[0].mxu0 %v1043
    %v1209 = vpop.f32.mrb[0].mxu0
    %v1210 = vadd.f32 0.0, %v1209
    %v1211 = vpop.f32.mrb[0].mxu0
    %1212 = vmatprep.mubr.f32.mxu0 0.0
    %1213 = vmatmul.mubr.f32.gmra.mrb[0].mxu0 %v1046
    %v1214 = vpop.f32.mrb[0].mxu0
    %v1215 = vadd.f32 0.0, %v1214
    %v1216 = vpop.f32.mrb[0].mxu0
    %1217 = vdwg.mxu0
    %s1218 = scalar_lea.vmem [#allocation7], 16
    %v1219 = vld [vmem:[%s1218] sm:$0xff]
    %s1220 = scalar_lea.vmem [#allocation8], 512
    %v1221 = vld [vmem:[%s1220] sm:$0xff]
    %v1222 = vld [vmem:[%s1220 + $0x8] sm:$0xff]
    %v1223 = vld [vmem:[%s1220 + $0x10] sm:$0xff]
    %v1224 = vld [vmem:[%s1220 + $0x18] sm:$0xff]
    %v1225 = vld [vmem:[%s1220 + $0x20] sm:$0xff]
    %v1226 = vld [vmem:[%s1220 + $0x28] sm:$0xff]
    %v1227 = vld [vmem:[%s1220 + $0x30] sm:$0xff]
    %v1228 = vld [vmem:[%s1220 + $0x38] sm:$0xff]
    %v1229 = vld [vmem:[%s1220 + $0x40] sm:$0xff]
    %v1230 = vld [vmem:[%s1220 + $0x48] sm:$0xff]
    %v1231 = vld [vmem:[%s1220 + $0x50] sm:$0xff]
    %v1232 = vld [vmem:[%s1220 + $0x58] sm:$0xff]
    %v1233 = vld [vmem:[%s1220 + $0x60] sm:$0xff]
    %v1234 = vld [vmem:[%s1220 + $0x68] sm:$0xff]
    %v1235 = vld [vmem:[%s1220 + $0x70] sm:$0xff]
    %v1236 = vld [vmem:[%s1220 + $0x78] sm:$0xff]
    %v1237 = vld [vmem:[%s1220 + $0x80] sm:$0xff]
    %v1238 = vld [vmem:[%s1220 + $0x88] sm:$0xff]
    %v1239 = vld [vmem:[%s1220 + $0x90] sm:$0xff]
    %v1240 = vld [vmem:[%s1220 + $0x98] sm:$0xff]
    %v1241 = vld [vmem:[%s1220 + $0xa0] sm:$0xff]
    %v1242 = vld [vmem:[%s1220 + $0xa8] sm:$0xff]
    %v1243 = vld [vmem:[%s1220 + $0xb0] sm:$0xff]
    %v1244 = vld [vmem:[%s1220 + $0xb8] sm:$0xff]
    %v1245 = vld [vmem:[%s1220 + $0xc0] sm:$0xff]
    %v1246 = vld [vmem:[%s1220 + $0xc8] sm:$0xff]
    %v1247 = vld [vmem:[%s1220 + $0xd0] sm:$0xff]
    %v1248 = vld [vmem:[%s1220 + $0xd8] sm:$0xff]
    %v1249 = vld [vmem:[%s1220 + $0xe0] sm:$0xff]
    %v1250 = vld [vmem:[%s1220 + $0xe8] sm:$0xff]
    %v1251 = vld [vmem:[%s1220 + $0xf0] sm:$0xff]
    %v1252 = vld [vmem:[%s1220 + $0xf8] sm:$0xff]
    %1253 = vmatprep.subr.mxu0 %v1222
    %1254 = vmatpush1.msra.mxu0 %v1221
    %1255 = vmatprep.subr.mxu0 %v1224
    %1256 = vmatpush1.msra.mxu0 %v1223
    %1257 = vmatprep.subr.mxu0 %v1226
    %1258 = vmatpush1.msra.mxu0 %v1225
    %1259 = vmatprep.subr.mxu0 %v1228
    %1260 = vmatpush1.msra.mxu0 %v1227
    %1261 = vmatprep.subr.mxu0 %v1230
    %1262 = vmatpush1.msra.mxu0 %v1229
    %1263 = vmatprep.subr.mxu0 %v1232
    %1264 = vmatpush1.msra.mxu0 %v1231
    %1265 = vmatprep.subr.mxu0 %v1234
    %1266 = vmatpush1.msra.mxu0 %v1233
    %1267 = vmatprep.subr.mxu0 %v1236
    %1268 = vmatpush1.msra.mxu0 %v1235
    %1269 = vmatprep.subr.mxu0 %v1238
    %1270 = vmatpush1.msra.mxu0 %v1237
    %1271 = vmatprep.subr.mxu0 %v1240
    %1272 = vmatpush1.msra.mxu0 %v1239
    %1273 = vmatprep.subr.mxu0 %v1242
    %1274 = vmatpush1.msra.mxu0 %v1241
    %1275 = vmatprep.subr.mxu0 %v1244
    %1276 = vmatpush1.msra.mxu0 %v1243
    %1277 = vmatprep.subr.mxu0 %v1246
    %1278 = vmatpush1.msra.mxu0 %v1245
    %1279 = vmatprep.subr.mxu0 %v1248
    %1280 = vmatpush1.msra.mxu0 %v1247
    %1281 = vmatprep.subr.mxu0 %v1250
    %1282 = vmatpush1.msra.mxu0 %v1249
    %1283 = vmatprep.subr.mxu0 %v1252
    %1284 = vmatpush1.msra.mxu0 %v1251
    %1285 = vmatprep.subr.mxu0 0.0
    %1286 = vmatpush1.msra.mxu0 0.0
    %1287 = vmatprep.subr.mxu0 0.0
    %1288 = vmatpush1.msra.mxu0 0.0
    %1289 = vmatprep.subr.mxu0 0.0
    %1290 = vmatpush1.msra.mxu0 0.0
    %1291 = vmatprep.subr.mxu0 0.0
    %1292 = vmatpush1.msra.mxu0 0.0
    %1293 = vmatprep.subr.mxu0 0.0
    %1294 = vmatpush1.msra.mxu0 0.0
    %1295 = vmatprep.subr.mxu0 0.0
    %1296 = vmatpush1.msra.mxu0 0.0
    %1297 = vmatprep.subr.mxu0 0.0
    %1298 = vmatpush1.msra.mxu0 0.0
    %1299 = vmatprep.subr.mxu0 0.0
    %1300 = vmatpush1.msra.mxu0 0.0
    %1301 = vmatprep.subr.mxu0 0.0
    %1302 = vmatpush1.msra.mxu0 0.0
    %1303 = vmatprep.subr.mxu0 0.0
    %1304 = vmatpush1.msra.mxu0 0.0
    %1305 = vmatprep.subr.mxu0 0.0
    %1306 = vmatpush1.msra.mxu0 0.0
    %1307 = vmatprep.subr.mxu0 0.0
    %1308 = vmatpush1.msra.mxu0 0.0
    %1309 = vmatprep.subr.mxu0 0.0
    %1310 = vmatpush1.msra.mxu0 0.0
    %1311 = vmatprep.subr.mxu0 0.0
    %1312 = vmatpush1.msra.mxu0 0.0
    %1313 = vmatprep.subr.mxu0 0.0
    %1314 = vmatpush1.msra.mxu0 0.0
    %1315 = vmatprep.subr.mxu0 0.0
    %1316 = vmatpush1.msra.mxu0 0.0
    %1317 = vmatprep.mubr.f32.mxu0 0.0
    %1318 = vmatmul.mubr.f32.gmra.mrb[0].mxu0 %v1200
    %v1319 = vpop.f32.mrb[0].mxu0
    %v1320 = vadd.f32 0.0, %v1319
    %v1321 = vpop.f32.mrb[0].mxu0
    %v1322 = vadd.f32 0.0, %v1321
    %1323 = vmatprep.mubr.f32.mxu0 0.0
    %1324 = vmatmul.mubr.f32.gmra.mrb[0].mxu0 %v1205
    %v1325 = vpop.f32.mrb[0].mxu0
    %v1326 = vadd.f32 0.0, %v1325
    %v1327 = vpop.f32.mrb[0].mxu0
    %v1328 = vadd.f32 0.0, %v1327
    %1329 = vmatprep.mubr.f32.mxu0 0.0
    %1330 = vmatmul.mubr.f32.gmra.mrb[0].mxu0 %v1210
    %v1331 = vpop.f32.mrb[0].mxu0
    %v1332 = vadd.f32 0.0, %v1331
    %v1333 = vpop.f32.mrb[0].mxu0
    %v1334 = vadd.f32 0.0, %v1333
    %1335 = vmatprep.mubr.f32.mxu0 0.0
    %1336 = vmatmul.mubr.f32.gmra.mrb[0].mxu0 %v1215
    %v1337 = vpop.f32.mrb[0].mxu0
    %v1338 = vadd.f32 0.0, %v1337
    %v1339 = vpop.f32.mrb[0].mxu0
    %v1340 = vadd.f32 0.0, %v1339
    %1341 = vdwg.mxu0
    %v1343 = vcombine.high %v1219, %v1219
    %v1345 = vsel %vm508, %v1115, 0
    %v1348 = vsel %vm508, %v1120, 0
    %v1351 = vsel %vm508, %v1125, 0
    %v1354 = vsel %vm508, %v1130, 0
    %v1356 = vsel %vm521, %v1219, 0
    %v1358 = vsel %vm521, %v1343, 0
    %1360 = vmatprep.subr.mxu0 %v1358
    %1361 = vmatpush1.msra.mxu0 %v1356
    %1362 = vmatprep.subr.mxu0 0.0
    %1363 = vmatpush1.msra.mxu0 0.0
    %1364 = vmatprep.subr.mxu0 0.0
    %1365 = vmatpush1.msra.mxu0 0.0
    %1366 = vmatprep.subr.mxu0 0.0
    %1367 = vmatpush1.msra.mxu0 0.0
    %1368 = vmatprep.subr.mxu0 0.0
    %1369 = vmatpush1.msra.mxu0 0.0
    %1370 = vmatprep.subr.mxu0 0.0
    %1371 = vmatpush1.msra.mxu0 0.0
    %1372 = vmatprep.subr.mxu0 0.0
    %1373 = vmatpush1.msra.mxu0 0.0
    %1374 = vmatprep.subr.mxu0 0.0
    %1375 = vmatpush1.msra.mxu0 0.0
    %1376 = vmatprep.subr.mxu0 0.0
    %1377 = vmatpush1.msra.mxu0 0.0
    %1378 = vmatprep.subr.mxu0 0.0
    %1379 = vmatpush1.msra.mxu0 0.0
    %1380 = vmatprep.subr.mxu0 0.0
    %1381 = vmatpush1.msra.mxu0 0.0
    %1382 = vmatprep.subr.mxu0 0.0
    %1383 = vmatpush1.msra.mxu0 0.0
    %1384 = vmatprep.subr.mxu0 0.0
    %1385 = vmatpush1.msra.mxu0 0.0
    %1386 = vmatprep.subr.mxu0 0.0
    %1387 = vmatpush1.msra.mxu0 0.0
    %1388 = vmatprep.subr.mxu0 0.0
    %1389 = vmatpush1.msra.mxu0 0.0
    %1390 = vmatprep.subr.mxu0 0.0
    %1391 = vmatpush1.msra.mxu0 0.0
    %1392 = vmatprep.subr.mxu0 0.0
    %1393 = vmatpush1.msra.mxu0 0.0
    %1394 = vmatprep.subr.mxu0 0.0
    %1395 = vmatpush1.msra.mxu0 0.0
    %1396 = vmatprep.subr.mxu0 0.0
    %1397 = vmatpush1.msra.mxu0 0.0
    %1398 = vmatprep.subr.mxu0 0.0
    %1399 = vmatpush1.msra.mxu0 0.0
    %1400 = vmatprep.subr.mxu0 0.0
    %1401 = vmatpush1.msra.mxu0 0.0
    %1402 = vmatprep.subr.mxu0 0.0
    %1403 = vmatpush1.msra.mxu0 0.0
    %1404 = vmatprep.subr.mxu0 0.0
    %1405 = vmatpush1.msra.mxu0 0.0
    %1406 = vmatprep.subr.mxu0 0.0
    %1407 = vmatpush1.msra.mxu0 0.0
    %1408 = vmatprep.subr.mxu0 0.0
    %1409 = vmatpush1.msra.mxu0 0.0
    %1410 = vmatprep.subr.mxu0 0.0
    %1411 = vmatpush1.msra.mxu0 0.0
    %1412 = vmatprep.subr.mxu0 0.0
    %1413 = vmatpush1.msra.mxu0 0.0
    %1414 = vmatprep.subr.mxu0 0.0
    %1415 = vmatpush1.msra.mxu0 0.0
    %1416 = vmatprep.subr.mxu0 0.0
    %1417 = vmatpush1.msra.mxu0 0.0
    %1418 = vmatprep.subr.mxu0 0.0
    %1419 = vmatpush1.msra.mxu0 0.0
    %1420 = vmatprep.subr.mxu0 0.0
    %1421 = vmatpush1.msra.mxu0 0.0
    %1422 = vmatprep.subr.mxu0 0.0
    %1423 = vmatpush1.msra.mxu0 0.0
    %1424 = vmatprep.mubr.f32.mxu0 0.0
    %1425 = vmatmul.mubr.f32.gmra.mrb[0].mxu0 %v1345
    %v1426 = vpop.f32.mrb[0].mxu0
    %v1427 = vadd.f32 %v1320, %v1426
    %v1428 = vpop.f32.mrb[0].mxu0
    %v1429 = vadd.f32 %v1322, %v1428
    %1430 = vmatprep.mubr.f32.mxu0 0.0
    %1431 = vmatmul.mubr.f32.gmra.mrb[0].mxu0 %v1348
    %v1432 = vpop.f32.mrb[0].mxu0
    %v1433 = vadd.f32 %v1326, %v1432
    %v1434 = vpop.f32.mrb[0].mxu0
    %v1435 = vadd.f32 %v1328, %v1434
    %1436 = vmatprep.mubr.f32.mxu0 0.0
    %1437 = vmatmul.mubr.f32.gmra.mrb[0].mxu0 %v1351
    %v1438 = vpop.f32.mrb[0].mxu0
    %v1439 = vadd.f32 %v1332, %v1438
    %v1440 = vpop.f32.mrb[0].mxu0
    %v1441 = vadd.f32 %v1334, %v1440
    %1442 = vmatprep.mubr.f32.mxu0 0.0
    %1443 = vmatmul.mubr.f32.gmra.mrb[0].mxu0 %v1354
    %v1444 = vpop.f32.mrb[0].mxu0
    %v1445 = vadd.f32 %v1338, %v1444
    %v1446 = vpop.f32.mrb[0].mxu0
    %v1447 = vadd.f32 %v1340, %v1446
    %1448 = vdwg.mxu0
    %v1449 = vadd.f32 %v1028, %v1427
    %v1450 = vadd.f32 %v1029, %v1429
    %v1451 = vadd.f32 %v1030, %v1433
    %v1452 = vadd.f32 %v1031, %v1435
    %v1453 = vadd.f32 %v1032, %v1439
    %v1454 = vadd.f32 %v1033, %v1441
    %v1455 = vadd.f32 %v1034, %v1445
    %v1456 = vadd.f32 %v1035, %v1447
    %v1457 = vld [vmem:[%s6] sm:$0x3]
    %v1459 = vlaneseq
    %v1460 = vshrl.u32 %v1459, 7
    %v1461 = vsub.s32 0, %v1460
    %v1462 = vrot.slane %v1457, %v1461
    %v1463 = vlaneseq
    %v1464 = vshrl.u32 %v1463, 7
    %v1465 = vsub.s32 1, %v1464
    %v1466 = vrot.slane %v1457, %v1465
    %v1469 = vadd.f32 %v1449, %v1462
    %v1470 = vadd.f32 %v1450, %v1466
    %v1471 = vadd.f32 %v1451, %v1462
    %v1472 = vadd.f32 %v1452, %v1466
    %v1473 = vadd.f32 %v1453, %v1462
    %v1474 = vadd.f32 %v1454, %v1466
    %v1475 = vadd.f32 %v1455, %v1462
    %v1476 = vadd.f32 %v1456, %v1466
    %v1477 = vxor.u32 %v1469, 2147483648
    %v1478 = vxor.u32 %v1470, 2147483648
    %v1479 = vxor.u32 %v1471, 2147483648
    %v1480 = vxor.u32 %v1472, 2147483648
    %v1481 = vxor.u32 %v1473, 2147483648
    %v1482 = vxor.u32 %v1474, 2147483648
    %v1483 = vxor.u32 %v1475, 2147483648
    %v1484 = vxor.u32 %v1476, 2147483648
    %v1485 = vmul.f32 %v1477, 1.442695
    %v1486 = vpow.pop %v1485
    %v1487 = vmul.f32 %v1478, 1.442695
    %v1488 = vpow.pop %v1487
    %v1489 = vmul.f32 %v1479, 1.442695
    %v1490 = vpow.pop %v1489
    %v1491 = vmul.f32 %v1480, 1.442695
    %v1492 = vpow.pop %v1491
    %v1493 = vmul.f32 %v1481, 1.442695
    %v1494 = vpow.pop %v1493
    %v1495 = vmul.f32 %v1482, 1.442695
    %v1496 = vpow.pop %v1495
    %v1497 = vmul.f32 %v1483, 1.442695
    %v1498 = vpow.pop %v1497
    %v1499 = vmul.f32 %v1484, 1.442695
    %v1500 = vpow.pop %v1499
    %v1501 = vadd.f32 %v1486, 1.0
    %v1502 = vadd.f32 %v1488, 1.0
    %v1503 = vadd.f32 %v1490, 1.0
    %v1504 = vadd.f32 %v1492, 1.0
    %v1505 = vadd.f32 %v1494, 1.0
    %v1506 = vadd.f32 %v1496, 1.0
    %v1507 = vadd.f32 %v1498, 1.0
    %v1508 = vadd.f32 %v1500, 1.0
    %v1509 = vrcp.pop %v1501
    %v1510 = vmul.f32 1.0, %v1509
    %v1511 = vrcp.pop %v1502
    %v1512 = vmul.f32 1.0, %v1511
    %v1513 = vrcp.pop %v1503
    %v1514 = vmul.f32 1.0, %v1513
    %v1515 = vrcp.pop %v1504
    %v1516 = vmul.f32 1.0, %v1515
    %v1517 = vrcp.pop %v1505
    %v1518 = vmul.f32 1.0, %v1517
    %v1519 = vrcp.pop %v1506
    %v1520 = vmul.f32 1.0, %v1519
    %v1521 = vrcp.pop %v1507
    %v1522 = vmul.f32 1.0, %v1521
    %v1523 = vrcp.pop %v1508
    %v1524 = vmul.f32 1.0, %v1523
    %v1525 = vmul.f32 %v1512, %v197
    %v1526 = vmul.f32 %v1516, %v198
    %v1527 = vmul.f32 %v1520, %v199
    %v1528 = vmul.f32 %v1524, %v200
    %1529 = vmatprep.subr.mxu0 0.0
    %1530 = vmatpush1.msra.mxu0 %v1525
    %1531 = vmatprep.subr.mxu0 0.0
    %1532 = vmatpush1.msra.mxu0 %v1526
    %1533 = vmatprep.subr.mxu0 0.0
    %1534 = vmatpush1.msra.mxu0 %v1527
    %1535 = vmatprep.subr.mxu0 0.0
    %1536 = vmatpush1.msra.mxu0 %v1528
    %1537 = vmatprep.subr.mxu0 0.0
    %1538 = vmatpush1.msra.mxu0 0.0
    %1539 = vmatprep.subr.mxu0 0.0
    %1540 = vmatpush1.msra.mxu0 0.0
    %1541 = vmatprep.subr.mxu0 0.0
    %1542 = vmatpush1.msra.mxu0 0.0
    %1543 = vmatprep.subr.mxu0 0.0
    %1544 = vmatpush1.msra.mxu0 0.0
    %1545 = vmatprep.subr.mxu0 0.0
    %1546 = vmatpush1.msra.mxu0 0.0
    %1547 = vmatprep.subr.mxu0 0.0
    %1548 = vmatpush1.msra.mxu0 0.0
    %1549 = vmatprep.subr.mxu0 0.0
    %1550 = vmatpush1.msra.mxu0 0.0
    %1551 = vmatprep.subr.mxu0 0.0
    %1552 = vmatpush1.msra.mxu0 0.0
    %1553 = vmatprep.subr.mxu0 0.0
    %1554 = vmatpush1.msra.mxu0 0.0
    %1555 = vmatprep.subr.mxu0 0.0
    %1556 = vmatpush1.msra.mxu0 0.0
    %1557 = vmatprep.subr.mxu0 0.0
    %1558 = vmatpush1.msra.mxu0 0.0
    %1559 = vmatprep.subr.mxu0 0.0
    %1560 = vmatpush1.msra.mxu0 0.0
    %1561 = vmatprep.subr.mxu0 0.0
    %1562 = vmatpush1.msra.mxu0 0.0
    %1563 = vmatprep.subr.mxu0 0.0
    %1564 = vmatpush1.msra.mxu0 0.0
    %1565 = vmatprep.subr.mxu0 0.0
    %1566 = vmatpush1.msra.mxu0 0.0
    %1567 = vmatprep.subr.mxu0 0.0
    %1568 = vmatpush1.msra.mxu0 0.0
    %1569 = vmatprep.subr.mxu0 0.0
    %1570 = vmatpush1.msra.mxu0 0.0
    %1571 = vmatprep.subr.mxu0 0.0
    %1572 = vmatpush1.msra.mxu0 0.0
    %1573 = vmatprep.subr.mxu0 0.0
    %1574 = vmatpush1.msra.mxu0 0.0
    %1575 = vmatprep.subr.mxu0 0.0
    %1576 = vmatpush1.msra.mxu0 0.0
    %1577 = vmatprep.subr.mxu0 0.0
    %1578 = vmatpush1.msra.mxu0 0.0
    %1579 = vmatprep.subr.mxu0 0.0
    %1580 = vmatpush1.msra.mxu0 0.0
    %1581 = vmatprep.subr.mxu0 0.0
    %1582 = vmatpush1.msra.mxu0 0.0
    %1583 = vmatprep.subr.mxu0 0.0
    %1584 = vmatpush1.msra.mxu0 0.0
    %1585 = vmatprep.subr.mxu0 0.0
    %1586 = vmatpush1.msra.mxu0 0.0
    %1587 = vmatprep.subr.mxu0 0.0
    %1588 = vmatpush1.msra.mxu0 0.0
    %1589 = vmatprep.subr.mxu0 0.0
    %1590 = vmatpush1.msra.mxu0 0.0
    %1591 = vmatprep.subr.mxu0 0.0
    %1592 = vmatpush1.msra.mxu0 0.0
    %1593 = vmatprep.mubr.f32.mxu0 0.0
    %1594 = vmatmul.mubr.f32.gmra.mrb[0].mxu0 %v203
    %v1595 = vpop.f32.mrb[0].mxu0
    %v1596 = vadd.f32 0.0, %v1595
    %v1597 = vpop.f32.mrb[0].mxu0
    %1598 = vmatprep.mubr.f32.mxu0 0.0
    %1599 = vmatmul.mubr.f32.gmra.mrb[0].mxu0 %v206
    %v1600 = vpop.f32.mrb[0].mxu0
    %v1601 = vadd.f32 0.0, %v1600
    %v1602 = vpop.f32.mrb[0].mxu0
    %1603 = vmatprep.mubr.f32.mxu0 0.0
    %1604 = vmatmul.mubr.f32.gmra.mrb[0].mxu0 %v209
    %v1605 = vpop.f32.mrb[0].mxu0
    %v1606 = vadd.f32 0.0, %v1605
    %v1607 = vpop.f32.mrb[0].mxu0
    %1608 = vmatprep.mubr.f32.mxu0 0.0
    %1609 = vmatmul.mubr.f32.gmra.mrb[0].mxu0 %v212
    %v1610 = vpop.f32.mrb[0].mxu0
    %v1611 = vadd.f32 0.0, %v1610
    %v1612 = vpop.f32.mrb[0].mxu0
    %1613 = vdwg.mxu0
    %v1614 = vld [vmem:[%s7] sm:$0xf]
    %v1615 = vld [vmem:[#allocation10] sm:$0xff]
    %v1616 = vld [vmem:[#allocation10 + $0x8] sm:$0xff]
    %v1617 = vld [vmem:[#allocation10 + $0x10] sm:$0xff]
    %v1618 = vld [vmem:[#allocation10 + $0x18] sm:$0xff]
    %v1619 = vld [vmem:[#allocation10 + $0x20] sm:$0xff]
    %v1620 = vld [vmem:[#allocation10 + $0x28] sm:$0xff]
    %v1621 = vld [vmem:[#allocation10 + $0x30] sm:$0xff]
    %v1622 = vld [vmem:[#allocation10 + $0x38] sm:$0xff]
    %v1623 = vld [vmem:[#allocation10 + $0x40] sm:$0xff]
    %v1624 = vld [vmem:[#allocation10 + $0x48] sm:$0xff]
    %v1625 = vld [vmem:[#allocation10 + $0x50] sm:$0xff]
    %v1626 = vld [vmem:[#allocation10 + $0x58] sm:$0xff]
    %v1627 = vld [vmem:[#allocation10 + $0x60] sm:$0xff]
    %v1628 = vld [vmem:[#allocation10 + $0x68] sm:$0xff]
    %v1629 = vld [vmem:[#allocation10 + $0x70] sm:$0xff]
    %v1630 = vld [vmem:[#allocation10 + $0x78] sm:$0xff]
    %1631 = vmatprep.subr.mxu0 0.0
    %1632 = vmatpush1.msra.mxu0 %v1615
    %1633 = vmatprep.subr.mxu0 0.0
    %1634 = vmatpush1.msra.mxu0 %v1616
    %1635 = vmatprep.subr.mxu0 0.0
    %1636 = vmatpush1.msra.mxu0 %v1617
    %1637 = vmatprep.subr.mxu0 0.0
    %1638 = vmatpush1.msra.mxu0 %v1618
    %1639 = vmatprep.subr.mxu0 0.0
    %1640 = vmatpush1.msra.mxu0 %v1619
    %1641 = vmatprep.subr.mxu0 0.0
    %1642 = vmatpush1.msra.mxu0 %v1620
    %1643 = vmatprep.subr.mxu0 0.0
    %1644 = vmatpush1.msra.mxu0 %v1621
    %1645 = vmatprep.subr.mxu0 0.0
    %1646 = vmatpush1.msra.mxu0 %v1622
    %1647 = vmatprep.subr.mxu0 0.0
    %1648 = vmatpush1.msra.mxu0 %v1623
    %1649 = vmatprep.subr.mxu0 0.0
    %1650 = vmatpush1.msra.mxu0 %v1624
    %1651 = vmatprep.subr.mxu0 0.0
    %1652 = vmatpush1.msra.mxu0 %v1625
    %1653 = vmatprep.subr.mxu0 0.0
    %1654 = vmatpush1.msra.mxu0 %v1626
    %1655 = vmatprep.subr.mxu0 0.0
    %1656 = vmatpush1.msra.mxu0 %v1627
    %1657 = vmatprep.subr.mxu0 0.0
    %1658 = vmatpush1.msra.mxu0 %v1628
    %1659 = vmatprep.subr.mxu0 0.0
    %1660 = vmatpush1.msra.mxu0 %v1629
    %1661 = vmatprep.subr.mxu0 0.0
    %1662 = vmatpush1.msra.mxu0 %v1630
    %1663 = vmatprep.subr.mxu0 0.0
    %1664 = vmatpush1.msra.mxu0 0.0
    %1665 = vmatprep.subr.mxu0 0.0
    %1666 = vmatpush1.msra.mxu0 0.0
    %1667 = vmatprep.subr.mxu0 0.0
    %1668 = vmatpush1.msra.mxu0 0.0
    %1669 = vmatprep.subr.mxu0 0.0
    %1670 = vmatpush1.msra.mxu0 0.0
    %1671 = vmatprep.subr.mxu0 0.0
    %1672 = vmatpush1.msra.mxu0 0.0
    %1673 = vmatprep.subr.mxu0 0.0
    %1674 = vmatpush1.msra.mxu0 0.0
    %1675 = vmatprep.subr.mxu0 0.0
    %1676 = vmatpush1.msra.mxu0 0.0
    %1677 = vmatprep.subr.mxu0 0.0
    %1678 = vmatpush1.msra.mxu0 0.0
    %1679 = vmatprep.subr.mxu0 0.0
    %1680 = vmatpush1.msra.mxu0 0.0
    %1681 = vmatprep.subr.mxu0 0.0
    %1682 = vmatpush1.msra.mxu0 0.0
    %1683 = vmatprep.subr.mxu0 0.0
    %1684 = vmatpush1.msra.mxu0 0.0
    %1685 = vmatprep.subr.mxu0 0.0
    %1686 = vmatpush1.msra.mxu0 0.0
    %1687 = vmatprep.subr.mxu0 0.0
    %1688 = vmatpush1.msra.mxu0 0.0
    %1689 = vmatprep.subr.mxu0 0.0
    %1690 = vmatpush1.msra.mxu0 0.0
    %1691 = vmatprep.subr.mxu0 0.0
    %1692 = vmatpush1.msra.mxu0 0.0
    %1693 = vmatprep.subr.mxu0 0.0
    %1694 = vmatpush1.msra.mxu0 0.0
    %1695 = vmatprep.mubr.f32.mxu0 0.0
    %1696 = vmatmul.mubr.f32.gmra.mrb[0].mxu0 %v1596
    %v1697 = vpop.f32.mrb[0].mxu0
    %v1698 = vadd.f32 0.0, %v1697
    %v1699 = vpop.f32.mrb[0].mxu0
    %1700 = vmatprep.mubr.f32.mxu0 0.0
    %1701 = vmatmul.mubr.f32.gmra.mrb[0].mxu0 %v1601
    %v1702 = vpop.f32.mrb[0].mxu0
    %v1703 = vadd.f32 0.0, %v1702
    %v1704 = vpop.f32.mrb[0].mxu0
    %1705 = vmatprep.mubr.f32.mxu0 0.0
    %1706 = vmatmul.mubr.f32.gmra.mrb[0].mxu0 %v1606
    %v1707 = vpop.f32.mrb[0].mxu0
    %v1708 = vadd.f32 0.0, %v1707
    %v1709 = vpop.f32.mrb[0].mxu0
    %1710 = vmatprep.mubr.f32.mxu0 0.0
    %1711 = vmatmul.mubr.f32.gmra.mrb[0].mxu0 %v1611
    %v1712 = vpop.f32.mrb[0].mxu0
    %v1713 = vadd.f32 0.0, %v1712
    %v1714 = vpop.f32.mrb[0].mxu0
    %1715 = vdwg.mxu0
    %v1717 = vsel %vm521, %v1614, 0
    %1719 = vmatprep.subr.mxu0 0.0
    %1720 = vmatpush1.msra.mxu0 %v1717
    %1721 = vmatprep.subr.mxu0 0.0
    %1722 = vmatpush1.msra.mxu0 0.0
    %1723 = vmatprep.subr.mxu0 0.0
    %1724 = vmatpush1.msra.mxu0 0.0
    %1725 = vmatprep.subr.mxu0 0.0
    %1726 = vmatpush1.msra.mxu0 0.0
    %1727 = vmatprep.subr.mxu0 0.0
    %1728 = vmatpush1.msra.mxu0 0.0
    %1729 = vmatprep.subr.mxu0 0.0
    %1730 = vmatpush1.msra.mxu0 0.0
    %1731 = vmatprep.subr.mxu0 0.0
    %1732 = vmatpush1.msra.mxu0 0.0
    %1733 = vmatprep.subr.mxu0 0.0
    %1734 = vmatpush1.msra.mxu0 0.0
    %1735 = vmatprep.subr.mxu0 0.0
    %1736 = vmatpush1.msra.mxu0 0.0
    %1737 = vmatprep.subr.mxu0 0.0
    %1738 = vmatpush1.msra.mxu0 0.0
    %1739 = vmatprep.subr.mxu0 0.0
    %1740 = vmatpush1.msra.mxu0 0.0
    %1741 = vmatprep.subr.mxu0 0.0
    %1742 = vmatpush1.msra.mxu0 0.0
    %1743 = vmatprep.subr.mxu0 0.0
    %1744 = vmatpush1.msra.mxu0 0.0
    %1745 = vmatprep.subr.mxu0 0.0
    %1746 = vmatpush1.msra.mxu0 0.0
    %1747 = vmatprep.subr.mxu0 0.0
    %1748 = vmatpush1.msra.mxu0 0.0
    %1749 = vmatprep.subr.mxu0 0.0
    %1750 = vmatpush1.msra.mxu0 0.0
    %1751 = vmatprep.subr.mxu0 0.0
    %1752 = vmatpush1.msra.mxu0 0.0
    %1753 = vmatprep.subr.mxu0 0.0
    %1754 = vmatpush1.msra.mxu0 0.0
    %1755 = vmatprep.subr.mxu0 0.0
    %1756 = vmatpush1.msra.mxu0 0.0
    %1757 = vmatprep.subr.mxu0 0.0
    %1758 = vmatpush1.msra.mxu0 0.0
    %1759 = vmatprep.subr.mxu0 0.0
    %1760 = vmatpush1.msra.mxu0 0.0
    %1761 = vmatprep.subr.mxu0 0.0
    %1762 = vmatpush1.msra.mxu0 0.0
    %1763 = vmatprep.subr.mxu0 0.0
    %1764 = vmatpush1.msra.mxu0 0.0
    %1765 = vmatprep.subr.mxu0 0.0
    %1766 = vmatpush1.msra.mxu0 0.0
    %1767 = vmatprep.subr.mxu0 0.0
    %1768 = vmatpush1.msra.mxu0 0.0
    %1769 = vmatprep.subr.mxu0 0.0
    %1770 = vmatpush1.msra.mxu0 0.0
    %1771 = vmatprep.subr.mxu0 0.0
    %1772 = vmatpush1.msra.mxu0 0.0
    %1773 = vmatprep.subr.mxu0 0.0
    %1774 = vmatpush1.msra.mxu0 0.0
    %1775 = vmatprep.subr.mxu0 0.0
    %1776 = vmatpush1.msra.mxu0 0.0
    %1777 = vmatprep.subr.mxu0 0.0
    %1778 = vmatpush1.msra.mxu0 0.0
    %1779 = vmatprep.subr.mxu0 0.0
    %1780 = vmatpush1.msra.mxu0 0.0
    %1781 = vmatprep.subr.mxu0 0.0
    %1782 = vmatpush1.msra.mxu0 0.0
    %1783 = vmatprep.mubr.f32.mxu0 0.0
    %1784 = vmatmul.mubr.f32.gmra.mrb[0].mxu0 %v510
    %v1785 = vpop.f32.mrb[0].mxu0
    %v1786 = vadd.f32 %v1698, %v1785
    %v1787 = vpop.f32.mrb[0].mxu0
    %1788 = vmatprep.mubr.f32.mxu0 0.0
    %1789 = vmatmul.mubr.f32.gmra.mrb[0].mxu0 %v513
    %v1790 = vpop.f32.mrb[0].mxu0
    %v1791 = vadd.f32 %v1703, %v1790
    %v1792 = vpop.f32.mrb[0].mxu0
    %1793 = vmatprep.mubr.f32.mxu0 0.0
    %1794 = vmatmul.mubr.f32.gmra.mrb[0].mxu0 %v516
    %v1795 = vpop.f32.mrb[0].mxu0
    %v1796 = vadd.f32 %v1708, %v1795
    %v1797 = vpop.f32.mrb[0].mxu0
    %1798 = vmatprep.mubr.f32.mxu0 0.0
    %1799 = vmatmul.mubr.f32.gmra.mrb[0].mxu0 %v519
    %v1800 = vpop.f32.mrb[0].mxu0
    %v1801 = vadd.f32 %v1713, %v1800
    %v1802 = vpop.f32.mrb[0].mxu0
    %1803 = vdwg.mxu0
    %1804 = vmatprep.subr.mxu0 0.0
    %1805 = vmatpush1.msra.mxu0 %v1525
    %1806 = vmatprep.subr.mxu0 0.0
    %1807 = vmatpush1.msra.mxu0 %v1526
    %1808 = vmatprep.subr.mxu0 0.0
    %1809 = vmatpush1.msra.mxu0 %v1527
    %1810 = vmatprep.subr.mxu0 0.0
    %1811 = vmatpush1.msra.mxu0 %v1528
    %1812 = vmatprep.subr.mxu0 0.0
    %1813 = vmatpush1.msra.mxu0 0.0
    %1814 = vmatprep.subr.mxu0 0.0
    %1815 = vmatpush1.msra.mxu0 0.0
    %1816 = vmatprep.subr.mxu0 0.0
    %1817 = vmatpush1.msra.mxu0 0.0
    %1818 = vmatprep.subr.mxu0 0.0
    %1819 = vmatpush1.msra.mxu0 0.0
    %1820 = vmatprep.subr.mxu0 0.0
    %1821 = vmatpush1.msra.mxu0 0.0
    %1822 = vmatprep.subr.mxu0 0.0
    %1823 = vmatpush1.msra.mxu0 0.0
    %1824 = vmatprep.subr.mxu0 0.0
    %1825 = vmatpush1.msra.mxu0 0.0
    %1826 = vmatprep.subr.mxu0 0.0
    %1827 = vmatpush1.msra.mxu0 0.0
    %1828 = vmatprep.subr.mxu0 0.0
    %1829 = vmatpush1.msra.mxu0 0.0
    %1830 = vmatprep.subr.mxu0 0.0
    %1831 = vmatpush1.msra.mxu0 0.0
    %1832 = vmatprep.subr.mxu0 0.0
    %1833 = vmatpush1.msra.mxu0 0.0
    %1834 = vmatprep.subr.mxu0 0.0
    %1835 = vmatpush1.msra.mxu0 0.0
    %1836 = vmatprep.subr.mxu0 0.0
    %1837 = vmatpush1.msra.mxu0 0.0
    %1838 = vmatprep.subr.mxu0 0.0
    %1839 = vmatpush1.msra.mxu0 0.0
    %1840 = vmatprep.subr.mxu0 0.0
    %1841 = vmatpush1.msra.mxu0 0.0
    %1842 = vmatprep.subr.mxu0 0.0
    %1843 = vmatpush1.msra.mxu0 0.0
    %1844 = vmatprep.subr.mxu0 0.0
    %1845 = vmatpush1.msra.mxu0 0.0
    %1846 = vmatprep.subr.mxu0 0.0
    %1847 = vmatpush1.msra.mxu0 0.0
    %1848 = vmatprep.subr.mxu0 0.0
    %1849 = vmatpush1.msra.mxu0 0.0
    %1850 = vmatprep.subr.mxu0 0.0
    %1851 = vmatpush1.msra.mxu0 0.0
    %1852 = vmatprep.subr.mxu0 0.0
    %1853 = vmatpush1.msra.mxu0 0.0
    %1854 = vmatprep.subr.mxu0 0.0
    %1855 = vmatpush1.msra.mxu0 0.0
    %1856 = vmatprep.subr.mxu0 0.0
    %1857 = vmatpush1.msra.mxu0 0.0
    %1858 = vmatprep.subr.mxu0 0.0
    %1859 = vmatpush1.msra.mxu0 0.0
    %1860 = vmatprep.subr.mxu0 0.0
    %1861 = vmatpush1.msra.mxu0 0.0
    %1862 = vmatprep.subr.mxu0 0.0
    %1863 = vmatpush1.msra.mxu0 0.0
    %1864 = vmatprep.subr.mxu0 0.0
    %1865 = vmatpush1.msra.mxu0 0.0
    %1866 = vmatprep.subr.mxu0 0.0
    %1867 = vmatpush1.msra.mxu0 0.0
    %1868 = vmatprep.mubr.f32.mxu0 0.0
    %1869 = vmatmul.mubr.f32.gmra.mrb[0].mxu0 %v616
    %v1870 = vpop.f32.mrb[0].mxu0
    %v1871 = vadd.f32 0.0, %v1870
    %v1872 = vpop.f32.mrb[0].mxu0
    %1873 = vmatprep.mubr.f32.mxu0 0.0
    %1874 = vmatmul.mubr.f32.gmra.mrb[0].mxu0 %v619
    %v1875 = vpop.f32.mrb[0].mxu0
    %v1876 = vadd.f32 0.0, %v1875
    %v1877 = vpop.f32.mrb[0].mxu0
    %1878 = vmatprep.mubr.f32.mxu0 0.0
    %1879 = vmatmul.mubr.f32.gmra.mrb[0].mxu0 %v622
    %v1880 = vpop.f32.mrb[0].mxu0
    %v1881 = vadd.f32 0.0, %v1880
    %v1882 = vpop.f32.mrb[0].mxu0
    %1883 = vmatprep.mubr.f32.mxu0 0.0
    %1884 = vmatmul.mubr.f32.gmra.mrb[0].mxu0 %v625
    %v1885 = vpop.f32.mrb[0].mxu0
    %v1886 = vadd.f32 0.0, %v1885
    %v1887 = vpop.f32.mrb[0].mxu0
    %1888 = vdwg.mxu0
    %s1889 = scalar_lea.vmem %s7, 4
    %v1890 = vld [vmem:[%s1889] sm:$0xf]
    %s1891 = scalar_lea.vmem [#allocation10], 128
    %v1892 = vld [vmem:[%s1891] sm:$0xff]
    %v1893 = vld [vmem:[%s1891 + $0x8] sm:$0xff]
    %v1894 = vld [vmem:[%s1891 + $0x10] sm:$0xff]
    %v1895 = vld [vmem:[%s1891 + $0x18] sm:$0xff]
    %v1896 = vld [vmem:[%s1891 + $0x20] sm:$0xff]
    %v1897 = vld [vmem:[%s1891 + $0x28] sm:$0xff]
    %v1898 = vld [vmem:[%s1891 + $0x30] sm:$0xff]
    %v1899 = vld [vmem:[%s1891 + $0x38] sm:$0xff]
    %v1900 = vld [vmem:[%s1891 + $0x40] sm:$0xff]
    %v1901 = vld [vmem:[%s1891 + $0x48] sm:$0xff]
    %v1902 = vld [vmem:[%s1891 + $0x50] sm:$0xff]
    %v1903 = vld [vmem:[%s1891 + $0x58] sm:$0xff]
    %v1904 = vld [vmem:[%s1891 + $0x60] sm:$0xff]
    %v1905 = vld [vmem:[%s1891 + $0x68] sm:$0xff]
    %v1906 = vld [vmem:[%s1891 + $0x70] sm:$0xff]
    %v1907 = vld [vmem:[%s1891 + $0x78] sm:$0xff]
    %1908 = vmatprep.subr.mxu0 0.0
    %1909 = vmatpush1.msra.mxu0 %v1892
    %1910 = vmatprep.subr.mxu0 0.0
    %1911 = vmatpush1.msra.mxu0 %v1893
    %1912 = vmatprep.subr.mxu0 0.0
    %1913 = vmatpush1.msra.mxu0 %v1894
    %1914 = vmatprep.subr.mxu0 0.0
    %1915 = vmatpush1.msra.mxu0 %v1895
    %1916 = vmatprep.subr.mxu0 0.0
    %1917 = vmatpush1.msra.mxu0 %v1896
    %1918 = vmatprep.subr.mxu0 0.0
    %1919 = vmatpush1.msra.mxu0 %v1897
    %1920 = vmatprep.subr.mxu0 0.0
    %1921 = vmatpush1.msra.mxu0 %v1898
    %1922 = vmatprep.subr.mxu0 0.0
    %1923 = vmatpush1.msra.mxu0 %v1899
    %1924 = vmatprep.subr.mxu0 0.0
    %1925 = vmatpush1.msra.mxu0 %v1900
    %1926 = vmatprep.subr.mxu0 0.0
    %1927 = vmatpush1.msra.mxu0 %v1901
    %1928 = vmatprep.subr.mxu0 0.0
    %1929 = vmatpush1.msra.mxu0 %v1902
    %1930 = vmatprep.subr.mxu0 0.0
    %1931 = vmatpush1.msra.mxu0 %v1903
    %1932 = vmatprep.subr.mxu0 0.0
    %1933 = vmatpush1.msra.mxu0 %v1904
    %1934 = vmatprep.subr.mxu0 0.0
    %1935 = vmatpush1.msra.mxu0 %v1905
    %1936 = vmatprep.subr.mxu0 0.0
    %1937 = vmatpush1.msra.mxu0 %v1906
    %1938 = vmatprep.subr.mxu0 0.0
    %1939 = vmatpush1.msra.mxu0 %v1907
    %1940 = vmatprep.subr.mxu0 0.0
    %1941 = vmatpush1.msra.mxu0 0.0
    %1942 = vmatprep.subr.mxu0 0.0
    %1943 = vmatpush1.msra.mxu0 0.0
    %1944 = vmatprep.subr.mxu0 0.0
    %1945 = vmatpush1.msra.mxu0 0.0
    %1946 = vmatprep.subr.mxu0 0.0
    %1947 = vmatpush1.msra.mxu0 0.0
    %1948 = vmatprep.subr.mxu0 0.0
    %1949 = vmatpush1.msra.mxu0 0.0
    %1950 = vmatprep.subr.mxu0 0.0
    %1951 = vmatpush1.msra.mxu0 0.0
    %1952 = vmatprep.subr.mxu0 0.0
    %1953 = vmatpush1.msra.mxu0 0.0
    %1954 = vmatprep.subr.mxu0 0.0
    %1955 = vmatpush1.msra.mxu0 0.0
    %1956 = vmatprep.subr.mxu0 0.0
    %1957 = vmatpush1.msra.mxu0 0.0
    %1958 = vmatprep.subr.mxu0 0.0
    %1959 = vmatpush1.msra.mxu0 0.0
    %1960 = vmatprep.subr.mxu0 0.0
    %1961 = vmatpush1.msra.mxu0 0.0
    %1962 = vmatprep.subr.mxu0 0.0
    %1963 = vmatpush1.msra.mxu0 0.0
    %1964 = vmatprep.subr.mxu0 0.0
    %1965 = vmatpush1.msra.mxu0 0.0
    %1966 = vmatprep.subr.mxu0 0.0
    %1967 = vmatpush1.msra.mxu0 0.0
    %1968 = vmatprep.subr.mxu0 0.0
    %1969 = vmatpush1.msra.mxu0 0.0
    %1970 = vmatprep.subr.mxu0 0.0
    %1971 = vmatpush1.msra.mxu0 0.0
    %1972 = vmatprep.mubr.f32.mxu0 0.0
    %1973 = vmatmul.mubr.f32.gmra.mrb[0].mxu0 %v1871
    %v1974 = vpop.f32.mrb[0].mxu0
    %v1975 = vadd.f32 0.0, %v1974
    %v1976 = vpop.f32.mrb[0].mxu0
    %1977 = vmatprep.mubr.f32.mxu0 0.0
    %1978 = vmatmul.mubr.f32.gmra.mrb[0].mxu0 %v1876
    %v1979 = vpop.f32.mrb[0].mxu0
    %v1980 = vadd.f32 0.0, %v1979
    %v1981 = vpop.f32.mrb[0].mxu0
    %1982 = vmatprep.mubr.f32.mxu0 0.0
    %1983 = vmatmul.mubr.f32.gmra.mrb[0].mxu0 %v1881
    %v1984 = vpop.f32.mrb[0].mxu0
    %v1985 = vadd.f32 0.0, %v1984
    %v1986 = vpop.f32.mrb[0].mxu0
    %1987 = vmatprep.mubr.f32.mxu0 0.0
    %1988 = vmatmul.mubr.f32.gmra.mrb[0].mxu0 %v1886
    %v1989 = vpop.f32.mrb[0].mxu0
    %v1990 = vadd.f32 0.0, %v1989
    %v1991 = vpop.f32.mrb[0].mxu0
    %1992 = vdwg.mxu0
    %v1994 = vsel %vm521, %v1890, 0
    %1996 = vmatprep.subr.mxu0 0.0
    %1997 = vmatpush1.msra.mxu0 %v1994
    %1998 = vmatprep.subr.mxu0 0.0
    %1999 = vmatpush1.msra.mxu0 0.0
    %2000 = vmatprep.subr.mxu0 0.0
    %2001 = vmatpush1.msra.mxu0 0.0
    %2002 = vmatprep.subr.mxu0 0.0
    %2003 = vmatpush1.msra.mxu0 0.0
    %2004 = vmatprep.subr.mxu0 0.0
    %2005 = vmatpush1.msra.mxu0 0.0
    %2006 = vmatprep.subr.mxu0 0.0
    %2007 = vmatpush1.msra.mxu0 0.0
    %2008 = vmatprep.subr.mxu0 0.0
    %2009 = vmatpush1.msra.mxu0 0.0
    %2010 = vmatprep.subr.mxu0 0.0
    %2011 = vmatpush1.msra.mxu0 0.0
    %2012 = vmatprep.subr.mxu0 0.0
    %2013 = vmatpush1.msra.mxu0 0.0
    %2014 = vmatprep.subr.mxu0 0.0
    %2015 = vmatpush1.msra.mxu0 0.0
    %2016 = vmatprep.subr.mxu0 0.0
    %2017 = vmatpush1.msra.mxu0 0.0
    %2018 = vmatprep.subr.mxu0 0.0
    %2019 = vmatpush1.msra.mxu0 0.0
    %2020 = vmatprep.subr.mxu0 0.0
    %2021 = vmatpush1.msra.mxu0 0.0
    %2022 = vmatprep.subr.mxu0 0.0
    %2023 = vmatpush1.msra.mxu0 0.0
    %2024 = vmatprep.subr.mxu0 0.0
    %2025 = vmatpush1.msra.mxu0 0.0
    %2026 = vmatprep.subr.mxu0 0.0
    %2027 = vmatpush1.msra.mxu0 0.0
    %2028 = vmatprep.subr.mxu0 0.0
    %2029 = vmatpush1.msra.mxu0 0.0
    %2030 = vmatprep.subr.mxu0 0.0
    %2031 = vmatpush1.msra.mxu0 0.0
    %2032 = vmatprep.subr.mxu0 0.0
    %2033 = vmatpush1.msra.mxu0 0.0
    %2034 = vmatprep.subr.mxu0 0.0
    %2035 = vmatpush1.msra.mxu0 0.0
    %2036 = vmatprep.subr.mxu0 0.0
    %2037 = vmatpush1.msra.mxu0 0.0
    %2038 = vmatprep.subr.mxu0 0.0
    %2039 = vmatpush1.msra.mxu0 0.0
    %2040 = vmatprep.subr.mxu0 0.0
    %2041 = vmatpush1.msra.mxu0 0.0
    %2042 = vmatprep.subr.mxu0 0.0
    %2043 = vmatpush1.msra.mxu0 0.0
    %2044 = vmatprep.subr.mxu0 0.0
    %2045 = vmatpush1.msra.mxu0 0.0
    %2046 = vmatprep.subr.mxu0 0.0
    %2047 = vmatpush1.msra.mxu0 0.0
    %2048 = vmatprep.subr.mxu0 0.0
    %2049 = vmatpush1.msra.mxu0 0.0
    %2050 = vmatprep.subr.mxu0 0.0
    %2051 = vmatpush1.msra.mxu0 0.0
    %2052 = vmatprep.subr.mxu0 0.0
    %2053 = vmatpush1.msra.mxu0 0.0
    %2054 = vmatprep.subr.mxu0 0.0
    %2055 = vmatpush1.msra.mxu0 0.0
    %2056 = vmatprep.subr.mxu0 0.0
    %2057 = vmatpush1.msra.mxu0 0.0
    %2058 = vmatprep.subr.mxu0 0.0
    %2059 = vmatpush1.msra.mxu0 0.0
    %2060 = vmatprep.mubr.f32.mxu0 0.0
    %2061 = vmatmul.mubr.f32.gmra.mrb[0].mxu0 %v924
    %v2062 = vpop.f32.mrb[0].mxu0
    %v2063 = vadd.f32 %v1975, %v2062
    %v2064 = vpop.f32.mrb[0].mxu0
    %2065 = vmatprep.mubr.f32.mxu0 0.0
    %2066 = vmatmul.mubr.f32.gmra.mrb[0].mxu0 %v927
    %v2067 = vpop.f32.mrb[0].mxu0
    %v2068 = vadd.f32 %v1980, %v2067
    %v2069 = vpop.f32.mrb[0].mxu0
    %2070 = vmatprep.mubr.f32.mxu0 0.0
    %2071 = vmatmul.mubr.f32.gmra.mrb[0].mxu0 %v930
    %v2072 = vpop.f32.mrb[0].mxu0
    %v2073 = vadd.f32 %v1985, %v2072
    %v2074 = vpop.f32.mrb[0].mxu0
    %2075 = vmatprep.mubr.f32.mxu0 0.0
    %2076 = vmatmul.mubr.f32.gmra.mrb[0].mxu0 %v933
    %v2077 = vpop.f32.mrb[0].mxu0
    %v2078 = vadd.f32 %v1990, %v2077
    %v2079 = vpop.f32.mrb[0].mxu0
    %2080 = vdwg.mxu0
    %v2081 = vadd.f32 %v1786, %v2063
    %v2082 = vadd.f32 %v1791, %v2068
    %v2083 = vadd.f32 %v1796, %v2073
    %v2084 = vadd.f32 %v1801, %v2078
    %2085 = vmatprep.subr.mxu0 0.0
    %2086 = vmatpush1.msra.mxu0 %v1525
    %2087 = vmatprep.subr.mxu0 0.0
    %2088 = vmatpush1.msra.mxu0 %v1526
    %2089 = vmatprep.subr.mxu0 0.0
    %2090 = vmatpush1.msra.mxu0 %v1527
    %2091 = vmatprep.subr.mxu0 0.0
    %2092 = vmatpush1.msra.mxu0 %v1528
    %2093 = vmatprep.subr.mxu0 0.0
    %2094 = vmatpush1.msra.mxu0 0.0
    %2095 = vmatprep.subr.mxu0 0.0
    %2096 = vmatpush1.msra.mxu0 0.0
    %2097 = vmatprep.subr.mxu0 0.0
    %2098 = vmatpush1.msra.mxu0 0.0
    %2099 = vmatprep.subr.mxu0 0.0
    %2100 = vmatpush1.msra.mxu0 0.0
    %2101 = vmatprep.subr.mxu0 0.0
    %2102 = vmatpush1.msra.mxu0 0.0
    %2103 = vmatprep.subr.mxu0 0.0
    %2104 = vmatpush1.msra.mxu0 0.0
    %2105 = vmatprep.subr.mxu0 0.0
    %2106 = vmatpush1.msra.mxu0 0.0
    %2107 = vmatprep.subr.mxu0 0.0
    %2108 = vmatpush1.msra.mxu0 0.0
    %2109 = vmatprep.subr.mxu0 0.0
    %2110 = vmatpush1.msra.mxu0 0.0
    %2111 = vmatprep.subr.mxu0 0.0
    %2112 = vmatpush1.msra.mxu0 0.0
    %2113 = vmatprep.subr.mxu0 0.0
    %2114 = vmatpush1.msra.mxu0 0.0
    %2115 = vmatprep.subr.mxu0 0.0
    %2116 = vmatpush1.msra.mxu0 0.0
    %2117 = vmatprep.subr.mxu0 0.0
    %2118 = vmatpush1.msra.mxu0 0.0
    %2119 = vmatprep.subr.mxu0 0.0
    %2120 = vmatpush1.msra.mxu0 0.0
    %2121 = vmatprep.subr.mxu0 0.0
    %2122 = vmatpush1.msra.mxu0 0.0
    %2123 = vmatprep.subr.mxu0 0.0
    %2124 = vmatpush1.msra.mxu0 0.0
    %2125 = vmatprep.subr.mxu0 0.0
    %2126 = vmatpush1.msra.mxu0 0.0
    %2127 = vmatprep.subr.mxu0 0.0
    %2128 = vmatpush1.msra.mxu0 0.0
    %2129 = vmatprep.subr.mxu0 0.0
    %2130 = vmatpush1.msra.mxu0 0.0
    %2131 = vmatprep.subr.mxu0 0.0
    %2132 = vmatpush1.msra.mxu0 0.0
    %2133 = vmatprep.subr.mxu0 0.0
    %2134 = vmatpush1.msra.mxu0 0.0
    %2135 = vmatprep.subr.mxu0 0.0
    %2136 = vmatpush1.msra.mxu0 0.0
    %2137 = vmatprep.subr.mxu0 0.0
    %2138 = vmatpush1.msra.mxu0 0.0
    %2139 = vmatprep.subr.mxu0 0.0
    %2140 = vmatpush1.msra.mxu0 0.0
    %2141 = vmatprep.subr.mxu0 0.0
    %2142 = vmatpush1.msra.mxu0 0.0
    %2143 = vmatprep.subr.mxu0 0.0
    %2144 = vmatpush1.msra.mxu0 0.0
    %2145 = vmatprep.subr.mxu0 0.0
    %2146 = vmatpush1.msra.mxu0 0.0
    %2147 = vmatprep.subr.mxu0 0.0
    %2148 = vmatpush1.msra.mxu0 0.0
    %2149 = vmatprep.mubr.f32.mxu0 0.0
    %2150 = vmatmul.mubr.f32.gmra.mrb[0].mxu0 %v1037
    %v2151 = vpop.f32.mrb[0].mxu0
    %v2152 = vadd.f32 0.0, %v2151
    %v2153 = vpop.f32.mrb[0].mxu0
    %2154 = vmatprep.mubr.f32.mxu0 0.0
    %2155 = vmatmul.mubr.f32.gmra.mrb[0].mxu0 %v1040
    %v2156 = vpop.f32.mrb[0].mxu0
    %v2157 = vadd.f32 0.0, %v2156
    %v2158 = vpop.f32.mrb[0].mxu0
    %2159 = vmatprep.mubr.f32.mxu0 0.0
    %2160 = vmatmul.mubr.f32.gmra.mrb[0].mxu0 %v1043
    %v2161 = vpop.f32.mrb[0].mxu0
    %v2162 = vadd.f32 0.0, %v2161
    %v2163 = vpop.f32.mrb[0].mxu0
    %2164 = vmatprep.mubr.f32.mxu0 0.0
    %2165 = vmatmul.mubr.f32.gmra.mrb[0].mxu0 %v1046
    %v2166 = vpop.f32.mrb[0].mxu0
    %v2167 = vadd.f32 0.0, %v2166
    %v2168 = vpop.f32.mrb[0].mxu0
    %2169 = vdwg.mxu0
    %s2170 = scalar_lea.vmem %s7, 8
    %v2171 = vld [vmem:[%s2170] sm:$0xf]
    %s2172 = scalar_lea.vmem [#allocation10], 256
    %v2173 = vld [vmem:[%s2172] sm:$0xff]
    %v2174 = vld [vmem:[%s2172 + $0x8] sm:$0xff]
    %v2175 = vld [vmem:[%s2172 + $0x10] sm:$0xff]
    %v2176 = vld [vmem:[%s2172 + $0x18] sm:$0xff]
    %v2177 = vld [vmem:[%s2172 + $0x20] sm:$0xff]
    %v2178 = vld [vmem:[%s2172 + $0x28] sm:$0xff]
    %v2179 = vld [vmem:[%s2172 + $0x30] sm:$0xff]
    %v2180 = vld [vmem:[%s2172 + $0x38] sm:$0xff]
    %v2181 = vld [vmem:[%s2172 + $0x40] sm:$0xff]
    %v2182 = vld [vmem:[%s2172 + $0x48] sm:$0xff]
    %v2183 = vld [vmem:[%s2172 + $0x50] sm:$0xff]
    %v2184 = vld [vmem:[%s2172 + $0x58] sm:$0xff]
    %v2185 = vld [vmem:[%s2172 + $0x60] sm:$0xff]
    %v2186 = vld [vmem:[%s2172 + $0x68] sm:$0xff]
    %v2187 = vld [vmem:[%s2172 + $0x70] sm:$0xff]
    %v2188 = vld [vmem:[%s2172 + $0x78] sm:$0xff]
    %2189 = vmatprep.subr.mxu0 0.0
    %2190 = vmatpush1.msra.mxu0 %v2173
    %2191 = vmatprep.subr.mxu0 0.0
    %2192 = vmatpush1.msra.mxu0 %v2174
    %2193 = vmatprep.subr.mxu0 0.0
    %2194 = vmatpush1.msra.mxu0 %v2175
    %2195 = vmatprep.subr.mxu0 0.0
    %2196 = vmatpush1.msra.mxu0 %v2176
    %2197 = vmatprep.subr.mxu0 0.0
    %2198 = vmatpush1.msra.mxu0 %v2177
    %2199 = vmatprep.subr.mxu0 0.0
    %2200 = vmatpush1.msra.mxu0 %v2178
    %2201 = vmatprep.subr.mxu0 0.0
    %2202 = vmatpush1.msra.mxu0 %v2179
    %2203 = vmatprep.subr.mxu0 0.0
    %2204 = vmatpush1.msra.mxu0 %v2180
    %2205 = vmatprep.subr.mxu0 0.0
    %2206 = vmatpush1.msra.mxu0 %v2181
    %2207 = vmatprep.subr.mxu0 0.0
    %2208 = vmatpush1.msra.mxu0 %v2182
    %2209 = vmatprep.subr.mxu0 0.0
    %2210 = vmatpush1.msra.mxu0 %v2183
    %2211 = vmatprep.subr.mxu0 0.0
    %2212 = vmatpush1.msra.mxu0 %v2184
    %2213 = vmatprep.subr.mxu0 0.0
    %2214 = vmatpush1.msra.mxu0 %v2185
    %2215 = vmatprep.subr.mxu0 0.0
    %2216 = vmatpush1.msra.mxu0 %v2186
    %2217 = vmatprep.subr.mxu0 0.0
    %2218 = vmatpush1.msra.mxu0 %v2187
    %2219 = vmatprep.subr.mxu0 0.0
    %2220 = vmatpush1.msra.mxu0 %v2188
    %2221 = vmatprep.subr.mxu0 0.0
    %2222 = vmatpush1.msra.mxu0 0.0
    %2223 = vmatprep.subr.mxu0 0.0
    %2224 = vmatpush1.msra.mxu0 0.0
    %2225 = vmatprep.subr.mxu0 0.0
    %2226 = vmatpush1.msra.mxu0 0.0
    %2227 = vmatprep.subr.mxu0 0.0
    %2228 = vmatpush1.msra.mxu0 0.0
    %2229 = vmatprep.subr.mxu0 0.0
    %2230 = vmatpush1.msra.mxu0 0.0
    %2231 = vmatprep.subr.mxu0 0.0
    %2232 = vmatpush1.msra.mxu0 0.0
    %2233 = vmatprep.subr.mxu0 0.0
    %2234 = vmatpush1.msra.mxu0 0.0
    %2235 = vmatprep.subr.mxu0 0.0
    %2236 = vmatpush1.msra.mxu0 0.0
    %2237 = vmatprep.subr.mxu0 0.0
    %2238 = vmatpush1.msra.mxu0 0.0
    %2239 = vmatprep.subr.mxu0 0.0
    %2240 = vmatpush1.msra.mxu0 0.0
    %2241 = vmatprep.subr.mxu0 0.0
    %2242 = vmatpush1.msra.mxu0 0.0
    %2243 = vmatprep.subr.mxu0 0.0
    %2244 = vmatpush1.msra.mxu0 0.0
    %2245 = vmatprep.subr.mxu0 0.0
    %2246 = vmatpush1.msra.mxu0 0.0
    %2247 = vmatprep.subr.mxu0 0.0
    %2248 = vmatpush1.msra.mxu0 0.0
    %2249 = vmatprep.subr.mxu0 0.0
    %2250 = vmatpush1.msra.mxu0 0.0
    %2251 = vmatprep.subr.mxu0 0.0
    %2252 = vmatpush1.msra.mxu0 0.0
    %2253 = vmatprep.mubr.f32.mxu0 0.0
    %2254 = vmatmul.mubr.f32.gmra.mrb[0].mxu0 %v2152
    %v2255 = vpop.f32.mrb[0].mxu0
    %v2256 = vadd.f32 0.0, %v2255
    %v2257 = vpop.f32.mrb[0].mxu0
    %2258 = vmatprep.mubr.f32.mxu0 0.0
    %2259 = vmatmul.mubr.f32.gmra.mrb[0].mxu0 %v2157
    %v2260 = vpop.f32.mrb[0].mxu0
    %v2261 = vadd.f32 0.0, %v2260
    %v2262 = vpop.f32.mrb[0].mxu0
    %2263 = vmatprep.mubr.f32.mxu0 0.0
    %2264 = vmatmul.mubr.f32.gmra.mrb[0].mxu0 %v2162
    %v2265 = vpop.f32.mrb[0].mxu0
    %v2266 = vadd.f32 0.0, %v2265
    %v2267 = vpop.f32.mrb[0].mxu0
    %2268 = vmatprep.mubr.f32.mxu0 0.0
    %2269 = vmatmul.mubr.f32.gmra.mrb[0].mxu0 %v2167
    %v2270 = vpop.f32.mrb[0].mxu0
    %v2271 = vadd.f32 0.0, %v2270
    %v2272 = vpop.f32.mrb[0].mxu0
    %2273 = vdwg.mxu0
    %v2275 = vsel %vm521, %v2171, 0
    %2277 = vmatprep.subr.mxu0 0.0
    %2278 = vmatpush1.msra.mxu0 %v2275
    %2279 = vmatprep.subr.mxu0 0.0
    %2280 = vmatpush1.msra.mxu0 0.0
    %2281 = vmatprep.subr.mxu0 0.0
    %2282 = vmatpush1.msra.mxu0 0.0
    %2283 = vmatprep.subr.mxu0 0.0
    %2284 = vmatpush1.msra.mxu0 0.0
    %2285 = vmatprep.subr.mxu0 0.0
    %2286 = vmatpush1.msra.mxu0 0.0
    %2287 = vmatprep.subr.mxu0 0.0
    %2288 = vmatpush1.msra.mxu0 0.0
    %2289 = vmatprep.subr.mxu0 0.0
    %2290 = vmatpush1.msra.mxu0 0.0
    %2291 = vmatprep.subr.mxu0 0.0
    %2292 = vmatpush1.msra.mxu0 0.0
    %2293 = vmatprep.subr.mxu0 0.0
    %2294 = vmatpush1.msra.mxu0 0.0
    %2295 = vmatprep.subr.mxu0 0.0
    %2296 = vmatpush1.msra.mxu0 0.0
    %2297 = vmatprep.subr.mxu0 0.0
    %2298 = vmatpush1.msra.mxu0 0.0
    %2299 = vmatprep.subr.mxu0 0.0
    %2300 = vmatpush1.msra.mxu0 0.0
    %2301 = vmatprep.subr.mxu0 0.0
    %2302 = vmatpush1.msra.mxu0 0.0
    %2303 = vmatprep.subr.mxu0 0.0
    %2304 = vmatpush1.msra.mxu0 0.0
    %2305 = vmatprep.subr.mxu0 0.0
    %2306 = vmatpush1.msra.mxu0 0.0
    %2307 = vmatprep.subr.mxu0 0.0
    %2308 = vmatpush1.msra.mxu0 0.0
    %2309 = vmatprep.subr.mxu0 0.0
    %2310 = vmatpush1.msra.mxu0 0.0
    %2311 = vmatprep.subr.mxu0 0.0
    %2312 = vmatpush1.msra.mxu0 0.0
    %2313 = vmatprep.subr.mxu0 0.0
    %2314 = vmatpush1.msra.mxu0 0.0
    %2315 = vmatprep.subr.mxu0 0.0
    %2316 = vmatpush1.msra.mxu0 0.0
    %2317 = vmatprep.subr.mxu0 0.0
    %2318 = vmatpush1.msra.mxu0 0.0
    %2319 = vmatprep.subr.mxu0 0.0
    %2320 = vmatpush1.msra.mxu0 0.0
    %2321 = vmatprep.subr.mxu0 0.0
    %2322 = vmatpush1.msra.mxu0 0.0
    %2323 = vmatprep.subr.mxu0 0.0
    %2324 = vmatpush1.msra.mxu0 0.0
    %2325 = vmatprep.subr.mxu0 0.0
    %2326 = vmatpush1.msra.mxu0 0.0
    %2327 = vmatprep.subr.mxu0 0.0
    %2328 = vmatpush1.msra.mxu0 0.0
    %2329 = vmatprep.subr.mxu0 0.0
    %2330 = vmatpush1.msra.mxu0 0.0
    %2331 = vmatprep.subr.mxu0 0.0
    %2332 = vmatpush1.msra.mxu0 0.0
    %2333 = vmatprep.subr.mxu0 0.0
    %2334 = vmatpush1.msra.mxu0 0.0
    %2335 = vmatprep.subr.mxu0 0.0
    %2336 = vmatpush1.msra.mxu0 0.0
    %2337 = vmatprep.subr.mxu0 0.0
    %2338 = vmatpush1.msra.mxu0 0.0
    %2339 = vmatprep.subr.mxu0 0.0
    %2340 = vmatpush1.msra.mxu0 0.0
    %2341 = vmatprep.mubr.f32.mxu0 0.0
    %2342 = vmatmul.mubr.f32.gmra.mrb[0].mxu0 %v1345
    %v2343 = vpop.f32.mrb[0].mxu0
    %v2344 = vadd.f32 %v2256, %v2343
    %v2345 = vpop.f32.mrb[0].mxu0
    %2346 = vmatprep.mubr.f32.mxu0 0.0
    %2347 = vmatmul.mubr.f32.gmra.mrb[0].mxu0 %v1348
    %v2348 = vpop.f32.mrb[0].mxu0
    %v2349 = vadd.f32 %v2261, %v2348
    %v2350 = vpop.f32.mrb[0].mxu0
    %2351 = vmatprep.mubr.f32.mxu0 0.0
    %2352 = vmatmul.mubr.f32.gmra.mrb[0].mxu0 %v1351
    %v2353 = vpop.f32.mrb[0].mxu0
    %v2354 = vadd.f32 %v2266, %v2353
    %v2355 = vpop.f32.mrb[0].mxu0
    %2356 = vmatprep.mubr.f32.mxu0 0.0
    %2357 = vmatmul.mubr.f32.gmra.mrb[0].mxu0 %v1354
    %v2358 = vpop.f32.mrb[0].mxu0
    %v2359 = vadd.f32 %v2271, %v2358
    %v2360 = vpop.f32.mrb[0].mxu0
    %2361 = vdwg.mxu0
    %v2362 = vadd.f32 %v2081, %v2344
    %v2363 = vadd.f32 %v2082, %v2349
    %v2364 = vadd.f32 %v2083, %v2354
    %v2365 = vadd.f32 %v2084, %v2359
    %v2366 = vld [vmem:[%s9] sm:$0x1]
    %v2368 = vlaneseq
    %v2369 = vshrl.u32 %v2368, 7
    %v2370 = vsub.s32 0, %v2369
    %v2371 = vrot.slane %v2366, %v2370
    %v2373 = vadd.f32 %v2362, %v2371
    %v2374 = vadd.f32 %v2363, %v2371
    %v2375 = vadd.f32 %v2364, %v2371
    %v2376 = vadd.f32 %v2365, %v2371
    %v2377 = vtanh.pop %v2373
    %v2378 = vtanh.pop %v2374
    %v2379 = vtanh.pop %v2375
    %v2380 = vtanh.pop %v2376
    %v2381 = vsub.f32 1.0, %v1510
    %v2382 = vsub.f32 1.0, %v1514
    %v2383 = vsub.f32 1.0, %v1518
    %v2384 = vsub.f32 1.0, %v1522
    %v2385 = vmul.f32 %v2381, %v197
    %v2386 = vmul.f32 %v2382, %v198
    %v2387 = vmul.f32 %v2383, %v199
    %v2388 = vmul.f32 %v2384, %v200
    %v2389 = vmul.f32 %v1510, %v2377
    %v2390 = vmul.f32 %v1514, %v2378
    %v2391 = vmul.f32 %v1518, %v2379
    %v2392 = vmul.f32 %v1522, %v2380
    %v2393 = vadd.f32 %v2385, %v2389
    %v2394 = vadd.f32 %v2386, %v2390
    %v2395 = vadd.f32 %v2387, %v2391
    %v2396 = vadd.f32 %v2388, %v2392
    %2397 = vst [vmem:[#allocation17] sm:$0xff] %v2393
    %2398 = vst [vmem:[#allocation17 + $0x8] sm:$0xff] %v2394
    %2399 = vst [vmem:[#allocation17 + $0x10] sm:$0xff] %v2395
    %2400 = vst [vmem:[#allocation17 + $0x18] sm:$0xff] %v2396
    %v2401 = vld [vmem:[#allocation5] sm:$0xff]
    %v2402 = vld [vmem:[#allocation5 + $0x8] sm:$0xff]
    %v2403 = vld [vmem:[#allocation5 + $0x10] sm:$0xff]
    %v2404 = vld [vmem:[#allocation5 + $0x18] sm:$0xff]
    %2405 = vmatprep.subr.mxu0 0.0
    %2406 = vmatpush1.msra.mxu0 %v2393
    %2407 = vmatprep.subr.mxu0 0.0
    %2408 = vmatpush1.msra.mxu0 %v2394
    %2409 = vmatprep.subr.mxu0 0.0
    %2410 = vmatpush1.msra.mxu0 %v2395
    %2411 = vmatprep.subr.mxu0 0.0
    %2412 = vmatpush1.msra.mxu0 %v2396
    %2413 = vmatprep.subr.mxu0 0.0
    %2414 = vmatpush1.msra.mxu0 0.0
    %2415 = vmatprep.subr.mxu0 0.0
    %2416 = vmatpush1.msra.mxu0 0.0
    %2417 = vmatprep.subr.mxu0 0.0
    %2418 = vmatpush1.msra.mxu0 0.0
    %2419 = vmatprep.subr.mxu0 0.0
    %2420 = vmatpush1.msra.mxu0 0.0
    %2421 = vmatprep.subr.mxu0 0.0
    %2422 = vmatpush1.msra.mxu0 0.0
    %2423 = vmatprep.subr.mxu0 0.0
    %2424 = vmatpush1.msra.mxu0 0.0
    %2425 = vmatprep.subr.mxu0 0.0
    %2426 = vmatpush1.msra.mxu0 0.0
    %2427 = vmatprep.subr.mxu0 0.0
    %2428 = vmatpush1.msra.mxu0 0.0
    %2429 = vmatprep.subr.mxu0 0.0
    %2430 = vmatpush1.msra.mxu0 0.0
    %2431 = vmatprep.subr.mxu0 0.0
    %2432 = vmatpush1.msra.mxu0 0.0
    %2433 = vmatprep.subr.mxu0 0.0
    %2434 = vmatpush1.msra.mxu0 0.0
    %2435 = vmatprep.subr.mxu0 0.0
    %2436 = vmatpush1.msra.mxu0 0.0
    %2437 = vmatprep.subr.mxu0 0.0
    %2438 = vmatpush1.msra.mxu0 0.0
    %2439 = vmatprep.subr.mxu0 0.0
    %2440 = vmatpush1.msra.mxu0 0.0
    %2441 = vmatprep.subr.mxu0 0.0
    %2442 = vmatpush1.msra.mxu0 0.0
    %2443 = vmatprep.subr.mxu0 0.0
    %2444 = vmatpush1.msra.mxu0 0.0
    %2445 = vmatprep.subr.mxu0 0.0
    %2446 = vmatpush1.msra.mxu0 0.0
    %2447 = vmatprep.subr.mxu0 0.0
    %2448 = vmatpush1.msra.mxu0 0.0
    %2449 = vmatprep.subr.mxu0 0.0
    %2450 = vmatpush1.msra.mxu0 0.0
    %2451 = vmatprep.subr.mxu0 0.0
    %2452 = vmatpush1.msra.mxu0 0.0
    %2453 = vmatprep.subr.mxu0 0.0
    %2454 = vmatpush1.msra.mxu0 0.0
    %2455 = vmatprep.subr.mxu0 0.0
    %2456 = vmatpush1.msra.mxu0 0.0
    %2457 = vmatprep.subr.mxu0 0.0
    %2458 = vmatpush1.msra.mxu0 0.0
    %2459 = vmatprep.subr.mxu0 0.0
    %2460 = vmatpush1.msra.mxu0 0.0
    %2461 = vmatprep.subr.mxu0 0.0
    %2462 = vmatpush1.msra.mxu0 0.0
    %2463 = vmatprep.subr.mxu0 0.0
    %2464 = vmatpush1.msra.mxu0 0.0
    %2465 = vmatprep.subr.mxu0 0.0
    %2466 = vmatpush1.msra.mxu0 0.0
    %2467 = vmatprep.subr.mxu0 0.0
    %2468 = vmatpush1.msra.mxu0 0.0
    %2469 = vmatprep.mubr.f32.mxu0 0.0
    %2470 = vmatmul.mubr.f32.gmra.mrb[0].mxu0 %v203
    %v2471 = vpop.f32.mrb[0].mxu0
    %v2472 = vadd.f32 0.0, %v2471
    %v2473 = vpop.f32.mrb[0].mxu0
    %2474 = vmatprep.mubr.f32.mxu0 0.0
    %2475 = vmatmul.mubr.f32.gmra.mrb[0].mxu0 %v206
    %v2476 = vpop.f32.mrb[0].mxu0
    %v2477 = vadd.f32 0.0, %v2476
    %v2478 = vpop.f32.mrb[0].mxu0
    %2479 = vmatprep.mubr.f32.mxu0 0.0
    %2480 = vmatmul.mubr.f32.gmra.mrb[0].mxu0 %v209
    %v2481 = vpop.f32.mrb[0].mxu0
    %v2482 = vadd.f32 0.0, %v2481
    %v2483 = vpop.f32.mrb[0].mxu0
    %2484 = vmatprep.mubr.f32.mxu0 0.0
    %2485 = vmatmul.mubr.f32.gmra.mrb[0].mxu0 %v212
    %v2486 = vpop.f32.mrb[0].mxu0
    %v2487 = vadd.f32 0.0, %v2486
    %v2488 = vpop.f32.mrb[0].mxu0
    %2489 = vdwg.mxu0
    %2490 = vmatprep.subr.mxu0 0.0
    %2491 = vmatpush1.msra.mxu0 %v2401
    %2492 = vmatprep.subr.mxu0 0.0
    %2493 = vmatpush1.msra.mxu0 %v2402
    %2494 = vmatprep.subr.mxu0 0.0
    %2495 = vmatpush1.msra.mxu0 %v2403
    %2496 = vmatprep.subr.mxu0 0.0
    %2497 = vmatpush1.msra.mxu0 %v2404
    %2498 = vmatprep.subr.mxu0 0.0
    %2499 = vmatpush1.msra.mxu0 0.0
    %2500 = vmatprep.subr.mxu0 0.0
    %2501 = vmatpush1.msra.mxu0 0.0
    %2502 = vmatprep.subr.mxu0 0.0
    %2503 = vmatpush1.msra.mxu0 0.0
    %2504 = vmatprep.subr.mxu0 0.0
    %2505 = vmatpush1.msra.mxu0 0.0
    %2506 = vmatprep.subr.mxu0 0.0
    %2507 = vmatpush1.msra.mxu0 0.0
    %2508 = vmatprep.subr.mxu0 0.0
    %2509 = vmatpush1.msra.mxu0 0.0
    %2510 = vmatprep.subr.mxu0 0.0
    %2511 = vmatpush1.msra.mxu0 0.0
    %2512 = vmatprep.subr.mxu0 0.0
    %2513 = vmatpush1.msra.mxu0 0.0
    %2514 = vmatprep.subr.mxu0 0.0
    %2515 = vmatpush1.msra.mxu0 0.0
    %2516 = vmatprep.subr.mxu0 0.0
    %2517 = vmatpush1.msra.mxu0 0.0
    %2518 = vmatprep.subr.mxu0 0.0
    %2519 = vmatpush1.msra.mxu0 0.0
    %2520 = vmatprep.subr.mxu0 0.0
    %2521 = vmatpush1.msra.mxu0 0.0
    %2522 = vmatprep.subr.mxu0 0.0
    %2523 = vmatpush1.msra.mxu0 0.0
    %2524 = vmatprep.subr.mxu0 0.0
    %2525 = vmatpush1.msra.mxu0 0.0
    %2526 = vmatprep.subr.mxu0 0.0
    %2527 = vmatpush1.msra.mxu0 0.0
    %2528 = vmatprep.subr.mxu0 0.0
    %2529 = vmatpush1.msra.mxu0 0.0
    %2530 = vmatprep.subr.mxu0 0.0
    %2531 = vmatpush1.msra.mxu0 0.0
    %2532 = vmatprep.subr.mxu0 0.0
    %2533 = vmatpush1.msra.mxu0 0.0
    %2534 = vmatprep.subr.mxu0 0.0
    %2535 = vmatpush1.msra.mxu0 0.0
    %2536 = vmatprep.subr.mxu0 0.0
    %2537 = vmatpush1.msra.mxu0 0.0
    %2538 = vmatprep.subr.mxu0 0.0
    %2539 = vmatpush1.msra.mxu0 0.0
    %2540 = vmatprep.subr.mxu0 0.0
    %2541 = vmatpush1.msra.mxu0 0.0
    %2542 = vmatprep.subr.mxu0 0.0
    %2543 = vmatpush1.msra.mxu0 0.0
    %2544 = vmatprep.subr.mxu0 0.0
    %2545 = vmatpush1.msra.mxu0 0.0
    %2546 = vmatprep.subr.mxu0 0.0
    %2547 = vmatpush1.msra.mxu0 0.0
    %2548 = vmatprep.subr.mxu0 0.0
    %2549 = vmatpush1.msra.mxu0 0.0
    %2550 = vmatprep.subr.mxu0 0.0
    %2551 = vmatpush1.msra.mxu0 0.0
    %2552 = vmatprep.subr.mxu0 0.0
    %2553 = vmatpush1.msra.mxu0 0.0
    %2554 = vmatprep.mubr.f32.mxu0 0.0
    %2555 = vmatmul.mubr.f32.gmra.mrb[0].mxu0 %v203
    %v2556 = vpop.f32.mrb[0].mxu0
    %v2557 = vadd.f32 0.0, %v2556
    %v2558 = vpop.f32.mrb[0].mxu0
    %2559 = vmatprep.mubr.f32.mxu0 0.0
    %2560 = vmatmul.mubr.f32.gmra.mrb[0].mxu0 %v206
    %v2561 = vpop.f32.mrb[0].mxu0
    %v2562 = vadd.f32 0.0, %v2561
    %v2563 = vpop.f32.mrb[0].mxu0
    %2564 = vmatprep.mubr.f32.mxu0 0.0
    %2565 = vmatmul.mubr.f32.gmra.mrb[0].mxu0 %v209
    %v2566 = vpop.f32.mrb[0].mxu0
    %v2567 = vadd.f32 0.0, %v2566
    %v2568 = vpop.f32.mrb[0].mxu0
    %2569 = vmatprep.mubr.f32.mxu0 0.0
    %2570 = vmatmul.mubr.f32.gmra.mrb[0].mxu0 %v212
    %v2571 = vpop.f32.mrb[0].mxu0
    %v2572 = vadd.f32 0.0, %v2571
    %v2573 = vpop.f32.mrb[0].mxu0
    %2574 = vdwg.mxu0
    %v2575 = vld [vmem:[#allocation11] sm:$0xff]
    %v2576 = vld [vmem:[#allocation11 + $0x8] sm:$0xff]
    %v2577 = vld [vmem:[#allocation11 + $0x10] sm:$0xff]
    %v2578 = vld [vmem:[#allocation11 + $0x18] sm:$0xff]
    %v2579 = vld [vmem:[#allocation11 + $0x20] sm:$0xff]
    %v2580 = vld [vmem:[#allocation11 + $0x28] sm:$0xff]
    %v2581 = vld [vmem:[#allocation11 + $0x30] sm:$0xff]
    %v2582 = vld [vmem:[#allocation11 + $0x38] sm:$0xff]
    %v2583 = vld [vmem:[#allocation11 + $0x40] sm:$0xff]
    %v2584 = vld [vmem:[#allocation11 + $0x48] sm:$0xff]
    %v2585 = vld [vmem:[#allocation11 + $0x50] sm:$0xff]
    %v2586 = vld [vmem:[#allocation11 + $0x58] sm:$0xff]
    %v2587 = vld [vmem:[#allocation11 + $0x60] sm:$0xff]
    %v2588 = vld [vmem:[#allocation11 + $0x68] sm:$0xff]
    %v2589 = vld [vmem:[#allocation11 + $0x70] sm:$0xff]
    %v2590 = vld [vmem:[#allocation11 + $0x78] sm:$0xff]
    %v2591 = vld [vmem:[#allocation11 + $0x80] sm:$0xff]
    %v2592 = vld [vmem:[#allocation11 + $0x88] sm:$0xff]
    %v2593 = vld [vmem:[#allocation11 + $0x90] sm:$0xff]
    %v2594 = vld [vmem:[#allocation11 + $0x98] sm:$0xff]
    %v2595 = vld [vmem:[#allocation11 + $0xa0] sm:$0xff]
    %v2596 = vld [vmem:[#allocation11 + $0xa8] sm:$0xff]
    %v2597 = vld [vmem:[#allocation11 + $0xb0] sm:$0xff]
    %v2598 = vld [vmem:[#allocation11 + $0xb8] sm:$0xff]
    %v2599 = vld [vmem:[#allocation11 + $0xc0] sm:$0xff]
    %v2600 = vld [vmem:[#allocation11 + $0xc8] sm:$0xff]
    %v2601 = vld [vmem:[#allocation11 + $0xd0] sm:$0xff]
    %v2602 = vld [vmem:[#allocation11 + $0xd8] sm:$0xff]
    %v2603 = vld [vmem:[#allocation11 + $0xe0] sm:$0xff]
    %v2604 = vld [vmem:[#allocation11 + $0xe8] sm:$0xff]
    %v2605 = vld [vmem:[#allocation11 + $0xf0] sm:$0xff]
    %v2606 = vld [vmem:[#allocation11 + $0xf8] sm:$0xff]
    %v2607 = vld [vmem:[#allocation13] sm:$0xff]
    %v2608 = vld [vmem:[#allocation13 + $0x8] sm:$0xff]
    %v2609 = vld [vmem:[#allocation13 + $0x10] sm:$0xff]
    %v2610 = vld [vmem:[#allocation13 + $0x18] sm:$0xff]
    %v2611 = vld [vmem:[#allocation13 + $0x20] sm:$0xff]
    %v2612 = vld [vmem:[#allocation13 + $0x28] sm:$0xff]
    %v2613 = vld [vmem:[#allocation13 + $0x30] sm:$0xff]
    %v2614 = vld [vmem:[#allocation13 + $0x38] sm:$0xff]
    %v2615 = vld [vmem:[#allocation13 + $0x40] sm:$0xff]
    %v2616 = vld [vmem:[#allocation13 + $0x48] sm:$0xff]
    %v2617 = vld [vmem:[#allocation13 + $0x50] sm:$0xff]
    %v2618 = vld [vmem:[#allocation13 + $0x58] sm:$0xff]
    %v2619 = vld [vmem:[#allocation13 + $0x60] sm:$0xff]
    %v2620 = vld [vmem:[#allocation13 + $0x68] sm:$0xff]
    %v2621 = vld [vmem:[#allocation13 + $0x70] sm:$0xff]
    %v2622 = vld [vmem:[#allocation13 + $0x78] sm:$0xff]
    %v2623 = vld [vmem:[#allocation13 + $0x80] sm:$0xff]
    %v2624 = vld [vmem:[#allocation13 + $0x88] sm:$0xff]
    %v2625 = vld [vmem:[#allocation13 + $0x90] sm:$0xff]
    %v2626 = vld [vmem:[#allocation13 + $0x98] sm:$0xff]
    %v2627 = vld [vmem:[#allocation13 + $0xa0] sm:$0xff]
    %v2628 = vld [vmem:[#allocation13 + $0xa8] sm:$0xff]
    %v2629 = vld [vmem:[#allocation13 + $0xb0] sm:$0xff]
    %v2630 = vld [vmem:[#allocation13 + $0xb8] sm:$0xff]
    %v2631 = vld [vmem:[#allocation13 + $0xc0] sm:$0xff]
    %v2632 = vld [vmem:[#allocation13 + $0xc8] sm:$0xff]
    %v2633 = vld [vmem:[#allocation13 + $0xd0] sm:$0xff]
    %v2634 = vld [vmem:[#allocation13 + $0xd8] sm:$0xff]
    %v2635 = vld [vmem:[#allocation13 + $0xe0] sm:$0xff]
    %v2636 = vld [vmem:[#allocation13 + $0xe8] sm:$0xff]
    %v2637 = vld [vmem:[#allocation13 + $0xf0] sm:$0xff]
    %v2638 = vld [vmem:[#allocation13 + $0xf8] sm:$0xff]
    %2639 = vmatprep.subr.mxu0 %v2608
    %2640 = vmatpush1.msra.mxu0 %v2607
    %2641 = vmatprep.subr.mxu0 %v2610
    %2642 = vmatpush1.msra.mxu0 %v2609
    %2643 = vmatprep.subr.mxu0 %v2612
    %2644 = vmatpush1.msra.mxu0 %v2611
    %2645 = vmatprep.subr.mxu0 %v2614
    %2646 = vmatpush1.msra.mxu0 %v2613
    %2647 = vmatprep.subr.mxu0 %v2616
    %2648 = vmatpush1.msra.mxu0 %v2615
    %2649 = vmatprep.subr.mxu0 %v2618
    %2650 = vmatpush1.msra.mxu0 %v2617
    %2651 = vmatprep.subr.mxu0 %v2620
    %2652 = vmatpush1.msra.mxu0 %v2619
    %2653 = vmatprep.subr.mxu0 %v2622
    %2654 = vmatpush1.msra.mxu0 %v2621
    %2655 = vmatprep.subr.mxu0 %v2624
    %2656 = vmatpush1.msra.mxu0 %v2623
    %2657 = vmatprep.subr.mxu0 %v2626
    %2658 = vmatpush1.msra.mxu0 %v2625
    %2659 = vmatprep.subr.mxu0 %v2628
    %2660 = vmatpush1.msra.mxu0 %v2627
    %2661 = vmatprep.subr.mxu0 %v2630
    %2662 = vmatpush1.msra.mxu0 %v2629
    %2663 = vmatprep.subr.mxu0 %v2632
    %2664 = vmatpush1.msra.mxu0 %v2631
    %2665 = vmatprep.subr.mxu0 %v2634
    %2666 = vmatpush1.msra.mxu0 %v2633
    %2667 = vmatprep.subr.mxu0 %v2636
    %2668 = vmatpush1.msra.mxu0 %v2635
    %2669 = vmatprep.subr.mxu0 %v2638
    %2670 = vmatpush1.msra.mxu0 %v2637
    %2671 = vmatprep.subr.mxu0 0.0
    %2672 = vmatpush1.msra.mxu0 0.0
    %2673 = vmatprep.subr.mxu0 0.0
    %2674 = vmatpush1.msra.mxu0 0.0
    %2675 = vmatprep.subr.mxu0 0.0
    %2676 = vmatpush1.msra.mxu0 0.0
    %2677 = vmatprep.subr.mxu0 0.0
    %2678 = vmatpush1.msra.mxu0 0.0
    %2679 = vmatprep.subr.mxu0 0.0
    %2680 = vmatpush1.msra.mxu0 0.0
    %2681 = vmatprep.subr.mxu0 0.0
    %2682 = vmatpush1.msra.mxu0 0.0
    %2683 = vmatprep.subr.mxu0 0.0
    %2684 = vmatpush1.msra.mxu0 0.0
    %2685 = vmatprep.subr.mxu0 0.0
    %2686 = vmatpush1.msra.mxu0 0.0
    %2687 = vmatprep.subr.mxu0 0.0
    %2688 = vmatpush1.msra.mxu0 0.0
    %2689 = vmatprep.subr.mxu0 0.0
    %2690 = vmatpush1.msra.mxu0 0.0
    %2691 = vmatprep.subr.mxu0 0.0
    %2692 = vmatpush1.msra.mxu0 0.0
    %2693 = vmatprep.subr.mxu0 0.0
    %2694 = vmatpush1.msra.mxu0 0.0
    %2695 = vmatprep.subr.mxu0 0.0
    %2696 = vmatpush1.msra.mxu0 0.0
    %2697 = vmatprep.subr.mxu0 0.0
    %2698 = vmatpush1.msra.mxu0 0.0
    %2699 = vmatprep.subr.mxu0 0.0
    %2700 = vmatpush1.msra.mxu0 0.0
    %2701 = vmatprep.subr.mxu0 0.0
    %2702 = vmatpush1.msra.mxu0 0.0
    %2703 = vmatprep.mubr.f32.mxu0 0.0
    %2704 = vmatmul.mubr.f32.gmra.mrb[0].mxu0 %v2557
    %v2705 = vpop.f32.mrb[0].mxu0
    %v2706 = vadd.f32 0.0, %v2705
    %v2707 = vpop.f32.mrb[0].mxu0
    %v2708 = vadd.f32 0.0, %v2707
    %2709 = vmatprep.mubr.f32.mxu0 0.0
    %2710 = vmatmul.mubr.f32.gmra.mrb[0].mxu0 %v2562
    %v2711 = vpop.f32.mrb[0].mxu0
    %v2712 = vadd.f32 0.0, %v2711
    %v2713 = vpop.f32.mrb[0].mxu0
    %v2714 = vadd.f32 0.0, %v2713
    %2715 = vmatprep.mubr.f32.mxu0 0.0
    %2716 = vmatmul.mubr.f32.gmra.mrb[0].mxu0 %v2567
    %v2717 = vpop.f32.mrb[0].mxu0
    %v2718 = vadd.f32 0.0, %v2717
    %v2719 = vpop.f32.mrb[0].mxu0
    %v2720 = vadd.f32 0.0, %v2719
    %2721 = vmatprep.mubr.f32.mxu0 0.0
    %2722 = vmatmul.mubr.f32.gmra.mrb[0].mxu0 %v2572
    %v2723 = vpop.f32.mrb[0].mxu0
    %v2724 = vadd.f32 0.0, %v2723
    %v2725 = vpop.f32.mrb[0].mxu0
    %v2726 = vadd.f32 0.0, %v2725
    %2727 = vdwg.mxu0
    %2728 = vmatprep.subr.mxu0 %v2576
    %2729 = vmatpush1.msra.mxu0 %v2575
    %2730 = vmatprep.subr.mxu0 %v2578
    %2731 = vmatpush1.msra.mxu0 %v2577
    %2732 = vmatprep.subr.mxu0 %v2580
    %2733 = vmatpush1.msra.mxu0 %v2579
    %2734 = vmatprep.subr.mxu0 %v2582
    %2735 = vmatpush1.msra.mxu0 %v2581
    %2736 = vmatprep.subr.mxu0 %v2584
    %2737 = vmatpush1.msra.mxu0 %v2583
    %2738 = vmatprep.subr.mxu0 %v2586
    %2739 = vmatpush1.msra.mxu0 %v2585
    %2740 = vmatprep.subr.mxu0 %v2588
    %2741 = vmatpush1.msra.mxu0 %v2587
    %2742 = vmatprep.subr.mxu0 %v2590
    %2743 = vmatpush1.msra.mxu0 %v2589
    %2744 = vmatprep.subr.mxu0 %v2592
    %2745 = vmatpush1.msra.mxu0 %v2591
    %2746 = vmatprep.subr.mxu0 %v2594
    %2747 = vmatpush1.msra.mxu0 %v2593
    %2748 = vmatprep.subr.mxu0 %v2596
    %2749 = vmatpush1.msra.mxu0 %v2595
    %2750 = vmatprep.subr.mxu0 %v2598
    %2751 = vmatpush1.msra.mxu0 %v2597
    %2752 = vmatprep.subr.mxu0 %v2600
    %2753 = vmatpush1.msra.mxu0 %v2599
    %2754 = vmatprep.subr.mxu0 %v2602
    %2755 = vmatpush1.msra.mxu0 %v2601
    %2756 = vmatprep.subr.mxu0 %v2604
    %2757 = vmatpush1.msra.mxu0 %v2603
    %2758 = vmatprep.subr.mxu0 %v2606
    %2759 = vmatpush1.msra.mxu0 %v2605
    %2760 = vmatprep.subr.mxu0 0.0
    %2761 = vmatpush1.msra.mxu0 0.0
    %2762 = vmatprep.subr.mxu0 0.0
    %2763 = vmatpush1.msra.mxu0 0.0
    %2764 = vmatprep.subr.mxu0 0.0
    %2765 = vmatpush1.msra.mxu0 0.0
    %2766 = vmatprep.subr.mxu0 0.0
    %2767 = vmatpush1.msra.mxu0 0.0
    %2768 = vmatprep.subr.mxu0 0.0
    %2769 = vmatpush1.msra.mxu0 0.0
    %2770 = vmatprep.subr.mxu0 0.0
    %2771 = vmatpush1.msra.mxu0 0.0
    %2772 = vmatprep.subr.mxu0 0.0
    %2773 = vmatpush1.msra.mxu0 0.0
    %2774 = vmatprep.subr.mxu0 0.0
    %2775 = vmatpush1.msra.mxu0 0.0
    %2776 = vmatprep.subr.mxu0 0.0
    %2777 = vmatpush1.msra.mxu0 0.0
    %2778 = vmatprep.subr.mxu0 0.0
    %2779 = vmatpush1.msra.mxu0 0.0
    %2780 = vmatprep.subr.mxu0 0.0
    %2781 = vmatpush1.msra.mxu0 0.0
    %2782 = vmatprep.subr.mxu0 0.0
    %2783 = vmatpush1.msra.mxu0 0.0
    %2784 = vmatprep.subr.mxu0 0.0
    %2785 = vmatpush1.msra.mxu0 0.0
    %2786 = vmatprep.subr.mxu0 0.0
    %2787 = vmatpush1.msra.mxu0 0.0
    %2788 = vmatprep.subr.mxu0 0.0
    %2789 = vmatpush1.msra.mxu0 0.0
    %2790 = vmatprep.subr.mxu0 0.0
    %2791 = vmatpush1.msra.mxu0 0.0
    %2792 = vmatprep.mubr.f32.mxu0 0.0
    %2793 = vmatmul.mubr.f32.gmra.mrb[0].mxu0 %v2472
    %v2794 = vpop.f32.mrb[0].mxu0
    %v2795 = vadd.f32 %v2706, %v2794
    %v2796 = vpop.f32.mrb[0].mxu0
    %v2797 = vadd.f32 %v2708, %v2796
    %2798 = vmatprep.mubr.f32.mxu0 0.0
    %2799 = vmatmul.mubr.f32.gmra.mrb[0].mxu0 %v2477
    %v2800 = vpop.f32.mrb[0].mxu0
    %v2801 = vadd.f32 %v2712, %v2800
    %v2802 = vpop.f32.mrb[0].mxu0
    %v2803 = vadd.f32 %v2714, %v2802
    %2804 = vmatprep.mubr.f32.mxu0 0.0
    %2805 = vmatmul.mubr.f32.gmra.mrb[0].mxu0 %v2482
    %v2806 = vpop.f32.mrb[0].mxu0
    %v2807 = vadd.f32 %v2718, %v2806
    %v2808 = vpop.f32.mrb[0].mxu0
    %v2809 = vadd.f32 %v2720, %v2808
    %2810 = vmatprep.mubr.f32.mxu0 0.0
    %2811 = vmatmul.mubr.f32.gmra.mrb[0].mxu0 %v2487
    %v2812 = vpop.f32.mrb[0].mxu0
    %v2813 = vadd.f32 %v2724, %v2812
    %v2814 = vpop.f32.mrb[0].mxu0
    %v2815 = vadd.f32 %v2726, %v2814
    %2816 = vdwg.mxu0
    %2817 = vmatprep.subr.mxu0 0.0
    %2818 = vmatpush1.msra.mxu0 %v2393
    %2819 = vmatprep.subr.mxu0 0.0
    %2820 = vmatpush1.msra.mxu0 %v2394
    %2821 = vmatprep.subr.mxu0 0.0
    %2822 = vmatpush1.msra.mxu0 %v2395
    %2823 = vmatprep.subr.mxu0 0.0
    %2824 = vmatpush1.msra.mxu0 %v2396
    %2825 = vmatprep.subr.mxu0 0.0
    %2826 = vmatpush1.msra.mxu0 0.0
    %2827 = vmatprep.subr.mxu0 0.0
    %2828 = vmatpush1.msra.mxu0 0.0
    %2829 = vmatprep.subr.mxu0 0.0
    %2830 = vmatpush1.msra.mxu0 0.0
    %2831 = vmatprep.subr.mxu0 0.0
    %2832 = vmatpush1.msra.mxu0 0.0
    %2833 = vmatprep.subr.mxu0 0.0
    %2834 = vmatpush1.msra.mxu0 0.0
    %2835 = vmatprep.subr.mxu0 0.0
    %2836 = vmatpush1.msra.mxu0 0.0
    %2837 = vmatprep.subr.mxu0 0.0
    %2838 = vmatpush1.msra.mxu0 0.0
    %2839 = vmatprep.subr.mxu0 0.0
    %2840 = vmatpush1.msra.mxu0 0.0
    %2841 = vmatprep.subr.mxu0 0.0
    %2842 = vmatpush1.msra.mxu0 0.0
    %2843 = vmatprep.subr.mxu0 0.0
    %2844 = vmatpush1.msra.mxu0 0.0
    %2845 = vmatprep.subr.mxu0 0.0
    %2846 = vmatpush1.msra.mxu0 0.0
    %2847 = vmatprep.subr.mxu0 0.0
    %2848 = vmatpush1.msra.mxu0 0.0
    %2849 = vmatprep.subr.mxu0 0.0
    %2850 = vmatpush1.msra.mxu0 0.0
    %2851 = vmatprep.subr.mxu0 0.0
    %2852 = vmatpush1.msra.mxu0 0.0
    %2853 = vmatprep.subr.mxu0 0.0
    %2854 = vmatpush1.msra.mxu0 0.0
    %2855 = vmatprep.subr.mxu0 0.0
    %2856 = vmatpush1.msra.mxu0 0.0
    %2857 = vmatprep.subr.mxu0 0.0
    %2858 = vmatpush1.msra.mxu0 0.0
    %2859 = vmatprep.subr.mxu0 0.0
    %2860 = vmatpush1.msra.mxu0 0.0
    %2861 = vmatprep.subr.mxu0 0.0
    %2862 = vmatpush1.msra.mxu0 0.0
    %2863 = vmatprep.subr.mxu0 0.0
    %2864 = vmatpush1.msra.mxu0 0.0
    %2865 = vmatprep.subr.mxu0 0.0
    %2866 = vmatpush1.msra.mxu0 0.0
    %2867 = vmatprep.subr.mxu0 0.0
    %2868 = vmatpush1.msra.mxu0 0.0
    %2869 = vmatprep.subr.mxu0 0.0
    %2870 = vmatpush1.msra.mxu0 0.0
    %2871 = vmatprep.subr.mxu0 0.0
    %2872 = vmatpush1.msra.mxu0 0.0
    %2873 = vmatprep.subr.mxu0 0.0
    %2874 = vmatpush1.msra.mxu0 0.0
    %2875 = vmatprep.subr.mxu0 0.0
    %2876 = vmatpush1.msra.mxu0 0.0
    %2877 = vmatprep.subr.mxu0 0.0
    %2878 = vmatpush1.msra.mxu0 0.0
    %2879 = vmatprep.subr.mxu0 0.0
    %2880 = vmatpush1.msra.mxu0 0.0
    %2881 = vmatprep.mubr.f32.mxu0 0.0
    %2882 = vmatmul.mubr.f32.gmra.mrb[0].mxu0 %v616
    %v2883 = vpop.f32.mrb[0].mxu0
    %v2884 = vadd.f32 0.0, %v2883
    %v2885 = vpop.f32.mrb[0].mxu0
    %2886 = vmatprep.mubr.f32.mxu0 0.0
    %2887 = vmatmul.mubr.f32.gmra.mrb[0].mxu0 %v619
    %v2888 = vpop.f32.mrb[0].mxu0
    %v2889 = vadd.f32 0.0, %v2888
    %v2890 = vpop.f32.mrb[0].mxu0
    %2891 = vmatprep.mubr.f32.mxu0 0.0
    %2892 = vmatmul.mubr.f32.gmra.mrb[0].mxu0 %v622
    %v2893 = vpop.f32.mrb[0].mxu0
    %v2894 = vadd.f32 0.0, %v2893
    %v2895 = vpop.f32.mrb[0].mxu0
    %2896 = vmatprep.mubr.f32.mxu0 0.0
    %2897 = vmatmul.mubr.f32.gmra.mrb[0].mxu0 %v625
    %v2898 = vpop.f32.mrb[0].mxu0
    %v2899 = vadd.f32 0.0, %v2898
    %v2900 = vpop.f32.mrb[0].mxu0
    %2901 = vdwg.mxu0
    %2902 = vmatprep.subr.mxu0 0.0
    %2903 = vmatpush1.msra.mxu0 %v2401
    %2904 = vmatprep.subr.mxu0 0.0
    %2905 = vmatpush1.msra.mxu0 %v2402
    %2906 = vmatprep.subr.mxu0 0.0
    %2907 = vmatpush1.msra.mxu0 %v2403
    %2908 = vmatprep.subr.mxu0 0.0
    %2909 = vmatpush1.msra.mxu0 %v2404
    %2910 = vmatprep.subr.mxu0 0.0
    %2911 = vmatpush1.msra.mxu0 0.0
    %2912 = vmatprep.subr.mxu0 0.0
    %2913 = vmatpush1.msra.mxu0 0.0
    %2914 = vmatprep.subr.mxu0 0.0
    %2915 = vmatpush1.msra.mxu0 0.0
    %2916 = vmatprep.subr.mxu0 0.0
    %2917 = vmatpush1.msra.mxu0 0.0
    %2918 = vmatprep.subr.mxu0 0.0
    %2919 = vmatpush1.msra.mxu0 0.0
    %2920 = vmatprep.subr.mxu0 0.0
    %2921 = vmatpush1.msra.mxu0 0.0
    %2922 = vmatprep.subr.mxu0 0.0
    %2923 = vmatpush1.msra.mxu0 0.0
    %2924 = vmatprep.subr.mxu0 0.0
    %2925 = vmatpush1.msra.mxu0 0.0
    %2926 = vmatprep.subr.mxu0 0.0
    %2927 = vmatpush1.msra.mxu0 0.0
    %2928 = vmatprep.subr.mxu0 0.0
    %2929 = vmatpush1.msra.mxu0 0.0
    %2930 = vmatprep.subr.mxu0 0.0
    %2931 = vmatpush1.msra.mxu0 0.0
    %2932 = vmatprep.subr.mxu0 0.0
    %2933 = vmatpush1.msra.mxu0 0.0
    %2934 = vmatprep.subr.mxu0 0.0
    %2935 = vmatpush1.msra.mxu0 0.0
    %2936 = vmatprep.subr.mxu0 0.0
    %2937 = vmatpush1.msra.mxu0 0.0
    %2938 = vmatprep.subr.mxu0 0.0
    %2939 = vmatpush1.msra.mxu0 0.0
    %2940 = vmatprep.subr.mxu0 0.0
    %2941 = vmatpush1.msra.mxu0 0.0
    %2942 = vmatprep.subr.mxu0 0.0
    %2943 = vmatpush1.msra.mxu0 0.0
    %2944 = vmatprep.subr.mxu0 0.0
    %2945 = vmatpush1.msra.mxu0 0.0
    %2946 = vmatprep.subr.mxu0 0.0
    %2947 = vmatpush1.msra.mxu0 0.0
    %2948 = vmatprep.subr.mxu0 0.0
    %2949 = vmatpush1.msra.mxu0 0.0
    %2950 = vmatprep.subr.mxu0 0.0
    %2951 = vmatpush1.msra.mxu0 0.0
    %2952 = vmatprep.subr.mxu0 0.0
    %2953 = vmatpush1.msra.mxu0 0.0
    %2954 = vmatprep.subr.mxu0 0.0
    %2955 = vmatpush1.msra.mxu0 0.0
    %2956 = vmatprep.subr.mxu0 0.0
    %2957 = vmatpush1.msra.mxu0 0.0
    %2958 = vmatprep.subr.mxu0 0.0
    %2959 = vmatpush1.msra.mxu0 0.0
    %2960 = vmatprep.subr.mxu0 0.0
    %2961 = vmatpush1.msra.mxu0 0.0
    %2962 = vmatprep.subr.mxu0 0.0
    %2963 = vmatpush1.msra.mxu0 0.0
    %2964 = vmatprep.subr.mxu0 0.0
    %2965 = vmatpush1.msra.mxu0 0.0
    %2966 = vmatprep.mubr.f32.mxu0 0.0
    %2967 = vmatmul.mubr.f32.gmra.mrb[0].mxu0 %v616
    %v2968 = vpop.f32.mrb[0].mxu0
    %v2969 = vadd.f32 0.0, %v2968
    %v2970 = vpop.f32.mrb[0].mxu0
    %2971 = vmatprep.mubr.f32.mxu0 0.0
    %2972 = vmatmul.mubr.f32.gmra.mrb[0].mxu0 %v619
    %v2973 = vpop.f32.mrb[0].mxu0
    %v2974 = vadd.f32 0.0, %v2973
    %v2975 = vpop.f32.mrb[0].mxu0
    %2976 = vmatprep.mubr.f32.mxu0 0.0
    %2977 = vmatmul.mubr.f32.gmra.mrb[0].mxu0 %v622
    %v2978 = vpop.f32.mrb[0].mxu0
    %v2979 = vadd.f32 0.0, %v2978
    %v2980 = vpop.f32.mrb[0].mxu0
    %2981 = vmatprep.mubr.f32.mxu0 0.0
    %2982 = vmatmul.mubr.f32.gmra.mrb[0].mxu0 %v625
    %v2983 = vpop.f32.mrb[0].mxu0
    %v2984 = vadd.f32 0.0, %v2983
    %v2985 = vpop.f32.mrb[0].mxu0
    %2986 = vdwg.mxu0
    %s2987 = scalar_lea.vmem [#allocation11], 256
    %v2988 = vld [vmem:[%s2987] sm:$0xff]
    %v2989 = vld [vmem:[%s2987 + $0x8] sm:$0xff]
    %v2990 = vld [vmem:[%s2987 + $0x10] sm:$0xff]
    %v2991 = vld [vmem:[%s2987 + $0x18] sm:$0xff]
    %v2992 = vld [vmem:[%s2987 + $0x20] sm:$0xff]
    %v2993 = vld [vmem:[%s2987 + $0x28] sm:$0xff]
    %v2994 = vld [vmem:[%s2987 + $0x30] sm:$0xff]
    %v2995 = vld [vmem:[%s2987 + $0x38] sm:$0xff]
    %v2996 = vld [vmem:[%s2987 + $0x40] sm:$0xff]
    %v2997 = vld [vmem:[%s2987 + $0x48] sm:$0xff]
    %v2998 = vld [vmem:[%s2987 + $0x50] sm:$0xff]
    %v2999 = vld [vmem:[%s2987 + $0x58] sm:$0xff]
    %v3000 = vld [vmem:[%s2987 + $0x60] sm:$0xff]
    %v3001 = vld [vmem:[%s2987 + $0x68] sm:$0xff]
    %v3002 = vld [vmem:[%s2987 + $0x70] sm:$0xff]
    %v3003 = vld [vmem:[%s2987 + $0x78] sm:$0xff]
    %v3004 = vld [vmem:[%s2987 + $0x80] sm:$0xff]
    %v3005 = vld [vmem:[%s2987 + $0x88] sm:$0xff]
    %v3006 = vld [vmem:[%s2987 + $0x90] sm:$0xff]
    %v3007 = vld [vmem:[%s2987 + $0x98] sm:$0xff]
    %v3008 = vld [vmem:[%s2987 + $0xa0] sm:$0xff]
    %v3009 = vld [vmem:[%s2987 + $0xa8] sm:$0xff]
    %v3010 = vld [vmem:[%s2987 + $0xb0] sm:$0xff]
    %v3011 = vld [vmem:[%s2987 + $0xb8] sm:$0xff]
    %v3012 = vld [vmem:[%s2987 + $0xc0] sm:$0xff]
    %v3013 = vld [vmem:[%s2987 + $0xc8] sm:$0xff]
    %v3014 = vld [vmem:[%s2987 + $0xd0] sm:$0xff]
    %v3015 = vld [vmem:[%s2987 + $0xd8] sm:$0xff]
    %v3016 = vld [vmem:[%s2987 + $0xe0] sm:$0xff]
    %v3017 = vld [vmem:[%s2987 + $0xe8] sm:$0xff]
    %v3018 = vld [vmem:[%s2987 + $0xf0] sm:$0xff]
    %v3019 = vld [vmem:[%s2987 + $0xf8] sm:$0xff]
    %s3020 = scalar_lea.vmem [#allocation13], 256
    %v3021 = vld [vmem:[%s3020] sm:$0xff]
    %v3022 = vld [vmem:[%s3020 + $0x8] sm:$0xff]
    %v3023 = vld [vmem:[%s3020 + $0x10] sm:$0xff]
    %v3024 = vld [vmem:[%s3020 + $0x18] sm:$0xff]
    %v3025 = vld [vmem:[%s3020 + $0x20] sm:$0xff]
    %v3026 = vld [vmem:[%s3020 + $0x28] sm:$0xff]
    %v3027 = vld [vmem:[%s3020 + $0x30] sm:$0xff]
    %v3028 = vld [vmem:[%s3020 + $0x38] sm:$0xff]
    %v3029 = vld [vmem:[%s3020 + $0x40] sm:$0xff]
    %v3030 = vld [vmem:[%s3020 + $0x48] sm:$0xff]
    %v3031 = vld [vmem:[%s3020 + $0x50] sm:$0xff]
    %v3032 = vld [vmem:[%s3020 + $0x58] sm:$0xff]
    %v3033 = vld [vmem:[%s3020 + $0x60] sm:$0xff]
    %v3034 = vld [vmem:[%s3020 + $0x68] sm:$0xff]
    %v3035 = vld [vmem:[%s3020 + $0x70] sm:$0xff]
    %v3036 = vld [vmem:[%s3020 + $0x78] sm:$0xff]
    %v3037 = vld [vmem:[%s3020 + $0x80] sm:$0xff]
    %v3038 = vld [vmem:[%s3020 + $0x88] sm:$0xff]
    %v3039 = vld [vmem:[%s3020 + $0x90] sm:$0xff]
    %v3040 = vld [vmem:[%s3020 + $0x98] sm:$0xff]
    %v3041 = vld [vmem:[%s3020 + $0xa0] sm:$0xff]
    %v3042 = vld [vmem:[%s3020 + $0xa8] sm:$0xff]
    %v3043 = vld [vmem:[%s3020 + $0xb0] sm:$0xff]
    %v3044 = vld [vmem:[%s3020 + $0xb8] sm:$0xff]
    %v3045 = vld [vmem:[%s3020 + $0xc0] sm:$0xff]
    %v3046 = vld [vmem:[%s3020 + $0xc8] sm:$0xff]
    %v3047 = vld [vmem:[%s3020 + $0xd0] sm:$0xff]
    %v3048 = vld [vmem:[%s3020 + $0xd8] sm:$0xff]
    %v3049 = vld [vmem:[%s3020 + $0xe0] sm:$0xff]
    %v3050 = vld [vmem:[%s3020 + $0xe8] sm:$0xff]
    %v3051 = vld [vmem:[%s3020 + $0xf0] sm:$0xff]
    %v3052 = vld [vmem:[%s3020 + $0xf8] sm:$0xff]
    %3053 = vmatprep.subr.mxu0 %v3022
    %3054 = vmatpush1.msra.mxu0 %v3021
    %3055 = vmatprep.subr.mxu0 %v3024
    %3056 = vmatpush1.msra.mxu0 %v3023
    %3057 = vmatprep.subr.mxu0 %v3026
    %3058 = vmatpush1.msra.mxu0 %v3025
    %3059 = vmatprep.subr.mxu0 %v3028
    %3060 = vmatpush1.msra.mxu0 %v3027
    %3061 = vmatprep.subr.mxu0 %v3030
    %3062 = vmatpush1.msra.mxu0 %v3029
    %3063 = vmatprep.subr.mxu0 %v3032
    %3064 = vmatpush1.msra.mxu0 %v3031
    %3065 = vmatprep.subr.mxu0 %v3034
    %3066 = vmatpush1.msra.mxu0 %v3033
    %3067 = vmatprep.subr.mxu0 %v3036
    %3068 = vmatpush1.msra.mxu0 %v3035
    %3069 = vmatprep.subr.mxu0 %v3038
    %3070 = vmatpush1.msra.mxu0 %v3037
    %3071 = vmatprep.subr.mxu0 %v3040
    %3072 = vmatpush1.msra.mxu0 %v3039
    %3073 = vmatprep.subr.mxu0 %v3042
    %3074 = vmatpush1.msra.mxu0 %v3041
    %3075 = vmatprep.subr.mxu0 %v3044
    %3076 = vmatpush1.msra.mxu0 %v3043
    %3077 = vmatprep.subr.mxu0 %v3046
    %3078 = vmatpush1.msra.mxu0 %v3045
    %3079 = vmatprep.subr.mxu0 %v3048
    %3080 = vmatpush1.msra.mxu0 %v3047
    %3081 = vmatprep.subr.mxu0 %v3050
    %3082 = vmatpush1.msra.mxu0 %v3049
    %3083 = vmatprep.subr.mxu0 %v3052
    %3084 = vmatpush1.msra.mxu0 %v3051
    %3085 = vmatprep.subr.mxu0 0.0
    %3086 = vmatpush1.msra.mxu0 0.0
    %3087 = vmatprep.subr.mxu0 0.0
    %3088 = vmatpush1.msra.mxu0 0.0
    %3089 = vmatprep.subr.mxu0 0.0
    %3090 = vmatpush1.msra.mxu0 0.0
    %3091 = vmatprep.subr.mxu0 0.0
    %3092 = vmatpush1.msra.mxu0 0.0
    %3093 = vmatprep.subr.mxu0 0.0
    %3094 = vmatpush1.msra.mxu0 0.0
    %3095 = vmatprep.subr.mxu0 0.0
    %3096 = vmatpush1.msra.mxu0 0.0
    %3097 = vmatprep.subr.mxu0 0.0
    %3098 = vmatpush1.msra.mxu0 0.0
    %3099 = vmatprep.subr.mxu0 0.0
    %3100 = vmatpush1.msra.mxu0 0.0
    %3101 = vmatprep.subr.mxu0 0.0
    %3102 = vmatpush1.msra.mxu0 0.0
    %3103 = vmatprep.subr.mxu0 0.0
    %3104 = vmatpush1.msra.mxu0 0.0
    %3105 = vmatprep.subr.mxu0 0.0
    %3106 = vmatpush1.msra.mxu0 0.0
    %3107 = vmatprep.subr.mxu0 0.0
    %3108 = vmatpush1.msra.mxu0 0.0
    %3109 = vmatprep.subr.mxu0 0.0
    %3110 = vmatpush1.msra.mxu0 0.0
    %3111 = vmatprep.subr.mxu0 0.0
    %3112 = vmatpush1.msra.mxu0 0.0
    %3113 = vmatprep.subr.mxu0 0.0
    %3114 = vmatpush1.msra.mxu0 0.0
    %3115 = vmatprep.subr.mxu0 0.0
    %3116 = vmatpush1.msra.mxu0 0.0
    %3117 = vmatprep.mubr.f32.mxu0 0.0
    %3118 = vmatmul.mubr.f32.gmra.mrb[0].mxu0 %v2969
    %v3119 = vpop.f32.mrb[0].mxu0
    %v3120 = vadd.f32 0.0, %v3119
    %v3121 = vpop.f32.mrb[0].mxu0
    %v3122 = vadd.f32 0.0, %v3121
    %3123 = vmatprep.mubr.f32.mxu0 0.0
    %3124 = vmatmul.mubr.f32.gmra.mrb[0].mxu0 %v2974
    %v3125 = vpop.f32.mrb[0].mxu0
    %v3126 = vadd.f32 0.0, %v3125
    %v3127 = vpop.f32.mrb[0].mxu0
    %v3128 = vadd.f32 0.0, %v3127
    %3129 = vmatprep.mubr.f32.mxu0 0.0
    %3130 = vmatmul.mubr.f32.gmra.mrb[0].mxu0 %v2979
    %v3131 = vpop.f32.mrb[0].mxu0
    %v3132 = vadd.f32 0.0, %v3131
    %v3133 = vpop.f32.mrb[0].mxu0
    %v3134 = vadd.f32 0.0, %v3133
    %3135 = vmatprep.mubr.f32.mxu0 0.0
    %3136 = vmatmul.mubr.f32.gmra.mrb[0].mxu0 %v2984
    %v3137 = vpop.f32.mrb[0].mxu0
    %v3138 = vadd.f32 0.0, %v3137
    %v3139 = vpop.f32.mrb[0].mxu0
    %v3140 = vadd.f32 0.0, %v3139
    %3141 = vdwg.mxu0
    %3142 = vmatprep.subr.mxu0 %v2989
    %3143 = vmatpush1.msra.mxu0 %v2988
    %3144 = vmatprep.subr.mxu0 %v2991
    %3145 = vmatpush1.msra.mxu0 %v2990
    %3146 = vmatprep.subr.mxu0 %v2993
    %3147 = vmatpush1.msra.mxu0 %v2992
    %3148 = vmatprep.subr.mxu0 %v2995
    %3149 = vmatpush1.msra.mxu0 %v2994
    %3150 = vmatprep.subr.mxu0 %v2997
    %3151 = vmatpush1.msra.mxu0 %v2996
    %3152 = vmatprep.subr.mxu0 %v2999
    %3153 = vmatpush1.msra.mxu0 %v2998
    %3154 = vmatprep.subr.mxu0 %v3001
    %3155 = vmatpush1.msra.mxu0 %v3000
    %3156 = vmatprep.subr.mxu0 %v3003
    %3157 = vmatpush1.msra.mxu0 %v3002
    %3158 = vmatprep.subr.mxu0 %v3005
    %3159 = vmatpush1.msra.mxu0 %v3004
    %3160 = vmatprep.subr.mxu0 %v3007
    %3161 = vmatpush1.msra.mxu0 %v3006
    %3162 = vmatprep.subr.mxu0 %v3009
    %3163 = vmatpush1.msra.mxu0 %v3008
    %3164 = vmatprep.subr.mxu0 %v3011
    %3165 = vmatpush1.msra.mxu0 %v3010
    %3166 = vmatprep.subr.mxu0 %v3013
    %3167 = vmatpush1.msra.mxu0 %v3012
    %3168 = vmatprep.subr.mxu0 %v3015
    %3169 = vmatpush1.msra.mxu0 %v3014
    %3170 = vmatprep.subr.mxu0 %v3017
    %3171 = vmatpush1.msra.mxu0 %v3016
    %3172 = vmatprep.subr.mxu0 %v3019
    %3173 = vmatpush1.msra.mxu0 %v3018
    %3174 = vmatprep.subr.mxu0 0.0
    %3175 = vmatpush1.msra.mxu0 0.0
    %3176 = vmatprep.subr.mxu0 0.0
    %3177 = vmatpush1.msra.mxu0 0.0
    %3178 = vmatprep.subr.mxu0 0.0
    %3179 = vmatpush1.msra.mxu0 0.0
    %3180 = vmatprep.subr.mxu0 0.0
    %3181 = vmatpush1.msra.mxu0 0.0
    %3182 = vmatprep.subr.mxu0 0.0
    %3183 = vmatpush1.msra.mxu0 0.0
    %3184 = vmatprep.subr.mxu0 0.0
    %3185 = vmatpush1.msra.mxu0 0.0
    %3186 = vmatprep.subr.mxu0 0.0
    %3187 = vmatpush1.msra.mxu0 0.0
    %3188 = vmatprep.subr.mxu0 0.0
    %3189 = vmatpush1.msra.mxu0 0.0
    %3190 = vmatprep.subr.mxu0 0.0
    %3191 = vmatpush1.msra.mxu0 0.0
    %3192 = vmatprep.subr.mxu0 0.0
    %3193 = vmatpush1.msra.mxu0 0.0
    %3194 = vmatprep.subr.mxu0 0.0
    %3195 = vmatpush1.msra.mxu0 0.0
    %3196 = vmatprep.subr.mxu0 0.0
    %3197 = vmatpush1.msra.mxu0 0.0
    %3198 = vmatprep.subr.mxu0 0.0
    %3199 = vmatpush1.msra.mxu0 0.0
    %3200 = vmatprep.subr.mxu0 0.0
    %3201 = vmatpush1.msra.mxu0 0.0
    %3202 = vmatprep.subr.mxu0 0.0
    %3203 = vmatpush1.msra.mxu0 0.0
    %3204 = vmatprep.subr.mxu0 0.0
    %3205 = vmatpush1.msra.mxu0 0.0
    %3206 = vmatprep.mubr.f32.mxu0 0.0
    %3207 = vmatmul.mubr.f32.gmra.mrb[0].mxu0 %v2884
    %v3208 = vpop.f32.mrb[0].mxu0
    %v3209 = vadd.f32 %v3120, %v3208
    %v3210 = vpop.f32.mrb[0].mxu0
    %v3211 = vadd.f32 %v3122, %v3210
    %3212 = vmatprep.mubr.f32.mxu0 0.0
    %3213 = vmatmul.mubr.f32.gmra.mrb[0].mxu0 %v2889
    %v3214 = vpop.f32.mrb[0].mxu0
    %v3215 = vadd.f32 %v3126, %v3214
    %v3216 = vpop.f32.mrb[0].mxu0
    %v3217 = vadd.f32 %v3128, %v3216
    %3218 = vmatprep.mubr.f32.mxu0 0.0
    %3219 = vmatmul.mubr.f32.gmra.mrb[0].mxu0 %v2894
    %v3220 = vpop.f32.mrb[0].mxu0
    %v3221 = vadd.f32 %v3132, %v3220
    %v3222 = vpop.f32.mrb[0].mxu0
    %v3223 = vadd.f32 %v3134, %v3222
    %3224 = vmatprep.mubr.f32.mxu0 0.0
    %3225 = vmatmul.mubr.f32.gmra.mrb[0].mxu0 %v2899
    %v3226 = vpop.f32.mrb[0].mxu0
    %v3227 = vadd.f32 %v3138, %v3226
    %v3228 = vpop.f32.mrb[0].mxu0
    %v3229 = vadd.f32 %v3140, %v3228
    %3230 = vdwg.mxu0
    %v3231 = vadd.f32 %v2795, %v3209
    %v3232 = vadd.f32 %v2797, %v3211
    %v3233 = vadd.f32 %v2801, %v3215
    %v3234 = vadd.f32 %v2803, %v3217
    %v3235 = vadd.f32 %v2807, %v3221
    %v3236 = vadd.f32 %v2809, %v3223
    %v3237 = vadd.f32 %v2813, %v3227
    %v3238 = vadd.f32 %v2815, %v3229
    %3239 = vmatprep.subr.mxu0 0.0
    %3240 = vmatpush1.msra.mxu0 %v2393
    %3241 = vmatprep.subr.mxu0 0.0
    %3242 = vmatpush1.msra.mxu0 %v2394
    %3243 = vmatprep.subr.mxu0 0.0
    %3244 = vmatpush1.msra.mxu0 %v2395
    %3245 = vmatprep.subr.mxu0 0.0
    %3246 = vmatpush1.msra.mxu0 %v2396
    %3247 = vmatprep.subr.mxu0 0.0
    %3248 = vmatpush1.msra.mxu0 0.0
    %3249 = vmatprep.subr.mxu0 0.0
    %3250 = vmatpush1.msra.mxu0 0.0
    %3251 = vmatprep.subr.mxu0 0.0
    %3252 = vmatpush1.msra.mxu0 0.0
    %3253 = vmatprep.subr.mxu0 0.0
    %3254 = vmatpush1.msra.mxu0 0.0
    %3255 = vmatprep.subr.mxu0 0.0
    %3256 = vmatpush1.msra.mxu0 0.0
    %3257 = vmatprep.subr.mxu0 0.0
    %3258 = vmatpush1.msra.mxu0 0.0
    %3259 = vmatprep.subr.mxu0 0.0
    %3260 = vmatpush1.msra.mxu0 0.0
    %3261 = vmatprep.subr.mxu0 0.0
    %3262 = vmatpush1.msra.mxu0 0.0
    %3263 = vmatprep.subr.mxu0 0.0
    %3264 = vmatpush1.msra.mxu0 0.0
    %3265 = vmatprep.subr.mxu0 0.0
    %3266 = vmatpush1.msra.mxu0 0.0
    %3267 = vmatprep.subr.mxu0 0.0
    %3268 = vmatpush1.msra.mxu0 0.0
    %3269 = vmatprep.subr.mxu0 0.0
    %3270 = vmatpush1.msra.mxu0 0.0
    %3271 = vmatprep.subr.mxu0 0.0
    %3272 = vmatpush1.msra.mxu0 0.0
    %3273 = vmatprep.subr.mxu0 0.0
    %3274 = vmatpush1.msra.mxu0 0.0
    %3275 = vmatprep.subr.mxu0 0.0
    %3276 = vmatpush1.msra.mxu0 0.0
    %3277 = vmatprep.subr.mxu0 0.0
    %3278 = vmatpush1.msra.mxu0 0.0
    %3279 = vmatprep.subr.mxu0 0.0
    %3280 = vmatpush1.msra.mxu0 0.0
    %3281 = vmatprep.subr.mxu0 0.0
    %3282 = vmatpush1.msra.mxu0 0.0
    %3283 = vmatprep.subr.mxu0 0.0
    %3284 = vmatpush1.msra.mxu0 0.0
    %3285 = vmatprep.subr.mxu0 0.0
    %3286 = vmatpush1.msra.mxu0 0.0
    %3287 = vmatprep.subr.mxu0 0.0
    %3288 = vmatpush1.msra.mxu0 0.0
    %3289 = vmatprep.subr.mxu0 0.0
    %3290 = vmatpush1.msra.mxu0 0.0
    %3291 = vmatprep.subr.mxu0 0.0
    %3292 = vmatpush1.msra.mxu0 0.0
    %3293 = vmatprep.subr.mxu0 0.0
    %3294 = vmatpush1.msra.mxu0 0.0
    %3295 = vmatprep.subr.mxu0 0.0
    %3296 = vmatpush1.msra.mxu0 0.0
    %3297 = vmatprep.subr.mxu0 0.0
    %3298 = vmatpush1.msra.mxu0 0.0
    %3299 = vmatprep.subr.mxu0 0.0
    %3300 = vmatpush1.msra.mxu0 0.0
    %3301 = vmatprep.subr.mxu0 0.0
    %3302 = vmatpush1.msra.mxu0 0.0
    %3303 = vmatprep.mubr.f32.mxu0 0.0
    %3304 = vmatmul.mubr.f32.gmra.mrb[0].mxu0 %v1037
    %v3305 = vpop.f32.mrb[0].mxu0
    %v3306 = vadd.f32 0.0, %v3305
    %v3307 = vpop.f32.mrb[0].mxu0
    %3308 = vmatprep.mubr.f32.mxu0 0.0
    %3309 = vmatmul.mubr.f32.gmra.mrb[0].mxu0 %v1040
    %v3310 = vpop.f32.mrb[0].mxu0
    %v3311 = vadd.f32 0.0, %v3310
    %v3312 = vpop.f32.mrb[0].mxu0
    %3313 = vmatprep.mubr.f32.mxu0 0.0
    %3314 = vmatmul.mubr.f32.gmra.mrb[0].mxu0 %v1043
    %v3315 = vpop.f32.mrb[0].mxu0
    %v3316 = vadd.f32 0.0, %v3315
    %v3317 = vpop.f32.mrb[0].mxu0
    %3318 = vmatprep.mubr.f32.mxu0 0.0
    %3319 = vmatmul.mubr.f32.gmra.mrb[0].mxu0 %v1046
    %v3320 = vpop.f32.mrb[0].mxu0
    %v3321 = vadd.f32 0.0, %v3320
    %v3322 = vpop.f32.mrb[0].mxu0
    %3323 = vdwg.mxu0
    %3324 = vmatprep.subr.mxu0 0.0
    %3325 = vmatpush1.msra.mxu0 %v2401
    %3326 = vmatprep.subr.mxu0 0.0
    %3327 = vmatpush1.msra.mxu0 %v2402
    %3328 = vmatprep.subr.mxu0 0.0
    %3329 = vmatpush1.msra.mxu0 %v2403
    %3330 = vmatprep.subr.mxu0 0.0
    %3331 = vmatpush1.msra.mxu0 %v2404
    %3332 = vmatprep.subr.mxu0 0.0
    %3333 = vmatpush1.msra.mxu0 0.0
    %3334 = vmatprep.subr.mxu0 0.0
    %3335 = vmatpush1.msra.mxu0 0.0
    %3336 = vmatprep.subr.mxu0 0.0
    %3337 = vmatpush1.msra.mxu0 0.0
    %3338 = vmatprep.subr.mxu0 0.0
    %3339 = vmatpush1.msra.mxu0 0.0
    %3340 = vmatprep.subr.mxu0 0.0
    %3341 = vmatpush1.msra.mxu0 0.0
    %3342 = vmatprep.subr.mxu0 0.0
    %3343 = vmatpush1.msra.mxu0 0.0
    %3344 = vmatprep.subr.mxu0 0.0
    %3345 = vmatpush1.msra.mxu0 0.0
    %3346 = vmatprep.subr.mxu0 0.0
    %3347 = vmatpush1.msra.mxu0 0.0
    %3348 = vmatprep.subr.mxu0 0.0
    %3349 = vmatpush1.msra.mxu0 0.0
    %3350 = vmatprep.subr.mxu0 0.0
    %3351 = vmatpush1.msra.mxu0 0.0
    %3352 = vmatprep.subr.mxu0 0.0
    %3353 = vmatpush1.msra.mxu0 0.0
    %3354 = vmatprep.subr.mxu0 0.0
    %3355 = vmatpush1.msra.mxu0 0.0
    %3356 = vmatprep.subr.mxu0 0.0
    %3357 = vmatpush1.msra.mxu0 0.0
    %3358 = vmatprep.subr.mxu0 0.0
    %3359 = vmatpush1.msra.mxu0 0.0
    %3360 = vmatprep.subr.mxu0 0.0
    %3361 = vmatpush1.msra.mxu0 0.0
    %3362 = vmatprep.subr.mxu0 0.0
    %3363 = vmatpush1.msra.mxu0 0.0
    %3364 = vmatprep.subr.mxu0 0.0
    %3365 = vmatpush1.msra.mxu0 0.0
    %3366 = vmatprep.subr.mxu0 0.0
    %3367 = vmatpush1.msra.mxu0 0.0
    %3368 = vmatprep.subr.mxu0 0.0
    %3369 = vmatpush1.msra.mxu0 0.0
    %3370 = vmatprep.subr.mxu0 0.0
    %3371 = vmatpush1.msra.mxu0 0.0
    %3372 = vmatprep.subr.mxu0 0.0
    %3373 = vmatpush1.msra.mxu0 0.0
    %3374 = vmatprep.subr.mxu0 0.0
    %3375 = vmatpush1.msra.mxu0 0.0
    %3376 = vmatprep.subr.mxu0 0.0
    %3377 = vmatpush1.msra.mxu0 0.0
    %3378 = vmatprep.subr.mxu0 0.0
    %3379 = vmatpush1.msra.mxu0 0.0
    %3380 = vmatprep.subr.mxu0 0.0
    %3381 = vmatpush1.msra.mxu0 0.0
    %3382 = vmatprep.subr.mxu0 0.0
    %3383 = vmatpush1.msra.mxu0 0.0
    %3384 = vmatprep.subr.mxu0 0.0
    %3385 = vmatpush1.msra.mxu0 0.0
    %3386 = vmatprep.subr.mxu0 0.0
    %3387 = vmatpush1.msra.mxu0 0.0
    %3388 = vmatprep.mubr.f32.mxu0 0.0
    %3389 = vmatmul.mubr.f32.gmra.mrb[0].mxu0 %v1037
    %v3390 = vpop.f32.mrb[0].mxu0
    %v3391 = vadd.f32 0.0, %v3390
    %v3392 = vpop.f32.mrb[0].mxu0
    %3393 = vmatprep.mubr.f32.mxu0 0.0
    %3394 = vmatmul.mubr.f32.gmra.mrb[0].mxu0 %v1040
    %v3395 = vpop.f32.mrb[0].mxu0
    %v3396 = vadd.f32 0.0, %v3395
    %v3397 = vpop.f32.mrb[0].mxu0
    %3398 = vmatprep.mubr.f32.mxu0 0.0
    %3399 = vmatmul.mubr.f32.gmra.mrb[0].mxu0 %v1043
    %v3400 = vpop.f32.mrb[0].mxu0
    %v3401 = vadd.f32 0.0, %v3400
    %v3402 = vpop.f32.mrb[0].mxu0
    %3403 = vmatprep.mubr.f32.mxu0 0.0
    %3404 = vmatmul.mubr.f32.gmra.mrb[0].mxu0 %v1046
    %v3405 = vpop.f32.mrb[0].mxu0
    %v3406 = vadd.f32 0.0, %v3405
    %v3407 = vpop.f32.mrb[0].mxu0
    %3408 = vdwg.mxu0
    %s3409 = scalar_lea.vmem [#allocation11], 512
    %v3410 = vld [vmem:[%s3409] sm:$0xff]
    %v3411 = vld [vmem:[%s3409 + $0x8] sm:$0xff]
    %v3412 = vld [vmem:[%s3409 + $0x10] sm:$0xff]
    %v3413 = vld [vmem:[%s3409 + $0x18] sm:$0xff]
    %v3414 = vld [vmem:[%s3409 + $0x20] sm:$0xff]
    %v3415 = vld [vmem:[%s3409 + $0x28] sm:$0xff]
    %v3416 = vld [vmem:[%s3409 + $0x30] sm:$0xff]
    %v3417 = vld [vmem:[%s3409 + $0x38] sm:$0xff]
    %v3418 = vld [vmem:[%s3409 + $0x40] sm:$0xff]
    %v3419 = vld [vmem:[%s3409 + $0x48] sm:$0xff]
    %v3420 = vld [vmem:[%s3409 + $0x50] sm:$0xff]
    %v3421 = vld [vmem:[%s3409 + $0x58] sm:$0xff]
    %v3422 = vld [vmem:[%s3409 + $0x60] sm:$0xff]
    %v3423 = vld [vmem:[%s3409 + $0x68] sm:$0xff]
    %v3424 = vld [vmem:[%s3409 + $0x70] sm:$0xff]
    %v3425 = vld [vmem:[%s3409 + $0x78] sm:$0xff]
    %v3426 = vld [vmem:[%s3409 + $0x80] sm:$0xff]
    %v3427 = vld [vmem:[%s3409 + $0x88] sm:$0xff]
    %v3428 = vld [vmem:[%s3409 + $0x90] sm:$0xff]
    %v3429 = vld [vmem:[%s3409 + $0x98] sm:$0xff]
    %v3430 = vld [vmem:[%s3409 + $0xa0] sm:$0xff]
    %v3431 = vld [vmem:[%s3409 + $0xa8] sm:$0xff]
    %v3432 = vld [vmem:[%s3409 + $0xb0] sm:$0xff]
    %v3433 = vld [vmem:[%s3409 + $0xb8] sm:$0xff]
    %v3434 = vld [vmem:[%s3409 + $0xc0] sm:$0xff]
    %v3435 = vld [vmem:[%s3409 + $0xc8] sm:$0xff]
    %v3436 = vld [vmem:[%s3409 + $0xd0] sm:$0xff]
    %v3437 = vld [vmem:[%s3409 + $0xd8] sm:$0xff]
    %v3438 = vld [vmem:[%s3409 + $0xe0] sm:$0xff]
    %v3439 = vld [vmem:[%s3409 + $0xe8] sm:$0xff]
    %v3440 = vld [vmem:[%s3409 + $0xf0] sm:$0xff]
    %v3441 = vld [vmem:[%s3409 + $0xf8] sm:$0xff]
    %s3442 = scalar_lea.vmem [#allocation13], 512
    %v3443 = vld [vmem:[%s3442] sm:$0xff]
    %v3444 = vld [vmem:[%s3442 + $0x8] sm:$0xff]
    %v3445 = vld [vmem:[%s3442 + $0x10] sm:$0xff]
    %v3446 = vld [vmem:[%s3442 + $0x18] sm:$0xff]
    %v3447 = vld [vmem:[%s3442 + $0x20] sm:$0xff]
    %v3448 = vld [vmem:[%s3442 + $0x28] sm:$0xff]
    %v3449 = vld [vmem:[%s3442 + $0x30] sm:$0xff]
    %v3450 = vld [vmem:[%s3442 + $0x38] sm:$0xff]
    %v3451 = vld [vmem:[%s3442 + $0x40] sm:$0xff]
    %v3452 = vld [vmem:[%s3442 + $0x48] sm:$0xff]
    %v3453 = vld [vmem:[%s3442 + $0x50] sm:$0xff]
    %v3454 = vld [vmem:[%s3442 + $0x58] sm:$0xff]
    %v3455 = vld [vmem:[%s3442 + $0x60] sm:$0xff]
    %v3456 = vld [vmem:[%s3442 + $0x68] sm:$0xff]
    %v3457 = vld [vmem:[%s3442 + $0x70] sm:$0xff]
    %v3458 = vld [vmem:[%s3442 + $0x78] sm:$0xff]
    %v3459 = vld [vmem:[%s3442 + $0x80] sm:$0xff]
    %v3460 = vld [vmem:[%s3442 + $0x88] sm:$0xff]
    %v3461 = vld [vmem:[%s3442 + $0x90] sm:$0xff]
    %v3462 = vld [vmem:[%s3442 + $0x98] sm:$0xff]
    %v3463 = vld [vmem:[%s3442 + $0xa0] sm:$0xff]
    %v3464 = vld [vmem:[%s3442 + $0xa8] sm:$0xff]
    %v3465 = vld [vmem:[%s3442 + $0xb0] sm:$0xff]
    %v3466 = vld [vmem:[%s3442 + $0xb8] sm:$0xff]
    %v3467 = vld [vmem:[%s3442 + $0xc0] sm:$0xff]
    %v3468 = vld [vmem:[%s3442 + $0xc8] sm:$0xff]
    %v3469 = vld [vmem:[%s3442 + $0xd0] sm:$0xff]
    %v3470 = vld [vmem:[%s3442 + $0xd8] sm:$0xff]
    %v3471 = vld [vmem:[%s3442 + $0xe0] sm:$0xff]
    %v3472 = vld [vmem:[%s3442 + $0xe8] sm:$0xff]
    %v3473 = vld [vmem:[%s3442 + $0xf0] sm:$0xff]
    %v3474 = vld [vmem:[%s3442 + $0xf8] sm:$0xff]
    %3475 = vmatprep.subr.mxu0 %v3444
    %3476 = vmatpush1.msra.mxu0 %v3443
    %3477 = vmatprep.subr.mxu0 %v3446
    %3478 = vmatpush1.msra.mxu0 %v3445
    %3479 = vmatprep.subr.mxu0 %v3448
    %3480 = vmatpush1.msra.mxu0 %v3447
    %3481 = vmatprep.subr.mxu0 %v3450
    %3482 = vmatpush1.msra.mxu0 %v3449
    %3483 = vmatprep.subr.mxu0 %v3452
    %3484 = vmatpush1.msra.mxu0 %v3451
    %3485 = vmatprep.subr.mxu0 %v3454
    %3486 = vmatpush1.msra.mxu0 %v3453
    %3487 = vmatprep.subr.mxu0 %v3456
    %3488 = vmatpush1.msra.mxu0 %v3455
    %3489 = vmatprep.subr.mxu0 %v3458
    %3490 = vmatpush1.msra.mxu0 %v3457
    %3491 = vmatprep.subr.mxu0 %v3460
    %3492 = vmatpush1.msra.mxu0 %v3459
    %3493 = vmatprep.subr.mxu0 %v3462
    %3494 = vmatpush1.msra.mxu0 %v3461
    %3495 = vmatprep.subr.mxu0 %v3464
    %3496 = vmatpush1.msra.mxu0 %v3463
    %3497 = vmatprep.subr.mxu0 %v3466
    %3498 = vmatpush1.msra.mxu0 %v3465
    %3499 = vmatprep.subr.mxu0 %v3468
    %3500 = vmatpush1.msra.mxu0 %v3467
    %3501 = vmatprep.subr.mxu0 %v3470
    %3502 = vmatpush1.msra.mxu0 %v3469
    %3503 = vmatprep.subr.mxu0 %v3472
    %3504 = vmatpush1.msra.mxu0 %v3471
    %3505 = vmatprep.subr.mxu0 %v3474
    %3506 = vmatpush1.msra.mxu0 %v3473
    %3507 = vmatprep.subr.mxu0 0.0
    %3508 = vmatpush1.msra.mxu0 0.0
    %3509 = vmatprep.subr.mxu0 0.0
    %3510 = vmatpush1.msra.mxu0 0.0
    %3511 = vmatprep.subr.mxu0 0.0
    %3512 = vmatpush1.msra.mxu0 0.0
    %3513 = vmatprep.subr.mxu0 0.0
    %3514 = vmatpush1.msra.mxu0 0.0
    %3515 = vmatprep.subr.mxu0 0.0
    %3516 = vmatpush1.msra.mxu0 0.0
    %3517 = vmatprep.subr.mxu0 0.0
    %3518 = vmatpush1.msra.mxu0 0.0
    %3519 = vmatprep.subr.mxu0 0.0
    %3520 = vmatpush1.msra.mxu0 0.0
    %3521 = vmatprep.subr.mxu0 0.0
    %3522 = vmatpush1.msra.mxu0 0.0
    %3523 = vmatprep.subr.mxu0 0.0
    %3524 = vmatpush1.msra.mxu0 0.0
    %3525 = vmatprep.subr.mxu0 0.0
    %3526 = vmatpush1.msra.mxu0 0.0
    %3527 = vmatprep.subr.mxu0 0.0
    %3528 = vmatpush1.msra.mxu0 0.0
    %3529 = vmatprep.subr.mxu0 0.0
    %3530 = vmatpush1.msra.mxu0 0.0
    %3531 = vmatprep.subr.mxu0 0.0
    %3532 = vmatpush1.msra.mxu0 0.0
    %3533 = vmatprep.subr.mxu0 0.0
    %3534 = vmatpush1.msra.mxu0 0.0
    %3535 = vmatprep.subr.mxu0 0.0
    %3536 = vmatpush1.msra.mxu0 0.0
    %3537 = vmatprep.subr.mxu0 0.0
    %3538 = vmatpush1.msra.mxu0 0.0
    %3539 = vmatprep.mubr.f32.mxu0 0.0
    %3540 = vmatmul.mubr.f32.gmra.mrb[0].mxu0 %v3391
    %v3541 = vpop.f32.mrb[0].mxu0
    %v3542 = vadd.f32 0.0, %v3541
    %v3543 = vpop.f32.mrb[0].mxu0
    %v3544 = vadd.f32 0.0, %v3543
    %3545 = vmatprep.mubr.f32.mxu0 0.0
    %3546 = vmatmul.mubr.f32.gmra.mrb[0].mxu0 %v3396
    %v3547 = vpop.f32.mrb[0].mxu0
    %v3548 = vadd.f32 0.0, %v3547
    %v3549 = vpop.f32.mrb[0].mxu0
    %v3550 = vadd.f32 0.0, %v3549
    %3551 = vmatprep.mubr.f32.mxu0 0.0
    %3552 = vmatmul.mubr.f32.gmra.mrb[0].mxu0 %v3401
    %v3553 = vpop.f32.mrb[0].mxu0
    %v3554 = vadd.f32 0.0, %v3553
    %v3555 = vpop.f32.mrb[0].mxu0
    %v3556 = vadd.f32 0.0, %v3555
    %3557 = vmatprep.mubr.f32.mxu0 0.0
    %3558 = vmatmul.mubr.f32.gmra.mrb[0].mxu0 %v3406
    %v3559 = vpop.f32.mrb[0].mxu0
    %v3560 = vadd.f32 0.0, %v3559
    %v3561 = vpop.f32.mrb[0].mxu0
    %v3562 = vadd.f32 0.0, %v3561
    %3563 = vdwg.mxu0
    %3564 = vmatprep.subr.mxu0 %v3411
    %3565 = vmatpush1.msra.mxu0 %v3410
    %3566 = vmatprep.subr.mxu0 %v3413
    %3567 = vmatpush1.msra.mxu0 %v3412
    %3568 = vmatprep.subr.mxu0 %v3415
    %3569 = vmatpush1.msra.mxu0 %v3414
    %3570 = vmatprep.subr.mxu0 %v3417
    %3571 = vmatpush1.msra.mxu0 %v3416
    %3572 = vmatprep.subr.mxu0 %v3419
    %3573 = vmatpush1.msra.mxu0 %v3418
    %3574 = vmatprep.subr.mxu0 %v3421
    %3575 = vmatpush1.msra.mxu0 %v3420
    %3576 = vmatprep.subr.mxu0 %v3423
    %3577 = vmatpush1.msra.mxu0 %v3422
    %3578 = vmatprep.subr.mxu0 %v3425
    %3579 = vmatpush1.msra.mxu0 %v3424
    %3580 = vmatprep.subr.mxu0 %v3427
    %3581 = vmatpush1.msra.mxu0 %v3426
    %3582 = vmatprep.subr.mxu0 %v3429
    %3583 = vmatpush1.msra.mxu0 %v3428
    %3584 = vmatprep.subr.mxu0 %v3431
    %3585 = vmatpush1.msra.mxu0 %v3430
    %3586 = vmatprep.subr.mxu0 %v3433
    %3587 = vmatpush1.msra.mxu0 %v3432
    %3588 = vmatprep.subr.mxu0 %v3435
    %3589 = vmatpush1.msra.mxu0 %v3434
    %3590 = vmatprep.subr.mxu0 %v3437
    %3591 = vmatpush1.msra.mxu0 %v3436
    %3592 = vmatprep.subr.mxu0 %v3439
    %3593 = vmatpush1.msra.mxu0 %v3438
    %3594 = vmatprep.subr.mxu0 %v3441
    %3595 = vmatpush1.msra.mxu0 %v3440
    %3596 = vmatprep.subr.mxu0 0.0
    %3597 = vmatpush1.msra.mxu0 0.0
    %3598 = vmatprep.subr.mxu0 0.0
    %3599 = vmatpush1.msra.mxu0 0.0
    %3600 = vmatprep.subr.mxu0 0.0
    %3601 = vmatpush1.msra.mxu0 0.0
    %3602 = vmatprep.subr.mxu0 0.0
    %3603 = vmatpush1.msra.mxu0 0.0
    %3604 = vmatprep.subr.mxu0 0.0
    %3605 = vmatpush1.msra.mxu0 0.0
    %3606 = vmatprep.subr.mxu0 0.0
    %3607 = vmatpush1.msra.mxu0 0.0
    %3608 = vmatprep.subr.mxu0 0.0
    %3609 = vmatpush1.msra.mxu0 0.0
    %3610 = vmatprep.subr.mxu0 0.0
    %3611 = vmatpush1.msra.mxu0 0.0
    %3612 = vmatprep.subr.mxu0 0.0
    %3613 = vmatpush1.msra.mxu0 0.0
    %3614 = vmatprep.subr.mxu0 0.0
    %3615 = vmatpush1.msra.mxu0 0.0
    %3616 = vmatprep.subr.mxu0 0.0
    %3617 = vmatpush1.msra.mxu0 0.0
    %3618 = vmatprep.subr.mxu0 0.0
    %3619 = vmatpush1.msra.mxu0 0.0
    %3620 = vmatprep.subr.mxu0 0.0
    %3621 = vmatpush1.msra.mxu0 0.0
    %3622 = vmatprep.subr.mxu0 0.0
    %3623 = vmatpush1.msra.mxu0 0.0
    %3624 = vmatprep.subr.mxu0 0.0
    %3625 = vmatpush1.msra.mxu0 0.0
    %3626 = vmatprep.subr.mxu0 0.0
    %3627 = vmatpush1.msra.mxu0 0.0
    %3628 = vmatprep.mubr.f32.mxu0 0.0
    %3629 = vmatmul.mubr.f32.gmra.mrb[0].mxu0 %v3306
    %v3630 = vpop.f32.mrb[0].mxu0
    %v3631 = vadd.f32 %v3542, %v3630
    %v3632 = vpop.f32.mrb[0].mxu0
    %v3633 = vadd.f32 %v3544, %v3632
    %3634 = vmatprep.mubr.f32.mxu0 0.0
    %3635 = vmatmul.mubr.f32.gmra.mrb[0].mxu0 %v3311
    %v3636 = vpop.f32.mrb[0].mxu0
    %v3637 = vadd.f32 %v3548, %v3636
    %v3638 = vpop.f32.mrb[0].mxu0
    %v3639 = vadd.f32 %v3550, %v3638
    %3640 = vmatprep.mubr.f32.mxu0 0.0
    %3641 = vmatmul.mubr.f32.gmra.mrb[0].mxu0 %v3316
    %v3642 = vpop.f32.mrb[0].mxu0
    %v3643 = vadd.f32 %v3554, %v3642
    %v3644 = vpop.f32.mrb[0].mxu0
    %v3645 = vadd.f32 %v3556, %v3644
    %3646 = vmatprep.mubr.f32.mxu0 0.0
    %3647 = vmatmul.mubr.f32.gmra.mrb[0].mxu0 %v3321
    %v3648 = vpop.f32.mrb[0].mxu0
    %v3649 = vadd.f32 %v3560, %v3648
    %v3650 = vpop.f32.mrb[0].mxu0
    %v3651 = vadd.f32 %v3562, %v3650
    %3652 = vdwg.mxu0
    %v3653 = vadd.f32 %v3231, %v3631
    %v3654 = vadd.f32 %v3232, %v3633
    %v3655 = vadd.f32 %v3233, %v3637
    %v3656 = vadd.f32 %v3234, %v3639
    %v3657 = vadd.f32 %v3235, %v3643
    %v3658 = vadd.f32 %v3236, %v3645
    %v3659 = vadd.f32 %v3237, %v3649
    %v3660 = vadd.f32 %v3238, %v3651
    %v3661 = vld [vmem:[%s12] sm:$0x3]
    %v3663 = vlaneseq
    %v3664 = vshrl.u32 %v3663, 7
    %v3665 = vsub.s32 0, %v3664
    %v3666 = vrot.slane %v3661, %v3665
    %v3667 = vlaneseq
    %v3668 = vshrl.u32 %v3667, 7
    %v3669 = vsub.s32 1, %v3668
    %v3670 = vrot.slane %v3661, %v3669
    %v3673 = vadd.f32 %v3653, %v3666
    %v3674 = vadd.f32 %v3654, %v3670
    %v3675 = vadd.f32 %v3655, %v3666
    %v3676 = vadd.f32 %v3656, %v3670
    %v3677 = vadd.f32 %v3657, %v3666
    %v3678 = vadd.f32 %v3658, %v3670
    %v3679 = vadd.f32 %v3659, %v3666
    %v3680 = vadd.f32 %v3660, %v3670
    %v3681 = vxor.u32 %v3673, 2147483648
    %v3682 = vxor.u32 %v3674, 2147483648
    %v3683 = vxor.u32 %v3675, 2147483648
    %v3684 = vxor.u32 %v3676, 2147483648
    %v3685 = vxor.u32 %v3677, 2147483648
    %v3686 = vxor.u32 %v3678, 2147483648
    %v3687 = vxor.u32 %v3679, 2147483648
    %v3688 = vxor.u32 %v3680, 2147483648
    %v3689 = vmul.f32 %v3681, 1.442695
    %v3690 = vpow.pop %v3689
    %v3691 = vmul.f32 %v3682, 1.442695
    %v3692 = vpow.pop %v3691
    %v3693 = vmul.f32 %v3683, 1.442695
    %v3694 = vpow.pop %v3693
    %v3695 = vmul.f32 %v3684, 1.442695
    %v3696 = vpow.pop %v3695
    %v3697 = vmul.f32 %v3685, 1.442695
    %v3698 = vpow.pop %v3697
    %v3699 = vmul.f32 %v3686, 1.442695
    %v3700 = vpow.pop %v3699
    %v3701 = vmul.f32 %v3687, 1.442695
    %v3702 = vpow.pop %v3701
    %v3703 = vmul.f32 %v3688, 1.442695
    %v3704 = vpow.pop %v3703
    %v3705 = vadd.f32 %v3690, 1.0
    %v3706 = vadd.f32 %v3692, 1.0
    %v3707 = vadd.f32 %v3694, 1.0
    %v3708 = vadd.f32 %v3696, 1.0
    %v3709 = vadd.f32 %v3698, 1.0
    %v3710 = vadd.f32 %v3700, 1.0
    %v3711 = vadd.f32 %v3702, 1.0
    %v3712 = vadd.f32 %v3704, 1.0
    %v3713 = vrcp.pop %v3705
    %v3714 = vmul.f32 1.0, %v3713
    %v3715 = vrcp.pop %v3706
    %v3716 = vmul.f32 1.0, %v3715
    %v3717 = vrcp.pop %v3707
    %v3718 = vmul.f32 1.0, %v3717
    %v3719 = vrcp.pop %v3708
    %v3720 = vmul.f32 1.0, %v3719
    %v3721 = vrcp.pop %v3709
    %v3722 = vmul.f32 1.0, %v3721
    %v3723 = vrcp.pop %v3710
    %v3724 = vmul.f32 1.0, %v3723
    %v3725 = vrcp.pop %v3711
    %v3726 = vmul.f32 1.0, %v3725
    %v3727 = vrcp.pop %v3712
    %v3728 = vmul.f32 1.0, %v3727
    %v3729 = vmul.f32 %v3716, %v2401
    %v3730 = vmul.f32 %v3720, %v2402
    %v3731 = vmul.f32 %v3724, %v2403
    %v3732 = vmul.f32 %v3728, %v2404
    %3733 = vmatprep.subr.mxu0 0.0
    %3734 = vmatpush1.msra.mxu0 %v3729
    %3735 = vmatprep.subr.mxu0 0.0
    %3736 = vmatpush1.msra.mxu0 %v3730
    %3737 = vmatprep.subr.mxu0 0.0
    %3738 = vmatpush1.msra.mxu0 %v3731
    %3739 = vmatprep.subr.mxu0 0.0
    %3740 = vmatpush1.msra.mxu0 %v3732
    %3741 = vmatprep.subr.mxu0 0.0
    %3742 = vmatpush1.msra.mxu0 0.0
    %3743 = vmatprep.subr.mxu0 0.0
    %3744 = vmatpush1.msra.mxu0 0.0
    %3745 = vmatprep.subr.mxu0 0.0
    %3746 = vmatpush1.msra.mxu0 0.0
    %3747 = vmatprep.subr.mxu0 0.0
    %3748 = vmatpush1.msra.mxu0 0.0
    %3749 = vmatprep.subr.mxu0 0.0
    %3750 = vmatpush1.msra.mxu0 0.0
    %3751 = vmatprep.subr.mxu0 0.0
    %3752 = vmatpush1.msra.mxu0 0.0
    %3753 = vmatprep.subr.mxu0 0.0
    %3754 = vmatpush1.msra.mxu0 0.0
    %3755 = vmatprep.subr.mxu0 0.0
    %3756 = vmatpush1.msra.mxu0 0.0
    %3757 = vmatprep.subr.mxu0 0.0
    %3758 = vmatpush1.msra.mxu0 0.0
    %3759 = vmatprep.subr.mxu0 0.0
    %3760 = vmatpush1.msra.mxu0 0.0
    %3761 = vmatprep.subr.mxu0 0.0
    %3762 = vmatpush1.msra.mxu0 0.0
    %3763 = vmatprep.subr.mxu0 0.0
    %3764 = vmatpush1.msra.mxu0 0.0
    %3765 = vmatprep.subr.mxu0 0.0
    %3766 = vmatpush1.msra.mxu0 0.0
    %3767 = vmatprep.subr.mxu0 0.0
    %3768 = vmatpush1.msra.mxu0 0.0
    %3769 = vmatprep.subr.mxu0 0.0
    %3770 = vmatpush1.msra.mxu0 0.0
    %3771 = vmatprep.subr.mxu0 0.0
    %3772 = vmatpush1.msra.mxu0 0.0
    %3773 = vmatprep.subr.mxu0 0.0
    %3774 = vmatpush1.msra.mxu0 0.0
    %3775 = vmatprep.subr.mxu0 0.0
    %3776 = vmatpush1.msra.mxu0 0.0
    %3777 = vmatprep.subr.mxu0 0.0
    %3778 = vmatpush1.msra.mxu0 0.0
    %3779 = vmatprep.subr.mxu0 0.0
    %3780 = vmatpush1.msra.mxu0 0.0
    %3781 = vmatprep.subr.mxu0 0.0
    %3782 = vmatpush1.msra.mxu0 0.0
    %3783 = vmatprep.subr.mxu0 0.0
    %3784 = vmatpush1.msra.mxu0 0.0
    %3785 = vmatprep.subr.mxu0 0.0
    %3786 = vmatpush1.msra.mxu0 0.0
    %3787 = vmatprep.subr.mxu0 0.0
    %3788 = vmatpush1.msra.mxu0 0.0
    %3789 = vmatprep.subr.mxu0 0.0
    %3790 = vmatpush1.msra.mxu0 0.0
    %3791 = vmatprep.subr.mxu0 0.0
    %3792 = vmatpush1.msra.mxu0 0.0
    %3793 = vmatprep.subr.mxu0 0.0
    %3794 = vmatpush1.msra.mxu0 0.0
    %3795 = vmatprep.subr.mxu0 0.0
    %3796 = vmatpush1.msra.mxu0 0.0
    %3797 = vmatprep.mubr.f32.mxu0 0.0
    %3798 = vmatmul.mubr.f32.gmra.mrb[0].mxu0 %v203
    %v3799 = vpop.f32.mrb[0].mxu0
    %v3800 = vadd.f32 0.0, %v3799
    %v3801 = vpop.f32.mrb[0].mxu0
    %3802 = vmatprep.mubr.f32.mxu0 0.0
    %3803 = vmatmul.mubr.f32.gmra.mrb[0].mxu0 %v206
    %v3804 = vpop.f32.mrb[0].mxu0
    %v3805 = vadd.f32 0.0, %v3804
    %v3806 = vpop.f32.mrb[0].mxu0
    %3807 = vmatprep.mubr.f32.mxu0 0.0
    %3808 = vmatmul.mubr.f32.gmra.mrb[0].mxu0 %v209
    %v3809 = vpop.f32.mrb[0].mxu0
    %v3810 = vadd.f32 0.0, %v3809
    %v3811 = vpop.f32.mrb[0].mxu0
    %3812 = vmatprep.mubr.f32.mxu0 0.0
    %3813 = vmatmul.mubr.f32.gmra.mrb[0].mxu0 %v212
    %v3814 = vpop.f32.mrb[0].mxu0
    %v3815 = vadd.f32 0.0, %v3814
    %v3816 = vpop.f32.mrb[0].mxu0
    %3817 = vdwg.mxu0
    %v3818 = vld [vmem:[#allocation14] sm:$0xff]
    %v3819 = vld [vmem:[#allocation14 + $0x8] sm:$0xff]
    %v3820 = vld [vmem:[#allocation14 + $0x10] sm:$0xff]
    %v3821 = vld [vmem:[#allocation14 + $0x18] sm:$0xff]
    %v3822 = vld [vmem:[#allocation14 + $0x20] sm:$0xff]
    %v3823 = vld [vmem:[#allocation14 + $0x28] sm:$0xff]
    %v3824 = vld [vmem:[#allocation14 + $0x30] sm:$0xff]
    %v3825 = vld [vmem:[#allocation14 + $0x38] sm:$0xff]
    %v3826 = vld [vmem:[#allocation14 + $0x40] sm:$0xff]
    %v3827 = vld [vmem:[#allocation14 + $0x48] sm:$0xff]
    %v3828 = vld [vmem:[#allocation14 + $0x50] sm:$0xff]
    %v3829 = vld [vmem:[#allocation14 + $0x58] sm:$0xff]
    %v3830 = vld [vmem:[#allocation14 + $0x60] sm:$0xff]
    %v3831 = vld [vmem:[#allocation14 + $0x68] sm:$0xff]
    %v3832 = vld [vmem:[#allocation14 + $0x70] sm:$0xff]
    %v3833 = vld [vmem:[#allocation14 + $0x78] sm:$0xff]
    %v3834 = vld [vmem:[#allocation16] sm:$0xff]
    %v3835 = vld [vmem:[#allocation16 + $0x8] sm:$0xff]
    %v3836 = vld [vmem:[#allocation16 + $0x10] sm:$0xff]
    %v3837 = vld [vmem:[#allocation16 + $0x18] sm:$0xff]
    %v3838 = vld [vmem:[#allocation16 + $0x20] sm:$0xff]
    %v3839 = vld [vmem:[#allocation16 + $0x28] sm:$0xff]
    %v3840 = vld [vmem:[#allocation16 + $0x30] sm:$0xff]
    %v3841 = vld [vmem:[#allocation16 + $0x38] sm:$0xff]
    %v3842 = vld [vmem:[#allocation16 + $0x40] sm:$0xff]
    %v3843 = vld [vmem:[#allocation16 + $0x48] sm:$0xff]
    %v3844 = vld [vmem:[#allocation16 + $0x50] sm:$0xff]
    %v3845 = vld [vmem:[#allocation16 + $0x58] sm:$0xff]
    %v3846 = vld [vmem:[#allocation16 + $0x60] sm:$0xff]
    %v3847 = vld [vmem:[#allocation16 + $0x68] sm:$0xff]
    %v3848 = vld [vmem:[#allocation16 + $0x70] sm:$0xff]
    %v3849 = vld [vmem:[#allocation16 + $0x78] sm:$0xff]
    %3850 = vmatprep.subr.mxu0 0.0
    %3851 = vmatpush1.msra.mxu0 %v3834
    %3852 = vmatprep.subr.mxu0 0.0
    %3853 = vmatpush1.msra.mxu0 %v3835
    %3854 = vmatprep.subr.mxu0 0.0
    %3855 = vmatpush1.msra.mxu0 %v3836
    %3856 = vmatprep.subr.mxu0 0.0
    %3857 = vmatpush1.msra.mxu0 %v3837
    %3858 = vmatprep.subr.mxu0 0.0
    %3859 = vmatpush1.msra.mxu0 %v3838
    %3860 = vmatprep.subr.mxu0 0.0
    %3861 = vmatpush1.msra.mxu0 %v3839
    %3862 = vmatprep.subr.mxu0 0.0
    %3863 = vmatpush1.msra.mxu0 %v3840
    %3864 = vmatprep.subr.mxu0 0.0
    %3865 = vmatpush1.msra.mxu0 %v3841
    %3866 = vmatprep.subr.mxu0 0.0
    %3867 = vmatpush1.msra.mxu0 %v3842
    %3868 = vmatprep.subr.mxu0 0.0
    %3869 = vmatpush1.msra.mxu0 %v3843
    %3870 = vmatprep.subr.mxu0 0.0
    %3871 = vmatpush1.msra.mxu0 %v3844
    %3872 = vmatprep.subr.mxu0 0.0
    %3873 = vmatpush1.msra.mxu0 %v3845
    %3874 = vmatprep.subr.mxu0 0.0
    %3875 = vmatpush1.msra.mxu0 %v3846
    %3876 = vmatprep.subr.mxu0 0.0
    %3877 = vmatpush1.msra.mxu0 %v3847
    %3878 = vmatprep.subr.mxu0 0.0
    %3879 = vmatpush1.msra.mxu0 %v3848
    %3880 = vmatprep.subr.mxu0 0.0
    %3881 = vmatpush1.msra.mxu0 %v3849
    %3882 = vmatprep.subr.mxu0 0.0
    %3883 = vmatpush1.msra.mxu0 0.0
    %3884 = vmatprep.subr.mxu0 0.0
    %3885 = vmatpush1.msra.mxu0 0.0
    %3886 = vmatprep.subr.mxu0 0.0
    %3887 = vmatpush1.msra.mxu0 0.0
    %3888 = vmatprep.subr.mxu0 0.0
    %3889 = vmatpush1.msra.mxu0 0.0
    %3890 = vmatprep.subr.mxu0 0.0
    %3891 = vmatpush1.msra.mxu0 0.0
    %3892 = vmatprep.subr.mxu0 0.0
    %3893 = vmatpush1.msra.mxu0 0.0
    %3894 = vmatprep.subr.mxu0 0.0
    %3895 = vmatpush1.msra.mxu0 0.0
    %3896 = vmatprep.subr.mxu0 0.0
    %3897 = vmatpush1.msra.mxu0 0.0
    %3898 = vmatprep.subr.mxu0 0.0
    %3899 = vmatpush1.msra.mxu0 0.0
    %3900 = vmatprep.subr.mxu0 0.0
    %3901 = vmatpush1.msra.mxu0 0.0
    %3902 = vmatprep.subr.mxu0 0.0
    %3903 = vmatpush1.msra.mxu0 0.0
    %3904 = vmatprep.subr.mxu0 0.0
    %3905 = vmatpush1.msra.mxu0 0.0
    %3906 = vmatprep.subr.mxu0 0.0
    %3907 = vmatpush1.msra.mxu0 0.0
    %3908 = vmatprep.subr.mxu0 0.0
    %3909 = vmatpush1.msra.mxu0 0.0
    %3910 = vmatprep.subr.mxu0 0.0
    %3911 = vmatpush1.msra.mxu0 0.0
    %3912 = vmatprep.subr.mxu0 0.0
    %3913 = vmatpush1.msra.mxu0 0.0
    %3914 = vmatprep.mubr.f32.mxu0 0.0
    %3915 = vmatmul.mubr.f32.gmra.mrb[0].mxu0 %v3800
    %v3916 = vpop.f32.mrb[0].mxu0
    %v3917 = vadd.f32 0.0, %v3916
    %v3918 = vpop.f32.mrb[0].mxu0
    %3919 = vmatprep.mubr.f32.mxu0 0.0
    %3920 = vmatmul.mubr.f32.gmra.mrb[0].mxu0 %v3805
    %v3921 = vpop.f32.mrb[0].mxu0
    %v3922 = vadd.f32 0.0, %v3921
    %v3923 = vpop.f32.mrb[0].mxu0
    %3924 = vmatprep.mubr.f32.mxu0 0.0
    %3925 = vmatmul.mubr.f32.gmra.mrb[0].mxu0 %v3810
    %v3926 = vpop.f32.mrb[0].mxu0
    %v3927 = vadd.f32 0.0, %v3926
    %v3928 = vpop.f32.mrb[0].mxu0
    %3929 = vmatprep.mubr.f32.mxu0 0.0
    %3930 = vmatmul.mubr.f32.gmra.mrb[0].mxu0 %v3815
    %v3931 = vpop.f32.mrb[0].mxu0
    %v3932 = vadd.f32 0.0, %v3931
    %v3933 = vpop.f32.mrb[0].mxu0
    %3934 = vdwg.mxu0
    %3935 = vmatprep.subr.mxu0 0.0
    %3936 = vmatpush1.msra.mxu0 %v3818
    %3937 = vmatprep.subr.mxu0 0.0
    %3938 = vmatpush1.msra.mxu0 %v3819
    %3939 = vmatprep.subr.mxu0 0.0
    %3940 = vmatpush1.msra.mxu0 %v3820
    %3941 = vmatprep.subr.mxu0 0.0
    %3942 = vmatpush1.msra.mxu0 %v3821
    %3943 = vmatprep.subr.mxu0 0.0
    %3944 = vmatpush1.msra.mxu0 %v3822
    %3945 = vmatprep.subr.mxu0 0.0
    %3946 = vmatpush1.msra.mxu0 %v3823
    %3947 = vmatprep.subr.mxu0 0.0
    %3948 = vmatpush1.msra.mxu0 %v3824
    %3949 = vmatprep.subr.mxu0 0.0
    %3950 = vmatpush1.msra.mxu0 %v3825
    %3951 = vmatprep.subr.mxu0 0.0
    %3952 = vmatpush1.msra.mxu0 %v3826
    %3953 = vmatprep.subr.mxu0 0.0
    %3954 = vmatpush1.msra.mxu0 %v3827
    %3955 = vmatprep.subr.mxu0 0.0
    %3956 = vmatpush1.msra.mxu0 %v3828
    %3957 = vmatprep.subr.mxu0 0.0
    %3958 = vmatpush1.msra.mxu0 %v3829
    %3959 = vmatprep.subr.mxu0 0.0
    %3960 = vmatpush1.msra.mxu0 %v3830
    %3961 = vmatprep.subr.mxu0 0.0
    %3962 = vmatpush1.msra.mxu0 %v3831
    %3963 = vmatprep.subr.mxu0 0.0
    %3964 = vmatpush1.msra.mxu0 %v3832
    %3965 = vmatprep.subr.mxu0 0.0
    %3966 = vmatpush1.msra.mxu0 %v3833
    %3967 = vmatprep.subr.mxu0 0.0
    %3968 = vmatpush1.msra.mxu0 0.0
    %3969 = vmatprep.subr.mxu0 0.0
    %3970 = vmatpush1.msra.mxu0 0.0
    %3971 = vmatprep.subr.mxu0 0.0
    %3972 = vmatpush1.msra.mxu0 0.0
    %3973 = vmatprep.subr.mxu0 0.0
    %3974 = vmatpush1.msra.mxu0 0.0
    %3975 = vmatprep.subr.mxu0 0.0
    %3976 = vmatpush1.msra.mxu0 0.0
    %3977 = vmatprep.subr.mxu0 0.0
    %3978 = vmatpush1.msra.mxu0 0.0
    %3979 = vmatprep.subr.mxu0 0.0
    %3980 = vmatpush1.msra.mxu0 0.0
    %3981 = vmatprep.subr.mxu0 0.0
    %3982 = vmatpush1.msra.mxu0 0.0
    %3983 = vmatprep.subr.mxu0 0.0
    %3984 = vmatpush1.msra.mxu0 0.0
    %3985 = vmatprep.subr.mxu0 0.0
    %3986 = vmatpush1.msra.mxu0 0.0
    %3987 = vmatprep.subr.mxu0 0.0
    %3988 = vmatpush1.msra.mxu0 0.0
    %3989 = vmatprep.subr.mxu0 0.0
    %3990 = vmatpush1.msra.mxu0 0.0
    %3991 = vmatprep.subr.mxu0 0.0
    %3992 = vmatpush1.msra.mxu0 0.0
    %3993 = vmatprep.subr.mxu0 0.0
    %3994 = vmatpush1.msra.mxu0 0.0
    %3995 = vmatprep.subr.mxu0 0.0
    %3996 = vmatpush1.msra.mxu0 0.0
    %3997 = vmatprep.subr.mxu0 0.0
    %3998 = vmatpush1.msra.mxu0 0.0
    %3999 = vmatprep.mubr.f32.mxu0 0.0
    %4000 = vmatmul.mubr.f32.gmra.mrb[0].mxu0 %v2472
    %v4001 = vpop.f32.mrb[0].mxu0
    %v4002 = vadd.f32 %v3917, %v4001
    %v4003 = vpop.f32.mrb[0].mxu0
    %4004 = vmatprep.mubr.f32.mxu0 0.0
    %4005 = vmatmul.mubr.f32.gmra.mrb[0].mxu0 %v2477
    %v4006 = vpop.f32.mrb[0].mxu0
    %v4007 = vadd.f32 %v3922, %v4006
    %v4008 = vpop.f32.mrb[0].mxu0
    %4009 = vmatprep.mubr.f32.mxu0 0.0
    %4010 = vmatmul.mubr.f32.gmra.mrb[0].mxu0 %v2482
    %v4011 = vpop.f32.mrb[0].mxu0
    %v4012 = vadd.f32 %v3927, %v4011
    %v4013 = vpop.f32.mrb[0].mxu0
    %4014 = vmatprep.mubr.f32.mxu0 0.0
    %4015 = vmatmul.mubr.f32.gmra.mrb[0].mxu0 %v2487
    %v4016 = vpop.f32.mrb[0].mxu0
    %v4017 = vadd.f32 %v3932, %v4016
    %v4018 = vpop.f32.mrb[0].mxu0
    %4019 = vdwg.mxu0
    %4020 = vmatprep.subr.mxu0 0.0
    %4021 = vmatpush1.msra.mxu0 %v3729
    %4022 = vmatprep.subr.mxu0 0.0
    %4023 = vmatpush1.msra.mxu0 %v3730
    %4024 = vmatprep.subr.mxu0 0.0
    %4025 = vmatpush1.msra.mxu0 %v3731
    %4026 = vmatprep.subr.mxu0 0.0
    %4027 = vmatpush1.msra.mxu0 %v3732
    %4028 = vmatprep.subr.mxu0 0.0
    %4029 = vmatpush1.msra.mxu0 0.0
    %4030 = vmatprep.subr.mxu0 0.0
    %4031 = vmatpush1.msra.mxu0 0.0
    %4032 = vmatprep.subr.mxu0 0.0
    %4033 = vmatpush1.msra.mxu0 0.0
    %4034 = vmatprep.subr.mxu0 0.0
    %4035 = vmatpush1.msra.mxu0 0.0
    %4036 = vmatprep.subr.mxu0 0.0
    %4037 = vmatpush1.msra.mxu0 0.0
    %4038 = vmatprep.subr.mxu0 0.0
    %4039 = vmatpush1.msra.mxu0 0.0
    %4040 = vmatprep.subr.mxu0 0.0
    %4041 = vmatpush1.msra.mxu0 0.0
    %4042 = vmatprep.subr.mxu0 0.0
    %4043 = vmatpush1.msra.mxu0 0.0
    %4044 = vmatprep.subr.mxu0 0.0
    %4045 = vmatpush1.msra.mxu0 0.0
    %4046 = vmatprep.subr.mxu0 0.0
    %4047 = vmatpush1.msra.mxu0 0.0
    %4048 = vmatprep.subr.mxu0 0.0
    %4049 = vmatpush1.msra.mxu0 0.0
    %4050 = vmatprep.subr.mxu0 0.0
    %4051 = vmatpush1.msra.mxu0 0.0
    %4052 = vmatprep.subr.mxu0 0.0
    %4053 = vmatpush1.msra.mxu0 0.0
    %4054 = vmatprep.subr.mxu0 0.0
    %4055 = vmatpush1.msra.mxu0 0.0
    %4056 = vmatprep.subr.mxu0 0.0
    %4057 = vmatpush1.msra.mxu0 0.0
    %4058 = vmatprep.subr.mxu0 0.0
    %4059 = vmatpush1.msra.mxu0 0.0
    %4060 = vmatprep.subr.mxu0 0.0
    %4061 = vmatpush1.msra.mxu0 0.0
    %4062 = vmatprep.subr.mxu0 0.0
    %4063 = vmatpush1.msra.mxu0 0.0
    %4064 = vmatprep.subr.mxu0 0.0
    %4065 = vmatpush1.msra.mxu0 0.0
    %4066 = vmatprep.subr.mxu0 0.0
    %4067 = vmatpush1.msra.mxu0 0.0
    %4068 = vmatprep.subr.mxu0 0.0
    %4069 = vmatpush1.msra.mxu0 0.0
    %4070 = vmatprep.subr.mxu0 0.0
    %4071 = vmatpush1.msra.mxu0 0.0
    %4072 = vmatprep.subr.mxu0 0.0
    %4073 = vmatpush1.msra.mxu0 0.0
    %4074 = vmatprep.subr.mxu0 0.0
    %4075 = vmatpush1.msra.mxu0 0.0
    %4076 = vmatprep.subr.mxu0 0.0
    %4077 = vmatpush1.msra.mxu0 0.0
    %4078 = vmatprep.subr.mxu0 0.0
    %4079 = vmatpush1.msra.mxu0 0.0
    %4080 = vmatprep.subr.mxu0 0.0
    %4081 = vmatpush1.msra.mxu0 0.0
    %4082 = vmatprep.subr.mxu0 0.0
    %4083 = vmatpush1.msra.mxu0 0.0
    %4084 = vmatprep.mubr.f32.mxu0 0.0
    %4085 = vmatmul.mubr.f32.gmra.mrb[0].mxu0 %v616
    %v4086 = vpop.f32.mrb[0].mxu0
    %v4087 = vadd.f32 0.0, %v4086
    %v4088 = vpop.f32.mrb[0].mxu0
    %4089 = vmatprep.mubr.f32.mxu0 0.0
    %4090 = vmatmul.mubr.f32.gmra.mrb[0].mxu0 %v619
    %v4091 = vpop.f32.mrb[0].mxu0
    %v4092 = vadd.f32 0.0, %v4091
    %v4093 = vpop.f32.mrb[0].mxu0
    %4094 = vmatprep.mubr.f32.mxu0 0.0
    %4095 = vmatmul.mubr.f32.gmra.mrb[0].mxu0 %v622
    %v4096 = vpop.f32.mrb[0].mxu0
    %v4097 = vadd.f32 0.0, %v4096
    %v4098 = vpop.f32.mrb[0].mxu0
    %4099 = vmatprep.mubr.f32.mxu0 0.0
    %4100 = vmatmul.mubr.f32.gmra.mrb[0].mxu0 %v625
    %v4101 = vpop.f32.mrb[0].mxu0
    %v4102 = vadd.f32 0.0, %v4101
    %v4103 = vpop.f32.mrb[0].mxu0
    %4104 = vdwg.mxu0
    %s4105 = scalar_lea.vmem [#allocation14], 128
    %v4106 = vld [vmem:[%s4105] sm:$0xff]
    %v4107 = vld [vmem:[%s4105 + $0x8] sm:$0xff]
    %v4108 = vld [vmem:[%s4105 + $0x10] sm:$0xff]
    %v4109 = vld [vmem:[%s4105 + $0x18] sm:$0xff]
    %v4110 = vld [vmem:[%s4105 + $0x20] sm:$0xff]
    %v4111 = vld [vmem:[%s4105 + $0x28] sm:$0xff]
    %v4112 = vld [vmem:[%s4105 + $0x30] sm:$0xff]
    %v4113 = vld [vmem:[%s4105 + $0x38] sm:$0xff]
    %v4114 = vld [vmem:[%s4105 + $0x40] sm:$0xff]
    %v4115 = vld [vmem:[%s4105 + $0x48] sm:$0xff]
    %v4116 = vld [vmem:[%s4105 + $0x50] sm:$0xff]
    %v4117 = vld [vmem:[%s4105 + $0x58] sm:$0xff]
    %v4118 = vld [vmem:[%s4105 + $0x60] sm:$0xff]
    %v4119 = vld [vmem:[%s4105 + $0x68] sm:$0xff]
    %v4120 = vld [vmem:[%s4105 + $0x70] sm:$0xff]
    %v4121 = vld [vmem:[%s4105 + $0x78] sm:$0xff]
    %s4122 = scalar_lea.vmem [#allocation16], 128
    %v4123 = vld [vmem:[%s4122] sm:$0xff]
    %v4124 = vld [vmem:[%s4122 + $0x8] sm:$0xff]
    %v4125 = vld [vmem:[%s4122 + $0x10] sm:$0xff]
    %v4126 = vld [vmem:[%s4122 + $0x18] sm:$0xff]
    %v4127 = vld [vmem:[%s4122 + $0x20] sm:$0xff]
    %v4128 = vld [vmem:[%s4122 + $0x28] sm:$0xff]
    %v4129 = vld [vmem:[%s4122 + $0x30] sm:$0xff]
    %v4130 = vld [vmem:[%s4122 + $0x38] sm:$0xff]
    %v4131 = vld [vmem:[%s4122 + $0x40] sm:$0xff]
    %v4132 = vld [vmem:[%s4122 + $0x48] sm:$0xff]
    %v4133 = vld [vmem:[%s4122 + $0x50] sm:$0xff]
    %v4134 = vld [vmem:[%s4122 + $0x58] sm:$0xff]
    %v4135 = vld [vmem:[%s4122 + $0x60] sm:$0xff]
    %v4136 = vld [vmem:[%s4122 + $0x68] sm:$0xff]
    %v4137 = vld [vmem:[%s4122 + $0x70] sm:$0xff]
    %v4138 = vld [vmem:[%s4122 + $0x78] sm:$0xff]
    %4139 = vmatprep.subr.mxu0 0.0
    %4140 = vmatpush1.msra.mxu0 %v4123
    %4141 = vmatprep.subr.mxu0 0.0
    %4142 = vmatpush1.msra.mxu0 %v4124
    %4143 = vmatprep.subr.mxu0 0.0
    %4144 = vmatpush1.msra.mxu0 %v4125
    %4145 = vmatprep.subr.mxu0 0.0
    %4146 = vmatpush1.msra.mxu0 %v4126
    %4147 = vmatprep.subr.mxu0 0.0
    %4148 = vmatpush1.msra.mxu0 %v4127
    %4149 = vmatprep.subr.mxu0 0.0
    %4150 = vmatpush1.msra.mxu0 %v4128
    %4151 = vmatprep.subr.mxu0 0.0
    %4152 = vmatpush1.msra.mxu0 %v4129
    %4153 = vmatprep.subr.mxu0 0.0
    %4154 = vmatpush1.msra.mxu0 %v4130
    %4155 = vmatprep.subr.mxu0 0.0
    %4156 = vmatpush1.msra.mxu0 %v4131
    %4157 = vmatprep.subr.mxu0 0.0
    %4158 = vmatpush1.msra.mxu0 %v4132
    %4159 = vmatprep.subr.mxu0 0.0
    %4160 = vmatpush1.msra.mxu0 %v4133
    %4161 = vmatprep.subr.mxu0 0.0
    %4162 = vmatpush1.msra.mxu0 %v4134
    %4163 = vmatprep.subr.mxu0 0.0
    %4164 = vmatpush1.msra.mxu0 %v4135
    %4165 = vmatprep.subr.mxu0 0.0
    %4166 = vmatpush1.msra.mxu0 %v4136
    %4167 = vmatprep.subr.mxu0 0.0
    %4168 = vmatpush1.msra.mxu0 %v4137
    %4169 = vmatprep.subr.mxu0 0.0
    %4170 = vmatpush1.msra.mxu0 %v4138
    %4171 = vmatprep.subr.mxu0 0.0
    %4172 = vmatpush1.msra.mxu0 0.0
    %4173 = vmatprep.subr.mxu0 0.0
    %4174 = vmatpush1.msra.mxu0 0.0
    %4175 = vmatprep.subr.mxu0 0.0
    %4176 = vmatpush1.msra.mxu0 0.0
    %4177 = vmatprep.subr.mxu0 0.0
    %4178 = vmatpush1.msra.mxu0 0.0
    %4179 = vmatprep.subr.mxu0 0.0
    %4180 = vmatpush1.msra.mxu0 0.0
    %4181 = vmatprep.subr.mxu0 0.0
    %4182 = vmatpush1.msra.mxu0 0.0
    %4183 = vmatprep.subr.mxu0 0.0
    %4184 = vmatpush1.msra.mxu0 0.0
    %4185 = vmatprep.subr.mxu0 0.0
    %4186 = vmatpush1.msra.mxu0 0.0
    %4187 = vmatprep.subr.mxu0 0.0
    %4188 = vmatpush1.msra.mxu0 0.0
    %4189 = vmatprep.subr.mxu0 0.0
    %4190 = vmatpush1.msra.mxu0 0.0
    %4191 = vmatprep.subr.mxu0 0.0
    %4192 = vmatpush1.msra.mxu0 0.0
    %4193 = vmatprep.subr.mxu0 0.0
    %4194 = vmatpush1.msra.mxu0 0.0
    %4195 = vmatprep.subr.mxu0 0.0
    %4196 = vmatpush1.msra.mxu0 0.0
    %4197 = vmatprep.subr.mxu0 0.0
    %4198 = vmatpush1.msra.mxu0 0.0
    %4199 = vmatprep.subr.mxu0 0.0
    %4200 = vmatpush1.msra.mxu0 0.0
    %4201 = vmatprep.subr.mxu0 0.0
    %4202 = vmatpush1.msra.mxu0 0.0
    %4203 = vmatprep.mubr.f32.mxu0 0.0
    %4204 = vmatmul.mubr.f32.gmra.mrb[0].mxu0 %v4087
    %v4205 = vpop.f32.mrb[0].mxu0
    %v4206 = vadd.f32 0.0, %v4205
    %v4207 = vpop.f32.mrb[0].mxu0
    %4208 = vmatprep.mubr.f32.mxu0 0.0
    %4209 = vmatmul.mubr.f32.gmra.mrb[0].mxu0 %v4092
    %v4210 = vpop.f32.mrb[0].mxu0
    %v4211 = vadd.f32 0.0, %v4210
    %v4212 = vpop.f32.mrb[0].mxu0
    %4213 = vmatprep.mubr.f32.mxu0 0.0
    %4214 = vmatmul.mubr.f32.gmra.mrb[0].mxu0 %v4097
    %v4215 = vpop.f32.mrb[0].mxu0
    %v4216 = vadd.f32 0.0, %v4215
    %v4217 = vpop.f32.mrb[0].mxu0
    %4218 = vmatprep.mubr.f32.mxu0 0.0
    %4219 = vmatmul.mubr.f32.gmra.mrb[0].mxu0 %v4102
    %v4220 = vpop.f32.mrb[0].mxu0
    %v4221 = vadd.f32 0.0, %v4220
    %v4222 = vpop.f32.mrb[0].mxu0
    %4223 = vdwg.mxu0
    %4224 = vmatprep.subr.mxu0 0.0
    %4225 = vmatpush1.msra.mxu0 %v4106
    %4226 = vmatprep.subr.mxu0 0.0
    %4227 = vmatpush1.msra.mxu0 %v4107
    %4228 = vmatprep.subr.mxu0 0.0
    %4229 = vmatpush1.msra.mxu0 %v4108
    %4230 = vmatprep.subr.mxu0 0.0
    %4231 = vmatpush1.msra.mxu0 %v4109
    %4232 = vmatprep.subr.mxu0 0.0
    %4233 = vmatpush1.msra.mxu0 %v4110
    %4234 = vmatprep.subr.mxu0 0.0
    %4235 = vmatpush1.msra.mxu0 %v4111
    %4236 = vmatprep.subr.mxu0 0.0
    %4237 = vmatpush1.msra.mxu0 %v4112
    %4238 = vmatprep.subr.mxu0 0.0
    %4239 = vmatpush1.msra.mxu0 %v4113
    %4240 = vmatprep.subr.mxu0 0.0
    %4241 = vmatpush1.msra.mxu0 %v4114
    %4242 = vmatprep.subr.mxu0 0.0
    %4243 = vmatpush1.msra.mxu0 %v4115
    %4244 = vmatprep.subr.mxu0 0.0
    %4245 = vmatpush1.msra.mxu0 %v4116
    %4246 = vmatprep.subr.mxu0 0.0
    %4247 = vmatpush1.msra.mxu0 %v4117
    %4248 = vmatprep.subr.mxu0 0.0
    %4249 = vmatpush1.msra.mxu0 %v4118
    %4250 = vmatprep.subr.mxu0 0.0
    %4251 = vmatpush1.msra.mxu0 %v4119
    %4252 = vmatprep.subr.mxu0 0.0
    %4253 = vmatpush1.msra.mxu0 %v4120
    %4254 = vmatprep.subr.mxu0 0.0
    %4255 = vmatpush1.msra.mxu0 %v4121
    %4256 = vmatprep.subr.mxu0 0.0
    %4257 = vmatpush1.msra.mxu0 0.0
    %4258 = vmatprep.subr.mxu0 0.0
    %4259 = vmatpush1.msra.mxu0 0.0
    %4260 = vmatprep.subr.mxu0 0.0
    %4261 = vmatpush1.msra.mxu0 0.0
    %4262 = vmatprep.subr.mxu0 0.0
    %4263 = vmatpush1.msra.mxu0 0.0
    %4264 = vmatprep.subr.mxu0 0.0
    %4265 = vmatpush1.msra.mxu0 0.0
    %4266 = vmatprep.subr.mxu0 0.0
    %4267 = vmatpush1.msra.mxu0 0.0
    %4268 = vmatprep.subr.mxu0 0.0
    %4269 = vmatpush1.msra.mxu0 0.0
    %4270 = vmatprep.subr.mxu0 0.0
    %4271 = vmatpush1.msra.mxu0 0.0
    %4272 = vmatprep.subr.mxu0 0.0
    %4273 = vmatpush1.msra.mxu0 0.0
    %4274 = vmatprep.subr.mxu0 0.0
    %4275 = vmatpush1.msra.mxu0 0.0
    %4276 = vmatprep.subr.mxu0 0.0
    %4277 = vmatpush1.msra.mxu0 0.0
    %4278 = vmatprep.subr.mxu0 0.0
    %4279 = vmatpush1.msra.mxu0 0.0
    %4280 = vmatprep.subr.mxu0 0.0
    %4281 = vmatpush1.msra.mxu0 0.0
    %4282 = vmatprep.subr.mxu0 0.0
    %4283 = vmatpush1.msra.mxu0 0.0
    %4284 = vmatprep.subr.mxu0 0.0
    %4285 = vmatpush1.msra.mxu0 0.0
    %4286 = vmatprep.subr.mxu0 0.0
    %4287 = vmatpush1.msra.mxu0 0.0
    %4288 = vmatprep.mubr.f32.mxu0 0.0
    %4289 = vmatmul.mubr.f32.gmra.mrb[0].mxu0 %v2884
    %v4290 = vpop.f32.mrb[0].mxu0
    %v4291 = vadd.f32 %v4206, %v4290
    %v4292 = vpop.f32.mrb[0].mxu0
    %4293 = vmatprep.mubr.f32.mxu0 0.0
    %4294 = vmatmul.mubr.f32.gmra.mrb[0].mxu0 %v2889
    %v4295 = vpop.f32.mrb[0].mxu0
    %v4296 = vadd.f32 %v4211, %v4295
    %v4297 = vpop.f32.mrb[0].mxu0
    %4298 = vmatprep.mubr.f32.mxu0 0.0
    %4299 = vmatmul.mubr.f32.gmra.mrb[0].mxu0 %v2894
    %v4300 = vpop.f32.mrb[0].mxu0
    %v4301 = vadd.f32 %v4216, %v4300
    %v4302 = vpop.f32.mrb[0].mxu0
    %4303 = vmatprep.mubr.f32.mxu0 0.0
    %4304 = vmatmul.mubr.f32.gmra.mrb[0].mxu0 %v2899
    %v4305 = vpop.f32.mrb[0].mxu0
    %v4306 = vadd.f32 %v4221, %v4305
    %v4307 = vpop.f32.mrb[0].mxu0
    %4308 = vdwg.mxu0
    %v4309 = vadd.f32 %v4002, %v4291
    %v4310 = vadd.f32 %v4007, %v4296
    %v4311 = vadd.f32 %v4012, %v4301
    %v4312 = vadd.f32 %v4017, %v4306
    %4313 = vmatprep.subr.mxu0 0.0
    %4314 = vmatpush1.msra.mxu0 %v3729
    %4315 = vmatprep.subr.mxu0 0.0
    %4316 = vmatpush1.msra.mxu0 %v3730
    %4317 = vmatprep.subr.mxu0 0.0
    %4318 = vmatpush1.msra.mxu0 %v3731
    %4319 = vmatprep.subr.mxu0 0.0
    %4320 = vmatpush1.msra.mxu0 %v3732
    %4321 = vmatprep.subr.mxu0 0.0
    %4322 = vmatpush1.msra.mxu0 0.0
    %4323 = vmatprep.subr.mxu0 0.0
    %4324 = vmatpush1.msra.mxu0 0.0
    %4325 = vmatprep.subr.mxu0 0.0
    %4326 = vmatpush1.msra.mxu0 0.0
    %4327 = vmatprep.subr.mxu0 0.0
    %4328 = vmatpush1.msra.mxu0 0.0
    %4329 = vmatprep.subr.mxu0 0.0
    %4330 = vmatpush1.msra.mxu0 0.0
    %4331 = vmatprep.subr.mxu0 0.0
    %4332 = vmatpush1.msra.mxu0 0.0
    %4333 = vmatprep.subr.mxu0 0.0
    %4334 = vmatpush1.msra.mxu0 0.0
    %4335 = vmatprep.subr.mxu0 0.0
    %4336 = vmatpush1.msra.mxu0 0.0
    %4337 = vmatprep.subr.mxu0 0.0
    %4338 = vmatpush1.msra.mxu0 0.0
    %4339 = vmatprep.subr.mxu0 0.0
    %4340 = vmatpush1.msra.mxu0 0.0
    %4341 = vmatprep.subr.mxu0 0.0
    %4342 = vmatpush1.msra.mxu0 0.0
    %4343 = vmatprep.subr.mxu0 0.0
    %4344 = vmatpush1.msra.mxu0 0.0
    %4345 = vmatprep.subr.mxu0 0.0
    %4346 = vmatpush1.msra.mxu0 0.0
    %4347 = vmatprep.subr.mxu0 0.0
    %4348 = vmatpush1.msra.mxu0 0.0
    %4349 = vmatprep.subr.mxu0 0.0
    %4350 = vmatpush1.msra.mxu0 0.0
    %4351 = vmatprep.subr.mxu0 0.0
    %4352 = vmatpush1.msra.mxu0 0.0
    %4353 = vmatprep.subr.mxu0 0.0
    %4354 = vmatpush1.msra.mxu0 0.0
    %4355 = vmatprep.subr.mxu0 0.0
    %4356 = vmatpush1.msra.mxu0 0.0
    %4357 = vmatprep.subr.mxu0 0.0
    %4358 = vmatpush1.msra.mxu0 0.0
    %4359 = vmatprep.subr.mxu0 0.0
    %4360 = vmatpush1.msra.mxu0 0.0
    %4361 = vmatprep.subr.mxu0 0.0
    %4362 = vmatpush1.msra.mxu0 0.0
    %4363 = vmatprep.subr.mxu0 0.0
    %4364 = vmatpush1.msra.mxu0 0.0
    %4365 = vmatprep.subr.mxu0 0.0
    %4366 = vmatpush1.msra.mxu0 0.0
    %4367 = vmatprep.subr.mxu0 0.0
    %4368 = vmatpush1.msra.mxu0 0.0
    %4369 = vmatprep.subr.mxu0 0.0
    %4370 = vmatpush1.msra.mxu0 0.0
    %4371 = vmatprep.subr.mxu0 0.0
    %4372 = vmatpush1.msra.mxu0 0.0
    %4373 = vmatprep.subr.mxu0 0.0
    %4374 = vmatpush1.msra.mxu0 0.0
    %4375 = vmatprep.subr.mxu0 0.0
    %4376 = vmatpush1.msra.mxu0 0.0
    %4377 = vmatprep.mubr.f32.mxu0 0.0
    %4378 = vmatmul.mubr.f32.gmra.mrb[0].mxu0 %v1037
    %v4379 = vpop.f32.mrb[0].mxu0
    %v4380 = vadd.f32 0.0, %v4379
    %v4381 = vpop.f32.mrb[0].mxu0
    %4382 = vmatprep.mubr.f32.mxu0 0.0
    %4383 = vmatmul.mubr.f32.gmra.mrb[0].mxu0 %v1040
    %v4384 = vpop.f32.mrb[0].mxu0
    %v4385 = vadd.f32 0.0, %v4384
    %v4386 = vpop.f32.mrb[0].mxu0
    %4387 = vmatprep.mubr.f32.mxu0 0.0
    %4388 = vmatmul.mubr.f32.gmra.mrb[0].mxu0 %v1043
    %v4389 = vpop.f32.mrb[0].mxu0
    %v4390 = vadd.f32 0.0, %v4389
    %v4391 = vpop.f32.mrb[0].mxu0
    %4392 = vmatprep.mubr.f32.mxu0 0.0
    %4393 = vmatmul.mubr.f32.gmra.mrb[0].mxu0 %v1046
    %v4394 = vpop.f32.mrb[0].mxu0
    %v4395 = vadd.f32 0.0, %v4394
    %v4396 = vpop.f32.mrb[0].mxu0
    %4397 = vdwg.mxu0
    %s4398 = scalar_lea.vmem [#allocation14], 256
    %v4399 = vld [vmem:[%s4398] sm:$0xff]
    %v4400 = vld [vmem:[%s4398 + $0x8] sm:$0xff]
    %v4401 = vld [vmem:[%s4398 + $0x10] sm:$0xff]
    %v4402 = vld [vmem:[%s4398 + $0x18] sm:$0xff]
    %v4403 = vld [vmem:[%s4398 + $0x20] sm:$0xff]
    %v4404 = vld [vmem:[%s4398 + $0x28] sm:$0xff]
    %v4405 = vld [vmem:[%s4398 + $0x30] sm:$0xff]
    %v4406 = vld [vmem:[%s4398 + $0x38] sm:$0xff]
    %v4407 = vld [vmem:[%s4398 + $0x40] sm:$0xff]
    %v4408 = vld [vmem:[%s4398 + $0x48] sm:$0xff]
    %v4409 = vld [vmem:[%s4398 + $0x50] sm:$0xff]
    %v4410 = vld [vmem:[%s4398 + $0x58] sm:$0xff]
    %v4411 = vld [vmem:[%s4398 + $0x60] sm:$0xff]
    %v4412 = vld [vmem:[%s4398 + $0x68] sm:$0xff]
    %v4413 = vld [vmem:[%s4398 + $0x70] sm:$0xff]
    %v4414 = vld [vmem:[%s4398 + $0x78] sm:$0xff]
    %s4415 = scalar_lea.vmem [#allocation16], 256
    %v4416 = vld [vmem:[%s4415] sm:$0xff]
    %v4417 = vld [vmem:[%s4415 + $0x8] sm:$0xff]
    %v4418 = vld [vmem:[%s4415 + $0x10] sm:$0xff]
    %v4419 = vld [vmem:[%s4415 + $0x18] sm:$0xff]
    %v4420 = vld [vmem:[%s4415 + $0x20] sm:$0xff]
    %v4421 = vld [vmem:[%s4415 + $0x28] sm:$0xff]
    %v4422 = vld [vmem:[%s4415 + $0x30] sm:$0xff]
    %v4423 = vld [vmem:[%s4415 + $0x38] sm:$0xff]
    %v4424 = vld [vmem:[%s4415 + $0x40] sm:$0xff]
    %v4425 = vld [vmem:[%s4415 + $0x48] sm:$0xff]
    %v4426 = vld [vmem:[%s4415 + $0x50] sm:$0xff]
    %v4427 = vld [vmem:[%s4415 + $0x58] sm:$0xff]
    %v4428 = vld [vmem:[%s4415 + $0x60] sm:$0xff]
    %v4429 = vld [vmem:[%s4415 + $0x68] sm:$0xff]
    %v4430 = vld [vmem:[%s4415 + $0x70] sm:$0xff]
    %v4431 = vld [vmem:[%s4415 + $0x78] sm:$0xff]
    %4432 = vmatprep.subr.mxu0 0.0
    %4433 = vmatpush1.msra.mxu0 %v4416
    %4434 = vmatprep.subr.mxu0 0.0
    %4435 = vmatpush1.msra.mxu0 %v4417
    %4436 = vmatprep.subr.mxu0 0.0
    %4437 = vmatpush1.msra.mxu0 %v4418
    %4438 = vmatprep.subr.mxu0 0.0
    %4439 = vmatpush1.msra.mxu0 %v4419
    %4440 = vmatprep.subr.mxu0 0.0
    %4441 = vmatpush1.msra.mxu0 %v4420
    %4442 = vmatprep.subr.mxu0 0.0
    %4443 = vmatpush1.msra.mxu0 %v4421
    %4444 = vmatprep.subr.mxu0 0.0
    %4445 = vmatpush1.msra.mxu0 %v4422
    %4446 = vmatprep.subr.mxu0 0.0
    %4447 = vmatpush1.msra.mxu0 %v4423
    %4448 = vmatprep.subr.mxu0 0.0
    %4449 = vmatpush1.msra.mxu0 %v4424
    %4450 = vmatprep.subr.mxu0 0.0
    %4451 = vmatpush1.msra.mxu0 %v4425
    %4452 = vmatprep.subr.mxu0 0.0
    %4453 = vmatpush1.msra.mxu0 %v4426
    %4454 = vmatprep.subr.mxu0 0.0
    %4455 = vmatpush1.msra.mxu0 %v4427
    %4456 = vmatprep.subr.mxu0 0.0
    %4457 = vmatpush1.msra.mxu0 %v4428
    %4458 = vmatprep.subr.mxu0 0.0
    %4459 = vmatpush1.msra.mxu0 %v4429
    %4460 = vmatprep.subr.mxu0 0.0
    %4461 = vmatpush1.msra.mxu0 %v4430
    %4462 = vmatprep.subr.mxu0 0.0
    %4463 = vmatpush1.msra.mxu0 %v4431
    %4464 = vmatprep.subr.mxu0 0.0
    %4465 = vmatpush1.msra.mxu0 0.0
    %4466 = vmatprep.subr.mxu0 0.0
    %4467 = vmatpush1.msra.mxu0 0.0
    %4468 = vmatprep.subr.mxu0 0.0
    %4469 = vmatpush1.msra.mxu0 0.0
    %4470 = vmatprep.subr.mxu0 0.0
    %4471 = vmatpush1.msra.mxu0 0.0
    %4472 = vmatprep.subr.mxu0 0.0
    %4473 = vmatpush1.msra.mxu0 0.0
    %4474 = vmatprep.subr.mxu0 0.0
    %4475 = vmatpush1.msra.mxu0 0.0
    %4476 = vmatprep.subr.mxu0 0.0
    %4477 = vmatpush1.msra.mxu0 0.0
    %4478 = vmatprep.subr.mxu0 0.0
    %4479 = vmatpush1.msra.mxu0 0.0
    %4480 = vmatprep.subr.mxu0 0.0
    %4481 = vmatpush1.msra.mxu0 0.0
    %4482 = vmatprep.subr.mxu0 0.0
    %4483 = vmatpush1.msra.mxu0 0.0
    %4484 = vmatprep.subr.mxu0 0.0
    %4485 = vmatpush1.msra.mxu0 0.0
    %4486 = vmatprep.subr.mxu0 0.0
    %4487 = vmatpush1.msra.mxu0 0.0
    %4488 = vmatprep.subr.mxu0 0.0
    %4489 = vmatpush1.msra.mxu0 0.0
    %4490 = vmatprep.subr.mxu0 0.0
    %4491 = vmatpush1.msra.mxu0 0.0
    %4492 = vmatprep.subr.mxu0 0.0
    %4493 = vmatpush1.msra.mxu0 0.0
    %4494 = vmatprep.subr.mxu0 0.0
    %4495 = vmatpush1.msra.mxu0 0.0
    %4496 = vmatprep.mubr.f32.mxu0 0.0
    %4497 = vmatmul.mubr.f32.gmra.mrb[0].mxu0 %v4380
    %v4498 = vpop.f32.mrb[0].mxu0
    %v4499 = vadd.f32 0.0, %v4498
    %v4500 = vpop.f32.mrb[0].mxu0
    %4501 = vmatprep.mubr.f32.mxu0 0.0
    %4502 = vmatmul.mubr.f32.gmra.mrb[0].mxu0 %v4385
    %v4503 = vpop.f32.mrb[0].mxu0
    %v4504 = vadd.f32 0.0, %v4503
    %v4505 = vpop.f32.mrb[0].mxu0
    %4506 = vmatprep.mubr.f32.mxu0 0.0
    %4507 = vmatmul.mubr.f32.gmra.mrb[0].mxu0 %v4390
    %v4508 = vpop.f32.mrb[0].mxu0
    %v4509 = vadd.f32 0.0, %v4508
    %v4510 = vpop.f32.mrb[0].mxu0
    %4511 = vmatprep.mubr.f32.mxu0 0.0
    %4512 = vmatmul.mubr.f32.gmra.mrb[0].mxu0 %v4395
    %v4513 = vpop.f32.mrb[0].mxu0
    %v4514 = vadd.f32 0.0, %v4513
    %v4515 = vpop.f32.mrb[0].mxu0
    %4516 = vdwg.mxu0
    %4517 = vmatprep.subr.mxu0 0.0
    %4518 = vmatpush1.msra.mxu0 %v4399
    %4519 = vmatprep.subr.mxu0 0.0
    %4520 = vmatpush1.msra.mxu0 %v4400
    %4521 = vmatprep.subr.mxu0 0.0
    %4522 = vmatpush1.msra.mxu0 %v4401
    %4523 = vmatprep.subr.mxu0 0.0
    %4524 = vmatpush1.msra.mxu0 %v4402
    %4525 = vmatprep.subr.mxu0 0.0
    %4526 = vmatpush1.msra.mxu0 %v4403
    %4527 = vmatprep.subr.mxu0 0.0
    %4528 = vmatpush1.msra.mxu0 %v4404
    %4529 = vmatprep.subr.mxu0 0.0
    %4530 = vmatpush1.msra.mxu0 %v4405
    %4531 = vmatprep.subr.mxu0 0.0
    %4532 = vmatpush1.msra.mxu0 %v4406
    %4533 = vmatprep.subr.mxu0 0.0
    %4534 = vmatpush1.msra.mxu0 %v4407
    %4535 = vmatprep.subr.mxu0 0.0
    %4536 = vmatpush1.msra.mxu0 %v4408
    %4537 = vmatprep.subr.mxu0 0.0
    %4538 = vmatpush1.msra.mxu0 %v4409
    %4539 = vmatprep.subr.mxu0 0.0
    %4540 = vmatpush1.msra.mxu0 %v4410
    %4541 = vmatprep.subr.mxu0 0.0
    %4542 = vmatpush1.msra.mxu0 %v4411
    %4543 = vmatprep.subr.mxu0 0.0
    %4544 = vmatpush1.msra.mxu0 %v4412
    %4545 = vmatprep.subr.mxu0 0.0
    %4546 = vmatpush1.msra.mxu0 %v4413
    %4547 = vmatprep.subr.mxu0 0.0
    %4548 = vmatpush1.msra.mxu0 %v4414
    %4549 = vmatprep.subr.mxu0 0.0
    %4550 = vmatpush1.msra.mxu0 0.0
    %4551 = vmatprep.subr.mxu0 0.0
    %4552 = vmatpush1.msra.mxu0 0.0
    %4553 = vmatprep.subr.mxu0 0.0
    %4554 = vmatpush1.msra.mxu0 0.0
    %4555 = vmatprep.subr.mxu0 0.0
    %4556 = vmatpush1.msra.mxu0 0.0
    %4557 = vmatprep.subr.mxu0 0.0
    %4558 = vmatpush1.msra.mxu0 0.0
    %4559 = vmatprep.subr.mxu0 0.0
    %4560 = vmatpush1.msra.mxu0 0.0
    %4561 = vmatprep.subr.mxu0 0.0
    %4562 = vmatpush1.msra.mxu0 0.0
    %4563 = vmatprep.subr.mxu0 0.0
    %4564 = vmatpush1.msra.mxu0 0.0
    %4565 = vmatprep.subr.mxu0 0.0
    %4566 = vmatpush1.msra.mxu0 0.0
    %4567 = vmatprep.subr.mxu0 0.0
    %4568 = vmatpush1.msra.mxu0 0.0
    %4569 = vmatprep.subr.mxu0 0.0
    %4570 = vmatpush1.msra.mxu0 0.0
    %4571 = vmatprep.subr.mxu0 0.0
    %4572 = vmatpush1.msra.mxu0 0.0
    %4573 = vmatprep.subr.mxu0 0.0
    %4574 = vmatpush1.msra.mxu0 0.0
    %4575 = vmatprep.subr.mxu0 0.0
    %4576 = vmatpush1.msra.mxu0 0.0
    %4577 = vmatprep.subr.mxu0 0.0
    %4578 = vmatpush1.msra.mxu0 0.0
    %4579 = vmatprep.subr.mxu0 0.0
    %4580 = vmatpush1.msra.mxu0 0.0
    %4581 = vmatprep.mubr.f32.mxu0 0.0
    %4582 = vmatmul.mubr.f32.gmra.mrb[0].mxu0 %v3306
    %v4583 = vpop.f32.mrb[0].mxu0
    %v4584 = vadd.f32 %v4499, %v4583
    %v4585 = vpop.f32.mrb[0].mxu0
    %4586 = vmatprep.mubr.f32.mxu0 0.0
    %4587 = vmatmul.mubr.f32.gmra.mrb[0].mxu0 %v3311
    %v4588 = vpop.f32.mrb[0].mxu0
    %v4589 = vadd.f32 %v4504, %v4588
    %v4590 = vpop.f32.mrb[0].mxu0
    %4591 = vmatprep.mubr.f32.mxu0 0.0
    %4592 = vmatmul.mubr.f32.gmra.mrb[0].mxu0 %v3316
    %v4593 = vpop.f32.mrb[0].mxu0
    %v4594 = vadd.f32 %v4509, %v4593
    %v4595 = vpop.f32.mrb[0].mxu0
    %4596 = vmatprep.mubr.f32.mxu0 0.0
    %4597 = vmatmul.mubr.f32.gmra.mrb[0].mxu0 %v3321
    %v4598 = vpop.f32.mrb[0].mxu0
    %v4599 = vadd.f32 %v4514, %v4598
    %v4600 = vpop.f32.mrb[0].mxu0
    %4601 = vdwg.mxu0
    %v4602 = vadd.f32 %v4309, %v4584
    %v4603 = vadd.f32 %v4310, %v4589
    %v4604 = vadd.f32 %v4311, %v4594
    %v4605 = vadd.f32 %v4312, %v4599
    %v4606 = vld [vmem:[%s15] sm:$0x1]
    %v4608 = vlaneseq
    %v4609 = vshrl.u32 %v4608, 7
    %v4610 = vsub.s32 0, %v4609
    %v4611 = vrot.slane %v4606, %v4610
    %v4613 = vadd.f32 %v4602, %v4611
    %v4614 = vadd.f32 %v4603, %v4611
    %v4615 = vadd.f32 %v4604, %v4611
    %v4616 = vadd.f32 %v4605, %v4611
    %v4617 = vtanh.pop %v4613
    %v4618 = vtanh.pop %v4614
    %v4619 = vtanh.pop %v4615
    %v4620 = vtanh.pop %v4616
    %v4621 = vsub.f32 1.0, %v3714
    %v4622 = vsub.f32 1.0, %v3718
    %v4623 = vsub.f32 1.0, %v3722
    %v4624 = vsub.f32 1.0, %v3726
    %v4625 = vmul.f32 %v4621, %v2401
    %v4626 = vmul.f32 %v4622, %v2402
    %v4627 = vmul.f32 %v4623, %v2403
    %v4628 = vmul.f32 %v4624, %v2404
    %v4629 = vmul.f32 %v3714, %v4617
    %v4630 = vmul.f32 %v3718, %v4618
    %v4631 = vmul.f32 %v3722, %v4619
    %v4632 = vmul.f32 %v3726, %v4620
    %v4633 = vadd.f32 %v4625, %v4629
    %v4634 = vadd.f32 %v4626, %v4630
    %v4635 = vadd.f32 %v4627, %v4631
    %v4636 = vadd.f32 %v4628, %v4632
    %4637 = vst [vmem:[#allocation18] sm:$0xff] %v4633
    %4638 = vst [vmem:[#allocation18 + $0x8] sm:$0xff] %v4634
    %4639 = vst [vmem:[#allocation18 + $0x10] sm:$0xff] %v4635
    %4640 = vst [vmem:[#allocation18 + $0x18] sm:$0xff] %v4636
    // Predicated region
    $region102: #{tpu_custom_call.1} parent=1 // pred_check
      _
    $region103: #{tpu_custom_call.1} parent=1 // pred_check_branch
      %4642 = sbr.rel (0) target = $region105
    $region104: #{tpu_custom_call.1} parent=1 // pred_region
      %s4644 = ssub.s32 512, 512
      %4645 = vsyncadd [#allocation4], %s4644
      %s4646 = sshll.u32 [#allocation17], 4
      %s4647 = int_to_ptr.vmem [resolvable:$true] %s4646
      %4652 = dma.vmem_to_hbm [thread:$0]  %s4647, 512, %s16, [#allocation4], 128, 128, 8
    $region105: #{tpu_custom_call.1} parent=1 // pred_fallthru
      _
    // Predicated region
    $region106: #{tpu_custom_call.1} parent=1 // pred_check
      _
    $region107: #{tpu_custom_call.1} parent=1 // pred_check_branch
      %4654 = sbr.rel (0) target = $region109
    $region108: #{tpu_custom_call.1} parent=1 // pred_region
      %s4656 = ssub.s32 512, 512
      %4657 = vsyncadd [#allocation19], %s4656
      %s4658 = sshll.u32 [#allocation18], 4
      %s4659 = int_to_ptr.vmem [resolvable:$true] %s4658
      %4664 = dma.vmem_to_hbm [thread:$0]  %s4659, 512, %s17, [#allocation19], 128, 128, 8
    $region109: #{tpu_custom_call.1} parent=1 // pred_fallthru
      _
    // Predicated region
    $region110: #{tpu_custom_call.1} parent=1 // pred_check
      _
    $region111: #{tpu_custom_call.1} parent=1 // pred_check_branch
      %4666 = sbr.rel (0) target = $region113
    $region112: #{tpu_custom_call.1} parent=1 // pred_region
      %4667 = dma.done [#allocation4], 512
    $region113: #{tpu_custom_call.1} parent=1 // pred_fallthru
      _
    // Predicated region
    $region114: #{tpu_custom_call.1} parent=1 // pred_check
      _
    $region115: #{tpu_custom_call.1} parent=1 // pred_check_branch
      %4669 = sbr.rel (0) target = $region117
    $region116: #{tpu_custom_call.1} parent=1 // pred_region
      %4670 = dma.done [#allocation19], 512
    $region117: #{tpu_custom_call.1} parent=1 // pred_fallthru
      _
    %4671 = vsyncpa [#allocation3], 1
    %4672 = vsyncpa [#allocation6], 1
    %4673 = vsyncpa [#allocation9], 1
    %4674 = vsyncpa [#allocation12], 1
    %4675 = vsyncpa [#allocation15], 1
    %4676 = vsyncpa [#allocation4], 1
    %4677 = vsyncpa [#allocation19], 1

</llo_original>
